<compile_context>
chip_gen: v7x
topology: tpu7x:2x2x1
jax: 0.10.0
libtpu: 0.0.40
codegen_flags: <defaults>
</compile_context>

<pallas_src>
import functools
import math

import jax
import jax.numpy as jnp
from jax.experimental import pallas as pl
from jax.experimental.pallas import tpu as pltpu


# -----------------------------------------------------------------------------
# Fused kernel: all BiLSTM layers (both RNNs, both directions) + head
# -----------------------------------------------------------------------------
def make_snli_kernel(n_layers, T, B, H):
    G = 4 * H  # packed state width = lanes per gate block: [f1 | r1 | f2 | r2]

    def kernel(*refs):
        # refs = [x, (wa, wb, whh, bias) * n_layers, fc_w, fc_b, fin_w, fin_b,
        #         out_ref, hs_scratch]
        x_ref = refs[0]
        out_ref = refs[5 + 4 * n_layers]
        hs_ref = refs[6 + 4 * n_layers]          # VMEM scratch (T*B, 4H)

        cur = x_ref[...]                         # (T*B, 2*In) current layer input
        h = jnp.zeros((B, G), jnp.float32)
        c = jnp.zeros((B, G), jnp.float32)

        for l in range(n_layers):
            wa_ref, wb_ref, whh_ref, b_ref = refs[1 + 4 * l: 5 + 4 * l]
            wa = wa_ref[...]                     # (In2, 16H) consumed at time s
            wb = wb_ref[...]                     # (In2, 16H) consumed at time T-1-s
            whh = whh_ref[...]                   # (4H, 16H) block-diag recurrent
            bias = b_ref[...]                    # (1, 16H)

            # Hoisted input projection for ALL timesteps / directions / RNNs.
            gxa = jnp.dot(cur, wa, preferred_element_type=jnp.float32) + bias
            gxb = jnp.dot(cur, wb, preferred_element_type=jnp.float32)

            h = jnp.zeros((B, G), jnp.float32)
            c = jnp.zeros((B, G), jnp.float32)
            last = (l + 1 == n_layers)

            # T is small and static -> full unroll, all indices static.
            for s in range(T):
                ga = gxa[s * B:(s + 1) * B, :]                 # fwd inputs @ time s
                gb = gxb[(T - 1 - s) * B:(T - s) * B, :]       # rev inputs @ T-1-s
                gh = jnp.dot(h, whh, preferred_element_type=jnp.float32)
                gates = ga + gb + gh                           # (B, 16H)
                # Gate columns are interleaved per gate -> full 128-lane slices.
                i_g = jax.nn.sigmoid(gates[:, 0 * G:1 * G])
                f_g = jax.nn.sigmoid(gates[:, 1 * G:2 * G])
                g_g = jnp.tanh(gates[:, 2 * G:3 * G])
                o_g = jax.nn.sigmoid(gates[:, 3 * G:4 * G])
                c = f_g * c + i_g * g_g
                h = o_g * jnp.tanh(c)
                if not last:
                    # Per-step store of the packed state; the "scrambled" time
                    # semantics (fwd@s | rev@T-1-s) are undone by the next layer's
                    # pre-permuted wa/wb weights — no in-kernel relayout needed.
                    hs_ref[pl.ds(s * B, B), :] = h
            if not last:
                cur = hs_ref[...]                # (T*B, 4H) next-layer input

        # After the last step, h = [h_f1(T-1) | h_r1(0) | h_f2(T-1) | h_r2(0)]
        # == cat(hidden[-2], hidden[-1]) for rnn1 then rnn2 — exactly what the
        # PyTorch head consumes.  Fused head: fc1/fc2 (block-diag) then final.
        fcw = refs[1 + 4 * n_layers][...]        # (4H, 2O) block_diag(fc1^T, fc2^T)
        fcb = refs[2 + 4 * n_layers][...]        # (1, 2O)
        finw = refs[3 + 4 * n_layers][...]       # (2O, O)
        finb = refs[4 + 4 * n_layers][...]       # (1, O)
        opoh = jnp.dot(h, fcw, preferred_element_type=jnp.float32) + fcb
        out_ref[...] = jnp.dot(opoh, finw, preferred_element_type=jnp.float32) + finb

    return kernel


# -----------------------------------------------------------------------------
# Forward pass wrapper: single pallas_call for the whole model
# -----------------------------------------------------------------------------
@functools.partial(jax.jit, static_argnames=("n_layers",))
def simple_snli_forward(p, h, params, n_layers):
    T, B, E = p.shape
    H = params["whh_0"].shape[0] // 4
    O = params["final_b"].shape[-1]

    # Flatten in the wrapper (lane layout: [x_p | x_h], time-major rows).
    x_flat = jnp.concatenate([p, h], axis=-1).reshape(T * B, 2 * E)

    args = [x_flat]
    for l in range(n_layers):
        args += [params[f"wa_{l}"], params[f"wb_{l}"],
                 params[f"whh_{l}"], params[f"bias_{l}"]]
    args += [params["fc_w"], params["fc_b"], params["final_wT"], params["final_b"]]

    kernel = make_snli_kernel(n_layers, T, B, H)
    return pl.pallas_call(
        kernel,
        out_shape=jax.ShapeDtypeStruct((B, O), jnp.float32),
        in_specs=[pl.BlockSpec(memory_space=pltpu.MemorySpace.VMEM) for _ in args],
        out_specs=pl.BlockSpec(memory_space=pltpu.MemorySpace.VMEM),
        scratch_shapes=[pltpu.VMEM((T * B, 4 * H), jnp.float32)],
    )(*args)


# -----------------------------------------------------------------------------
# Parameter construction: deterministic PyTorch-like init, pre-packed into the
# fused lane-dense layouts the kernel expects.
#   dr index: 0 = rnn1 fwd, 1 = rnn1 rev, 2 = rnn2 fwd, 3 = rnn2 rev
#   gate column layout: [ i (4H) | f (4H) | g (4H) | o (4H) ], each 4H block is
#   ordered [f1 | r1 | f2 | r2]; PyTorch gate order i,f,g,o per (4H, In) weight.
# -----------------------------------------------------------------------------
def init_params(key, embedding_dim, hidden_dim, output_dim, n_layers):
    E, H, O = embedding_dim, hidden_dim, output_dim
    G = 4 * H
    bound = 1.0 / math.sqrt(H)

    def uni(k, shape, b):
        return jax.random.uniform(k, shape, jnp.float32, -b, b)

    def scatter(big, w_sub, dr, row_off):
        """Place PyTorch-layout (4H, K) weight (transposed) into the big matrix:
        rows [row_off, row_off+K), columns of slot `dr` in each gate block."""
        K = w_sub.shape[1]
        for g in range(4):
            big = big.at[row_off:row_off + K,
                         g * G + dr * H: g * G + (dr + 1) * H].set(
                             w_sub[g * H:(g + 1) * H, :].T)
        return big

    params = {}
    for l in range(n_layers):
        in_size = E if l == 0 else 2 * H
        w_ih, w_hh, b_sum = [], [], []
        for _dr in range(4):
            key, k1, k2, k3, k4 = jax.random.split(key, 5)
            w_ih.append(uni(k1, (G, in_size), bound))          # PyTorch (4H, In)
            w_hh.append(uni(k2, (G, H), bound))                # (4H, H)
            b_sum.append(uni(k3, (G,), bound) + uni(k4, (G,), bound))  # b_ih + b_hh

        # Recurrent weights: 4-way block-diagonal in the packed layout.
        whh = jnp.zeros((4 * H, 4 * G), jnp.float32)
        bias = jnp.zeros((1, 4 * G), jnp.float32)
        for dr in range(4):
            whh = scatter(whh, w_hh[dr], dr, dr * H)
            for g in range(4):
                bias = bias.at[0, g * G + dr * H: g * G + (dr + 1) * H].set(
                    b_sum[dr][g * H:(g + 1) * H])

        if l == 0:
            # Layer-0 input rows: [x_p | x_h] at one timestep.
            wa = jnp.zeros((2 * E, 4 * G), jnp.float32)
            wb = jnp.zeros((2 * E, 4 * G), jnp.float32)
            wa = scatter(wa, w_ih[0], 0, 0)      # x_p(s)     -> fwd rnn1
            wa = scatter(wa, w_ih[2], 2, E)      # x_h(s)     -> fwd rnn2
            wb = scatter(wb, w_ih[1], 1, 0)      # x_p(T-1-s) -> rev rnn1
            wb = scatter(wb, w_ih[3], 3, E)      # x_h(T-1-s) -> rev rnn2
        else:
            # Layer>=1 input rows are the previous layer's packed step state
            # hs[s] = [h_f1(s) | h_r1(T-1-s) | h_f2(s) | h_r2(T-1-s)]; the lane
            # permutation + fwd/rev channel split of PyTorch's (4H, 2H) W_ih is
            # absorbed here (gxa consumed at step s, gxb at step T-1-s).
            wa = jnp.zeros((4 * H, 4 * G), jnp.float32)
            wb = jnp.zeros((4 * H, 4 * G), jnp.float32)
            wa = scatter(wa, w_ih[0][:, :H], 0, 0)        # h_f1(s)      -> fwd1
            wa = scatter(wa, w_ih[1][:, H:], 1, H)        # h_r1(T-1-s)  -> rev1
            wa = scatter(wa, w_ih[2][:, :H], 2, 2 * H)    # h_f2(s)      -> fwd2
            wa = scatter(wa, w_ih[3][:, H:], 3, 3 * H)    # h_r2(T-1-s)  -> rev2
            wb = scatter(wb, w_ih[1][:, :H], 1, 0)        # h_f1(T-1-s)  -> rev1
            wb = scatter(wb, w_ih[0][:, H:], 0, H)        # h_r1(s)      -> fwd1
            wb = scatter(wb, w_ih[3][:, :H], 3, 2 * H)    # h_f2(T-1-s)  -> rev2
            wb = scatter(wb, w_ih[2][:, H:], 2, 3 * H)    # h_r2(s)      -> fwd2

        params[f"wa_{l}"] = wa
        params[f"wb_{l}"] = wb
        params[f"whh_{l}"] = whh
        params[f"bias_{l}"] = bias

    # Head: fc1 / fc2 packed block-diagonally (input = packed final hidden state
    # [h_f1(T-1) | h_r1(0) | h_f2(T-1) | h_r2(0)]), then the final linear.
    fb1 = 1.0 / math.sqrt(2 * H)
    key, k1, k2, k3, k4 = jax.random.split(key, 5)
    fc1_w = uni(k1, (O, 2 * H), fb1)
    fc1_b = uni(k2, (O,), fb1)
    fc2_w = uni(k3, (O, 2 * H), fb1)
    fc2_b = uni(k4, (O,), fb1)
    fc_w = jnp.zeros((4 * H, 2 * O), jnp.float32)
    fc_w = fc_w.at[:2 * H, :O].set(fc1_w.T)
    fc_w = fc_w.at[2 * H:, O:].set(fc2_w.T)
    params["fc_w"] = fc_w
    params["fc_b"] = jnp.concatenate([fc1_b, fc2_b]).reshape(1, 2 * O)

    fb2 = 1.0 / math.sqrt(2 * O)
    key, k1, k2 = jax.random.split(key, 3)
    params["final_wT"] = uni(k1, (O, 2 * O), fb2).T            # (2O, O)
    params["final_b"] = uni(k2, (O,), fb2).reshape(1, O)
    return params


# -----------------------------------------------------------------------------
if __name__ == "__main__":
    EMBEDDING_DIM = 16
    HIDDEN_DIM = 32
    OUTPUT_DIM = 8
    N_LAYERS = 2
    SEQ_LEN = 8
    BATCH = 2
    # bidirectional=True, dropout=0.0 (nn.Dropout is identity in eval mode)

    key = jax.random.PRNGKey(0)
    key, kp, kh, kw = jax.random.split(key, 4)

    p = jax.random.normal(kp, (SEQ_LEN, BATCH, EMBEDDING_DIM), jnp.float32)
    h = jax.random.normal(kh, (SEQ_LEN, BATCH, EMBEDDING_DIM), jnp.float32)
    params = init_params(kw, EMBEDDING_DIM, HIDDEN_DIM, OUTPUT_DIM, N_LAYERS)

    out = simple_snli_forward(p, h, params, N_LAYERS)
    jax.block_until_ready(out)
    assert out.shape == (BATCH, OUTPUT_DIM), out.shape
    print("KERNEL_OK")
</pallas_src>

<mosaic_0001>
module attributes {stable_mosaic.version = 11 : i64} {
  func.func @kernel(%arg0: memref<16x32xf32, #tpu.memory_space<vmem>>, %arg1: memref<32x512xf32, #tpu.memory_space<vmem>>, %arg2: memref<32x512xf32, #tpu.memory_space<vmem>>, %arg3: memref<128x512xf32, #tpu.memory_space<vmem>>, %arg4: memref<1x512xf32, #tpu.memory_space<vmem>>, %arg5: memref<128x512xf32, #tpu.memory_space<vmem>>, %arg6: memref<128x512xf32, #tpu.memory_space<vmem>>, %arg7: memref<128x512xf32, #tpu.memory_space<vmem>>, %arg8: memref<1x512xf32, #tpu.memory_space<vmem>>, %arg9: memref<128x16xf32, #tpu.memory_space<vmem>>, %arg10: memref<1x16xf32, #tpu.memory_space<vmem>>, %arg11: memref<16x8xf32, #tpu.memory_space<vmem>>, %arg12: memref<1x8xf32, #tpu.memory_space<vmem>>, %arg13: memref<2x8xf32, #tpu.memory_space<vmem>>, %arg14: memref<16x128xf32, #tpu.memory_space<vmem>>) attributes {dimension_semantics = [], scalar_prefetch = 0 : i64, scratch_operands = 1 : i64, tpu.core_type = #tpu.core_type<tc>} {
    %c0 = arith.constant 0 : index
    %c0_0 = arith.constant 0 : index
    %0 = vector.load %arg0[%c0, %c0_0] : memref<16x32xf32, #tpu.memory_space<vmem>>, vector<16x32xf32>
    %c0_1 = arith.constant 0 : index
    %c0_2 = arith.constant 0 : index
    %1 = vector.load %arg1[%c0_1, %c0_2] : memref<32x512xf32, #tpu.memory_space<vmem>>, vector<32x512xf32>
    %c0_3 = arith.constant 0 : index
    %c0_4 = arith.constant 0 : index
    %2 = vector.load %arg2[%c0_3, %c0_4] : memref<32x512xf32, #tpu.memory_space<vmem>>, vector<32x512xf32>
    %c0_5 = arith.constant 0 : index
    %c0_6 = arith.constant 0 : index
    %3 = vector.load %arg3[%c0_5, %c0_6] : memref<128x512xf32, #tpu.memory_space<vmem>>, vector<128x512xf32>
    %c0_7 = arith.constant 0 : index
    %c0_8 = arith.constant 0 : index
    %4 = vector.load %arg4[%c0_7, %c0_8] : memref<1x512xf32, #tpu.memory_space<vmem>>, vector<1x512xf32>
    %cst = arith.constant dense<0.000000e+00> : vector<16x512xf32>
    %5 = tpu.matmul %0, %1, %cst {dimension_numbers = #tpu.dot_dimension_numbers<[1], [0], [0], [1], [0, 0, 1, 1], [], []>} : vector<16x32xf32>, vector<32x512xf32>, vector<16x512xf32> -> vector<16x512xf32>
    %6 = vector.broadcast %4 : vector<1x512xf32> to vector<16x512xf32>
    %7 = arith.addf %5, %6 : vector<16x512xf32>
    %cst_9 = arith.constant dense<0.000000e+00> : vector<16x512xf32>
    %8 = tpu.matmul %0, %2, %cst_9 {dimension_numbers = #tpu.dot_dimension_numbers<[1], [0], [0], [1], [0, 0, 1, 1], [], []>} : vector<16x32xf32>, vector<32x512xf32>, vector<16x512xf32> -> vector<16x512xf32>
    %cst_10 = arith.constant 0.000000e+00 : f32
    %9 = vector.broadcast %cst_10 : f32 to vector<2x128xf32>
    %cst_11 = arith.constant 0.000000e+00 : f32
    %10 = vector.broadcast %cst_11 : f32 to vector<2x128xf32>
    %11 = vector.extract_strided_slice %7 {offsets = [0, 0], sizes = [2, 512], strides = [1, 1]} : vector<16x512xf32> to vector<2x512xf32>
    %12 = vector.extract_strided_slice %8 {offsets = [14, 0], sizes = [2, 512], strides = [1, 1]} : vector<16x512xf32> to vector<2x512xf32>
    %cst_12 = arith.constant dense<0.000000e+00> : vector<2x512xf32>
    %13 = tpu.matmul %9, %3, %cst_12 {dimension_numbers = #tpu.dot_dimension_numbers<[1], [0], [0], [1], [0, 0, 1, 1], [], []>} : vector<2x128xf32>, vector<128x512xf32>, vector<2x512xf32> -> vector<2x512xf32>
    %14 = arith.addf %11, %12 : vector<2x512xf32>
    %15 = arith.addf %14, %13 : vector<2x512xf32>
    %16 = vector.extract_strided_slice %15 {offsets = [0, 0], sizes = [2, 128], strides = [1, 1]} : vector<2x512xf32> to vector<2x128xf32>
    %17 = arith.negf %16 : vector<2x128xf32>
    %18 = math.exp %17 : vector<2x128xf32>
    %cst_13 = arith.constant 1.000000e+00 : f32
    %19 = vector.broadcast %cst_13 : f32 to vector<2x128xf32>
    %20 = arith.addf %19, %18 : vector<2x128xf32>
    %21 = arith.divf %19, %20 : vector<2x128xf32>
    %22 = vector.extract_strided_slice %15 {offsets = [0, 128], sizes = [2, 128], strides = [1, 1]} : vector<2x512xf32> to vector<2x128xf32>
    %23 = arith.negf %22 : vector<2x128xf32>
    %24 = math.exp %23 : vector<2x128xf32>
    %cst_14 = arith.constant 1.000000e+00 : f32
    %25 = vector.broadcast %cst_14 : f32 to vector<2x128xf32>
    %26 = arith.addf %25, %24 : vector<2x128xf32>
    %27 = arith.divf %25, %26 : vector<2x128xf32>
    %28 = vector.extract_strided_slice %15 {offsets = [0, 256], sizes = [2, 128], strides = [1, 1]} : vector<2x512xf32> to vector<2x128xf32>
    %29 = math.tanh %28 : vector<2x128xf32>
    %30 = vector.extract_strided_slice %15 {offsets = [0, 384], sizes = [2, 128], strides = [1, 1]} : vector<2x512xf32> to vector<2x128xf32>
    %31 = arith.negf %30 : vector<2x128xf32>
    %32 = math.exp %31 : vector<2x128xf32>
    %cst_15 = arith.constant 1.000000e+00 : f32
    %33 = vector.broadcast %cst_15 : f32 to vector<2x128xf32>
    %34 = arith.addf %33, %32 : vector<2x128xf32>
    %35 = arith.divf %33, %34 : vector<2x128xf32>
    %36 = arith.mulf %27, %10 : vector<2x128xf32>
    %37 = arith.mulf %21, %29 : vector<2x128xf32>
    %38 = arith.addf %36, %37 : vector<2x128xf32>
    %39 = math.tanh %38 : vector<2x128xf32>
    %40 = arith.mulf %35, %39 : vector<2x128xf32>
    %c0_16 = arith.constant 0 : index
    %c0_17 = arith.constant 0 : index
    %41 = vector.load %arg14[%c0_16, %c0_17] : memref<16x128xf32, #tpu.memory_space<vmem>>, vector<2x128xf32>
    tpu.vector_store %arg14[%c0_16, %c0_17], %40 {strides = array<i32>} : memref<16x128xf32, #tpu.memory_space<vmem>>, vector<2x128xf32>,
    %42 = vector.extract_strided_slice %7 {offsets = [2, 0], sizes = [2, 512], strides = [1, 1]} : vector<16x512xf32> to vector<2x512xf32>
    %43 = vector.extract_strided_slice %8 {offsets = [12, 0], sizes = [2, 512], strides = [1, 1]} : vector<16x512xf32> to vector<2x512xf32>
    %cst_18 = arith.constant dense<0.000000e+00> : vector<2x512xf32>
    %44 = tpu.matmul %40, %3, %cst_18 {dimension_numbers = #tpu.dot_dimension_numbers<[1], [0], [0], [1], [0, 0, 1, 1], [], []>} : vector<2x128xf32>, vector<128x512xf32>, vector<2x512xf32> -> vector<2x512xf32>
    %45 = arith.addf %42, %43 : vector<2x512xf32>
    %46 = arith.addf %45, %44 : vector<2x512xf32>
    %47 = vector.extract_strided_slice %46 {offsets = [0, 0], sizes = [2, 128], strides = [1, 1]} : vector<2x512xf32> to vector<2x128xf32>
    %48 = arith.negf %47 : vector<2x128xf32>
    %49 = math.exp %48 : vector<2x128xf32>
    %cst_19 = arith.constant 1.000000e+00 : f32
    %50 = vector.broadcast %cst_19 : f32 to vector<2x128xf32>
    %51 = arith.addf %50, %49 : vector<2x128xf32>
    %52 = arith.divf %50, %51 : vector<2x128xf32>
    %53 = vector.extract_strided_slice %46 {offsets = [0, 128], sizes = [2, 128], strides = [1, 1]} : vector<2x512xf32> to vector<2x128xf32>
    %54 = arith.negf %53 : vector<2x128xf32>
    %55 = math.exp %54 : vector<2x128xf32>
    %cst_20 = arith.constant 1.000000e+00 : f32
    %56 = vector.broadcast %cst_20 : f32 to vector<2x128xf32>
    %57 = arith.addf %56, %55 : vector<2x128xf32>
    %58 = arith.divf %56, %57 : vector<2x128xf32>
    %59 = vector.extract_strided_slice %46 {offsets = [0, 256], sizes = [2, 128], strides = [1, 1]} : vector<2x512xf32> to vector<2x128xf32>
    %60 = math.tanh %59 : vector<2x128xf32>
    %61 = vector.extract_strided_slice %46 {offsets = [0, 384], sizes = [2, 128], strides = [1, 1]} : vector<2x512xf32> to vector<2x128xf32>
    %62 = arith.negf %61 : vector<2x128xf32>
    %63 = math.exp %62 : vector<2x128xf32>
    %cst_21 = arith.constant 1.000000e+00 : f32
    %64 = vector.broadcast %cst_21 : f32 to vector<2x128xf32>
    %65 = arith.addf %64, %63 : vector<2x128xf32>
    %66 = arith.divf %64, %65 : vector<2x128xf32>
    %67 = arith.mulf %58, %38 : vector<2x128xf32>
    %68 = arith.mulf %52, %60 : vector<2x128xf32>
    %69 = arith.addf %67, %68 : vector<2x128xf32>
    %70 = math.tanh %69 : vector<2x128xf32>
    %71 = arith.mulf %66, %70 : vector<2x128xf32>
    %c2 = arith.constant 2 : index
    %c0_22 = arith.constant 0 : index
    %72 = vector.load %arg14[%c2, %c0_22] : memref<16x128xf32, #tpu.memory_space<vmem>>, vector<2x128xf32>
    tpu.vector_store %arg14[%c2, %c0_22], %71 {strides = array<i32>} : memref<16x128xf32, #tpu.memory_space<vmem>>, vector<2x128xf32>,
    %73 = vector.extract_strided_slice %7 {offsets = [4, 0], sizes = [2, 512], strides = [1, 1]} : vector<16x512xf32> to vector<2x512xf32>
    %74 = vector.extract_strided_slice %8 {offsets = [10, 0], sizes = [2, 512], strides = [1, 1]} : vector<16x512xf32> to vector<2x512xf32>
    %cst_23 = arith.constant dense<0.000000e+00> : vector<2x512xf32>
    %75 = tpu.matmul %71, %3, %cst_23 {dimension_numbers = #tpu.dot_dimension_numbers<[1], [0], [0], [1], [0, 0, 1, 1], [], []>} : vector<2x128xf32>, vector<128x512xf32>, vector<2x512xf32> -> vector<2x512xf32>
    %76 = arith.addf %73, %74 : vector<2x512xf32>
    %77 = arith.addf %76, %75 : vector<2x512xf32>
    %78 = vector.extract_strided_slice %77 {offsets = [0, 0], sizes = [2, 128], strides = [1, 1]} : vector<2x512xf32> to vector<2x128xf32>
    %79 = arith.negf %78 : vector<2x128xf32>
    %80 = math.exp %79 : vector<2x128xf32>
    %cst_24 = arith.constant 1.000000e+00 : f32
    %81 = vector.broadcast %cst_24 : f32 to vector<2x128xf32>
    %82 = arith.addf %81, %80 : vector<2x128xf32>
    %83 = arith.divf %81, %82 : vector<2x128xf32>
    %84 = vector.extract_strided_slice %77 {offsets = [0, 128], sizes = [2, 128], strides = [1, 1]} : vector<2x512xf32> to vector<2x128xf32>
    %85 = arith.negf %84 : vector<2x128xf32>
    %86 = math.exp %85 : vector<2x128xf32>
    %cst_25 = arith.constant 1.000000e+00 : f32
    %87 = vector.broadcast %cst_25 : f32 to vector<2x128xf32>
    %88 = arith.addf %87, %86 : vector<2x128xf32>
    %89 = arith.divf %87, %88 : vector<2x128xf32>
    %90 = vector.extract_strided_slice %77 {offsets = [0, 256], sizes = [2, 128], strides = [1, 1]} : vector<2x512xf32> to vector<2x128xf32>
    %91 = math.tanh %90 : vector<2x128xf32>
    %92 = vector.extract_strided_slice %77 {offsets = [0, 384], sizes = [2, 128], strides = [1, 1]} : vector<2x512xf32> to vector<2x128xf32>
    %93 = arith.negf %92 : vector<2x128xf32>
    %94 = math.exp %93 : vector<2x128xf32>
    %cst_26 = arith.constant 1.000000e+00 : f32
    %95 = vector.broadcast %cst_26 : f32 to vector<2x128xf32>
    %96 = arith.addf %95, %94 : vector<2x128xf32>
    %97 = arith.divf %95, %96 : vector<2x128xf32>
    %98 = arith.mulf %89, %69 : vector<2x128xf32>
    %99 = arith.mulf %83, %91 : vector<2x128xf32>
    %100 = arith.addf %98, %99 : vector<2x128xf32>
    %101 = math.tanh %100 : vector<2x128xf32>
    %102 = arith.mulf %97, %101 : vector<2x128xf32>
    %c4 = arith.constant 4 : index
    %c0_27 = arith.constant 0 : index
    %103 = vector.load %arg14[%c4, %c0_27] : memref<16x128xf32, #tpu.memory_space<vmem>>, vector<2x128xf32>
    tpu.vector_store %arg14[%c4, %c0_27], %102 {strides = array<i32>} : memref<16x128xf32, #tpu.memory_space<vmem>>, vector<2x128xf32>,
    %104 = vector.extract_strided_slice %7 {offsets = [6, 0], sizes = [2, 512], strides = [1, 1]} : vector<16x512xf32> to vector<2x512xf32>
    %105 = vector.extract_strided_slice %8 {offsets = [8, 0], sizes = [2, 512], strides = [1, 1]} : vector<16x512xf32> to vector<2x512xf32>
    %cst_28 = arith.constant dense<0.000000e+00> : vector<2x512xf32>
    %106 = tpu.matmul %102, %3, %cst_28 {dimension_numbers = #tpu.dot_dimension_numbers<[1], [0], [0], [1], [0, 0, 1, 1], [], []>} : vector<2x128xf32>, vector<128x512xf32>, vector<2x512xf32> -> vector<2x512xf32>
    %107 = arith.addf %104, %105 : vector<2x512xf32>
    %108 = arith.addf %107, %106 : vector<2x512xf32>
    %109 = vector.extract_strided_slice %108 {offsets = [0, 0], sizes = [2, 128], strides = [1, 1]} : vector<2x512xf32> to vector<2x128xf32>
    %110 = arith.negf %109 : vector<2x128xf32>
    %111 = math.exp %110 : vector<2x128xf32>
    %cst_29 = arith.constant 1.000000e+00 : f32
    %112 = vector.broadcast %cst_29 : f32 to vector<2x128xf32>
    %113 = arith.addf %112, %111 : vector<2x128xf32>
    %114 = arith.divf %112, %113 : vector<2x128xf32>
    %115 = vector.extract_strided_slice %108 {offsets = [0, 128], sizes = [2, 128], strides = [1, 1]} : vector<2x512xf32> to vector<2x128xf32>
    %116 = arith.negf %115 : vector<2x128xf32>
    %117 = math.exp %116 : vector<2x128xf32>
    %cst_30 = arith.constant 1.000000e+00 : f32
    %118 = vector.broadcast %cst_30 : f32 to vector<2x128xf32>
    %119 = arith.addf %118, %117 : vector<2x128xf32>
    %120 = arith.divf %118, %119 : vector<2x128xf32>
    %121 = vector.extract_strided_slice %108 {offsets = [0, 256], sizes = [2, 128], strides = [1, 1]} : vector<2x512xf32> to vector<2x128xf32>
    %122 = math.tanh %121 : vector<2x128xf32>
    %123 = vector.extract_strided_slice %108 {offsets = [0, 384], sizes = [2, 128], strides = [1, 1]} : vector<2x512xf32> to vector<2x128xf32>
    %124 = arith.negf %123 : vector<2x128xf32>
    %125 = math.exp %124 : vector<2x128xf32>
    %cst_31 = arith.constant 1.000000e+00 : f32
    %126 = vector.broadcast %cst_31 : f32 to vector<2x128xf32>
    %127 = arith.addf %126, %125 : vector<2x128xf32>
    %128 = arith.divf %126, %127 : vector<2x128xf32>
    %129 = arith.mulf %120, %100 : vector<2x128xf32>
    %130 = arith.mulf %114, %122 : vector<2x128xf32>
    %131 = arith.addf %129, %130 : vector<2x128xf32>
    %132 = math.tanh %131 : vector<2x128xf32>
    %133 = arith.mulf %128, %132 : vector<2x128xf32>
    %c6 = arith.constant 6 : index
    %c0_32 = arith.constant 0 : index
    %134 = vector.load %arg14[%c6, %c0_32] : memref<16x128xf32, #tpu.memory_space<vmem>>, vector<2x128xf32>
    tpu.vector_store %arg14[%c6, %c0_32], %133 {strides = array<i32>} : memref<16x128xf32, #tpu.memory_space<vmem>>, vector<2x128xf32>,
    %135 = vector.extract_strided_slice %7 {offsets = [8, 0], sizes = [2, 512], strides = [1, 1]} : vector<16x512xf32> to vector<2x512xf32>
    %136 = vector.extract_strided_slice %8 {offsets = [6, 0], sizes = [2, 512], strides = [1, 1]} : vector<16x512xf32> to vector<2x512xf32>
    %cst_33 = arith.constant dense<0.000000e+00> : vector<2x512xf32>
    %137 = tpu.matmul %133, %3, %cst_33 {dimension_numbers = #tpu.dot_dimension_numbers<[1], [0], [0], [1], [0, 0, 1, 1], [], []>} : vector<2x128xf32>, vector<128x512xf32>, vector<2x512xf32> -> vector<2x512xf32>
    %138 = arith.addf %135, %136 : vector<2x512xf32>
    %139 = arith.addf %138, %137 : vector<2x512xf32>
    %140 = vector.extract_strided_slice %139 {offsets = [0, 0], sizes = [2, 128], strides = [1, 1]} : vector<2x512xf32> to vector<2x128xf32>
    %141 = arith.negf %140 : vector<2x128xf32>
    %142 = math.exp %141 : vector<2x128xf32>
    %cst_34 = arith.constant 1.000000e+00 : f32
    %143 = vector.broadcast %cst_34 : f32 to vector<2x128xf32>
    %144 = arith.addf %143, %142 : vector<2x128xf32>
    %145 = arith.divf %143, %144 : vector<2x128xf32>
    %146 = vector.extract_strided_slice %139 {offsets = [0, 128], sizes = [2, 128], strides = [1, 1]} : vector<2x512xf32> to vector<2x128xf32>
    %147 = arith.negf %146 : vector<2x128xf32>
    %148 = math.exp %147 : vector<2x128xf32>
    %cst_35 = arith.constant 1.000000e+00 : f32
    %149 = vector.broadcast %cst_35 : f32 to vector<2x128xf32>
    %150 = arith.addf %149, %148 : vector<2x128xf32>
    %151 = arith.divf %149, %150 : vector<2x128xf32>
    %152 = vector.extract_strided_slice %139 {offsets = [0, 256], sizes = [2, 128], strides = [1, 1]} : vector<2x512xf32> to vector<2x128xf32>
    %153 = math.tanh %152 : vector<2x128xf32>
    %154 = vector.extract_strided_slice %139 {offsets = [0, 384], sizes = [2, 128], strides = [1, 1]} : vector<2x512xf32> to vector<2x128xf32>
    %155 = arith.negf %154 : vector<2x128xf32>
    %156 = math.exp %155 : vector<2x128xf32>
    %cst_36 = arith.constant 1.000000e+00 : f32
    %157 = vector.broadcast %cst_36 : f32 to vector<2x128xf32>
    %158 = arith.addf %157, %156 : vector<2x128xf32>
    %159 = arith.divf %157, %158 : vector<2x128xf32>
    %160 = arith.mulf %151, %131 : vector<2x128xf32>
    %161 = arith.mulf %145, %153 : vector<2x128xf32>
    %162 = arith.addf %160, %161 : vector<2x128xf32>
    %163 = math.tanh %162 : vector<2x128xf32>
    %164 = arith.mulf %159, %163 : vector<2x128xf32>
    %c8 = arith.constant 8 : index
    %c0_37 = arith.constant 0 : index
    %165 = vector.load %arg14[%c8, %c0_37] : memref<16x128xf32, #tpu.memory_space<vmem>>, vector<2x128xf32>
    tpu.vector_store %arg14[%c8, %c0_37], %164 {strides = array<i32>} : memref<16x128xf32, #tpu.memory_space<vmem>>, vector<2x128xf32>,
    %166 = vector.extract_strided_slice %7 {offsets = [10, 0], sizes = [2, 512], strides = [1, 1]} : vector<16x512xf32> to vector<2x512xf32>
    %167 = vector.extract_strided_slice %8 {offsets = [4, 0], sizes = [2, 512], strides = [1, 1]} : vector<16x512xf32> to vector<2x512xf32>
    %cst_38 = arith.constant dense<0.000000e+00> : vector<2x512xf32>
    %168 = tpu.matmul %164, %3, %cst_38 {dimension_numbers = #tpu.dot_dimension_numbers<[1], [0], [0], [1], [0, 0, 1, 1], [], []>} : vector<2x128xf32>, vector<128x512xf32>, vector<2x512xf32> -> vector<2x512xf32>
    %169 = arith.addf %166, %167 : vector<2x512xf32>
    %170 = arith.addf %169, %168 : vector<2x512xf32>
    %171 = vector.extract_strided_slice %170 {offsets = [0, 0], sizes = [2, 128], strides = [1, 1]} : vector<2x512xf32> to vector<2x128xf32>
    %172 = arith.negf %171 : vector<2x128xf32>
    %173 = math.exp %172 : vector<2x128xf32>
    %cst_39 = arith.constant 1.000000e+00 : f32
    %174 = vector.broadcast %cst_39 : f32 to vector<2x128xf32>
    %175 = arith.addf %174, %173 : vector<2x128xf32>
    %176 = arith.divf %174, %175 : vector<2x128xf32>
    %177 = vector.extract_strided_slice %170 {offsets = [0, 128], sizes = [2, 128], strides = [1, 1]} : vector<2x512xf32> to vector<2x128xf32>
    %178 = arith.negf %177 : vector<2x128xf32>
    %179 = math.exp %178 : vector<2x128xf32>
    %cst_40 = arith.constant 1.000000e+00 : f32
    %180 = vector.broadcast %cst_40 : f32 to vector<2x128xf32>
    %181 = arith.addf %180, %179 : vector<2x128xf32>
    %182 = arith.divf %180, %181 : vector<2x128xf32>
    %183 = vector.extract_strided_slice %170 {offsets = [0, 256], sizes = [2, 128], strides = [1, 1]} : vector<2x512xf32> to vector<2x128xf32>
    %184 = math.tanh %183 : vector<2x128xf32>
    %185 = vector.extract_strided_slice %170 {offsets = [0, 384], sizes = [2, 128], strides = [1, 1]} : vector<2x512xf32> to vector<2x128xf32>
    %186 = arith.negf %185 : vector<2x128xf32>
    %187 = math.exp %186 : vector<2x128xf32>
    %cst_41 = arith.constant 1.000000e+00 : f32
    %188 = vector.broadcast %cst_41 : f32 to vector<2x128xf32>
    %189 = arith.addf %188, %187 : vector<2x128xf32>
    %190 = arith.divf %188, %189 : vector<2x128xf32>
    %191 = arith.mulf %182, %162 : vector<2x128xf32>
    %192 = arith.mulf %176, %184 : vector<2x128xf32>
    %193 = arith.addf %191, %192 : vector<2x128xf32>
    %194 = math.tanh %193 : vector<2x128xf32>
    %195 = arith.mulf %190, %194 : vector<2x128xf32>
    %c10 = arith.constant 10 : index
    %c0_42 = arith.constant 0 : index
    %196 = vector.load %arg14[%c10, %c0_42] : memref<16x128xf32, #tpu.memory_space<vmem>>, vector<2x128xf32>
    tpu.vector_store %arg14[%c10, %c0_42], %195 {strides = array<i32>} : memref<16x128xf32, #tpu.memory_space<vmem>>, vector<2x128xf32>,
    %197 = vector.extract_strided_slice %7 {offsets = [12, 0], sizes = [2, 512], strides = [1, 1]} : vector<16x512xf32> to vector<2x512xf32>
    %198 = vector.extract_strided_slice %8 {offsets = [2, 0], sizes = [2, 512], strides = [1, 1]} : vector<16x512xf32> to vector<2x512xf32>
    %cst_43 = arith.constant dense<0.000000e+00> : vector<2x512xf32>
    %199 = tpu.matmul %195, %3, %cst_43 {dimension_numbers = #tpu.dot_dimension_numbers<[1], [0], [0], [1], [0, 0, 1, 1], [], []>} : vector<2x128xf32>, vector<128x512xf32>, vector<2x512xf32> -> vector<2x512xf32>
    %200 = arith.addf %197, %198 : vector<2x512xf32>
    %201 = arith.addf %200, %199 : vector<2x512xf32>
    %202 = vector.extract_strided_slice %201 {offsets = [0, 0], sizes = [2, 128], strides = [1, 1]} : vector<2x512xf32> to vector<2x128xf32>
    %203 = arith.negf %202 : vector<2x128xf32>
    %204 = math.exp %203 : vector<2x128xf32>
    %cst_44 = arith.constant 1.000000e+00 : f32
    %205 = vector.broadcast %cst_44 : f32 to vector<2x128xf32>
    %206 = arith.addf %205, %204 : vector<2x128xf32>
    %207 = arith.divf %205, %206 : vector<2x128xf32>
    %208 = vector.extract_strided_slice %201 {offsets = [0, 128], sizes = [2, 128], strides = [1, 1]} : vector<2x512xf32> to vector<2x128xf32>
    %209 = arith.negf %208 : vector<2x128xf32>
    %210 = math.exp %209 : vector<2x128xf32>
    %cst_45 = arith.constant 1.000000e+00 : f32
    %211 = vector.broadcast %cst_45 : f32 to vector<2x128xf32>
    %212 = arith.addf %211, %210 : vector<2x128xf32>
    %213 = arith.divf %211, %212 : vector<2x128xf32>
    %214 = vector.extract_strided_slice %201 {offsets = [0, 256], sizes = [2, 128], strides = [1, 1]} : vector<2x512xf32> to vector<2x128xf32>
    %215 = math.tanh %214 : vector<2x128xf32>
    %216 = vector.extract_strided_slice %201 {offsets = [0, 384], sizes = [2, 128], strides = [1, 1]} : vector<2x512xf32> to vector<2x128xf32>
    %217 = arith.negf %216 : vector<2x128xf32>
    %218 = math.exp %217 : vector<2x128xf32>
    %cst_46 = arith.constant 1.000000e+00 : f32
    %219 = vector.broadcast %cst_46 : f32 to vector<2x128xf32>
    %220 = arith.addf %219, %218 : vector<2x128xf32>
    %221 = arith.divf %219, %220 : vector<2x128xf32>
    %222 = arith.mulf %213, %193 : vector<2x128xf32>
    %223 = arith.mulf %207, %215 : vector<2x128xf32>
    %224 = arith.addf %222, %223 : vector<2x128xf32>
    %225 = math.tanh %224 : vector<2x128xf32>
    %226 = arith.mulf %221, %225 : vector<2x128xf32>
    %c12 = arith.constant 12 : index
    %c0_47 = arith.constant 0 : index
    %227 = vector.load %arg14[%c12, %c0_47] : memref<16x128xf32, #tpu.memory_space<vmem>>, vector<2x128xf32>
    tpu.vector_store %arg14[%c12, %c0_47], %226 {strides = array<i32>} : memref<16x128xf32, #tpu.memory_space<vmem>>, vector<2x128xf32>,
    %228 = vector.extract_strided_slice %7 {offsets = [14, 0], sizes = [2, 512], strides = [1, 1]} : vector<16x512xf32> to vector<2x512xf32>
    %229 = vector.extract_strided_slice %8 {offsets = [0, 0], sizes = [2, 512], strides = [1, 1]} : vector<16x512xf32> to vector<2x512xf32>
    %cst_48 = arith.constant dense<0.000000e+00> : vector<2x512xf32>
    %230 = tpu.matmul %226, %3, %cst_48 {dimension_numbers = #tpu.dot_dimension_numbers<[1], [0], [0], [1], [0, 0, 1, 1], [], []>} : vector<2x128xf32>, vector<128x512xf32>, vector<2x512xf32> -> vector<2x512xf32>
    %231 = arith.addf %228, %229 : vector<2x512xf32>
    %232 = arith.addf %231, %230 : vector<2x512xf32>
    %233 = vector.extract_strided_slice %232 {offsets = [0, 0], sizes = [2, 128], strides = [1, 1]} : vector<2x512xf32> to vector<2x128xf32>
    %234 = arith.negf %233 : vector<2x128xf32>
    %235 = math.exp %234 : vector<2x128xf32>
    %cst_49 = arith.constant 1.000000e+00 : f32
    %236 = vector.broadcast %cst_49 : f32 to vector<2x128xf32>
    %237 = arith.addf %236, %235 : vector<2x128xf32>
    %238 = arith.divf %236, %237 : vector<2x128xf32>
    %239 = vector.extract_strided_slice %232 {offsets = [0, 128], sizes = [2, 128], strides = [1, 1]} : vector<2x512xf32> to vector<2x128xf32>
    %240 = arith.negf %239 : vector<2x128xf32>
    %241 = math.exp %240 : vector<2x128xf32>
    %cst_50 = arith.constant 1.000000e+00 : f32
    %242 = vector.broadcast %cst_50 : f32 to vector<2x128xf32>
    %243 = arith.addf %242, %241 : vector<2x128xf32>
    %244 = arith.divf %242, %243 : vector<2x128xf32>
    %245 = vector.extract_strided_slice %232 {offsets = [0, 256], sizes = [2, 128], strides = [1, 1]} : vector<2x512xf32> to vector<2x128xf32>
    %246 = math.tanh %245 : vector<2x128xf32>
    %247 = vector.extract_strided_slice %232 {offsets = [0, 384], sizes = [2, 128], strides = [1, 1]} : vector<2x512xf32> to vector<2x128xf32>
    %248 = arith.negf %247 : vector<2x128xf32>
    %249 = math.exp %248 : vector<2x128xf32>
    %cst_51 = arith.constant 1.000000e+00 : f32
    %250 = vector.broadcast %cst_51 : f32 to vector<2x128xf32>
    %251 = arith.addf %250, %249 : vector<2x128xf32>
    %252 = arith.divf %250, %251 : vector<2x128xf32>
    %253 = arith.mulf %244, %224 : vector<2x128xf32>
    %254 = arith.mulf %238, %246 : vector<2x128xf32>
    %255 = arith.addf %253, %254 : vector<2x128xf32>
    %256 = math.tanh %255 : vector<2x128xf32>
    %257 = arith.mulf %252, %256 : vector<2x128xf32>
    %c14 = arith.constant 14 : index
    %c0_52 = arith.constant 0 : index
    %258 = vector.load %arg14[%c14, %c0_52] : memref<16x128xf32, #tpu.memory_space<vmem>>, vector<2x128xf32>
    tpu.vector_store %arg14[%c14, %c0_52], %257 {strides = array<i32>} : memref<16x128xf32, #tpu.memory_space<vmem>>, vector<2x128xf32>,
    %c0_53 = arith.constant 0 : index
    %c0_54 = arith.constant 0 : index
    %259 = vector.load %arg14[%c0_53, %c0_54] : memref<16x128xf32, #tpu.memory_space<vmem>>, vector<16x128xf32>
    %c0_55 = arith.constant 0 : index
    %c0_56 = arith.constant 0 : index
    %260 = vector.load %arg5[%c0_55, %c0_56] : memref<128x512xf32, #tpu.memory_space<vmem>>, vector<128x512xf32>
    %c0_57 = arith.constant 0 : index
    %c0_58 = arith.constant 0 : index
    %261 = vector.load %arg6[%c0_57, %c0_58] : memref<128x512xf32, #tpu.memory_space<vmem>>, vector<128x512xf32>
    %c0_59 = arith.constant 0 : index
    %c0_60 = arith.constant 0 : index
    %262 = vector.load %arg7[%c0_59, %c0_60] : memref<128x512xf32, #tpu.memory_space<vmem>>, vector<128x512xf32>
    %c0_61 = arith.constant 0 : index
    %c0_62 = arith.constant 0 : index
    %263 = vector.load %arg8[%c0_61, %c0_62] : memref<1x512xf32, #tpu.memory_space<vmem>>, vector<1x512xf32>
    %cst_63 = arith.constant dense<0.000000e+00> : vector<16x512xf32>
    %264 = tpu.matmul %259, %260, %cst_63 {dimension_numbers = #tpu.dot_dimension_numbers<[1], [0], [0], [1], [0, 0, 1, 1], [], []>} : vector<16x128xf32>, vector<128x512xf32>, vector<16x512xf32> -> vector<16x512xf32>
    %265 = vector.broadcast %263 : vector<1x512xf32> to vector<16x512xf32>
    %266 = arith.addf %264, %265 : vector<16x512xf32>
    %cst_64 = arith.constant dense<0.000000e+00> : vector<16x512xf32>
    %267 = tpu.matmul %259, %261, %cst_64 {dimension_numbers = #tpu.dot_dimension_numbers<[1], [0], [0], [1], [0, 0, 1, 1], [], []>} : vector<16x128xf32>, vector<128x512xf32>, vector<16x512xf32> -> vector<16x512xf32>
    %cst_65 = arith.constant 0.000000e+00 : f32
    %268 = vector.broadcast %cst_65 : f32 to vector<2x128xf32>
    %cst_66 = arith.constant 0.000000e+00 : f32
    %269 = vector.broadcast %cst_66 : f32 to vector<2x128xf32>
    %270 = vector.extract_strided_slice %266 {offsets = [0, 0], sizes = [2, 512], strides = [1, 1]} : vector<16x512xf32> to vector<2x512xf32>
    %271 = vector.extract_strided_slice %267 {offsets = [14, 0], sizes = [2, 512], strides = [1, 1]} : vector<16x512xf32> to vector<2x512xf32>
    %cst_67 = arith.constant dense<0.000000e+00> : vector<2x512xf32>
    %272 = tpu.matmul %268, %262, %cst_67 {dimension_numbers = #tpu.dot_dimension_numbers<[1], [0], [0], [1], [0, 0, 1, 1], [], []>} : vector<2x128xf32>, vector<128x512xf32>, vector<2x512xf32> -> vector<2x512xf32>
    %273 = arith.addf %270, %271 : vector<2x512xf32>
    %274 = arith.addf %273, %272 : vector<2x512xf32>
    %275 = vector.extract_strided_slice %274 {offsets = [0, 0], sizes = [2, 128], strides = [1, 1]} : vector<2x512xf32> to vector<2x128xf32>
    %276 = arith.negf %275 : vector<2x128xf32>
    %277 = math.exp %276 : vector<2x128xf32>
    %cst_68 = arith.constant 1.000000e+00 : f32
    %278 = vector.broadcast %cst_68 : f32 to vector<2x128xf32>
    %279 = arith.addf %278, %277 : vector<2x128xf32>
    %280 = arith.divf %278, %279 : vector<2x128xf32>
    %281 = vector.extract_strided_slice %274 {offsets = [0, 128], sizes = [2, 128], strides = [1, 1]} : vector<2x512xf32> to vector<2x128xf32>
    %282 = arith.negf %281 : vector<2x128xf32>
    %283 = math.exp %282 : vector<2x128xf32>
    %cst_69 = arith.constant 1.000000e+00 : f32
    %284 = vector.broadcast %cst_69 : f32 to vector<2x128xf32>
    %285 = arith.addf %284, %283 : vector<2x128xf32>
    %286 = arith.divf %284, %285 : vector<2x128xf32>
    %287 = vector.extract_strided_slice %274 {offsets = [0, 256], sizes = [2, 128], strides = [1, 1]} : vector<2x512xf32> to vector<2x128xf32>
    %288 = math.tanh %287 : vector<2x128xf32>
    %289 = vector.extract_strided_slice %274 {offsets = [0, 384], sizes = [2, 128], strides = [1, 1]} : vector<2x512xf32> to vector<2x128xf32>
    %290 = arith.negf %289 : vector<2x128xf32>
    %291 = math.exp %290 : vector<2x128xf32>
    %cst_70 = arith.constant 1.000000e+00 : f32
    %292 = vector.broadcast %cst_70 : f32 to vector<2x128xf32>
    %293 = arith.addf %292, %291 : vector<2x128xf32>
    %294 = arith.divf %292, %293 : vector<2x128xf32>
    %295 = arith.mulf %286, %269 : vector<2x128xf32>
    %296 = arith.mulf %280, %288 : vector<2x128xf32>
    %297 = arith.addf %295, %296 : vector<2x128xf32>
    %298 = math.tanh %297 : vector<2x128xf32>
    %299 = arith.mulf %294, %298 : vector<2x128xf32>
    %300 = vector.extract_strided_slice %266 {offsets = [2, 0], sizes = [2, 512], strides = [1, 1]} : vector<16x512xf32> to vector<2x512xf32>
    %301 = vector.extract_strided_slice %267 {offsets = [12, 0], sizes = [2, 512], strides = [1, 1]} : vector<16x512xf32> to vector<2x512xf32>
    %cst_71 = arith.constant dense<0.000000e+00> : vector<2x512xf32>
    %302 = tpu.matmul %299, %262, %cst_71 {dimension_numbers = #tpu.dot_dimension_numbers<[1], [0], [0], [1], [0, 0, 1, 1], [], []>} : vector<2x128xf32>, vector<128x512xf32>, vector<2x512xf32> -> vector<2x512xf32>
    %303 = arith.addf %300, %301 : vector<2x512xf32>
    %304 = arith.addf %303, %302 : vector<2x512xf32>
    %305 = vector.extract_strided_slice %304 {offsets = [0, 0], sizes = [2, 128], strides = [1, 1]} : vector<2x512xf32> to vector<2x128xf32>
    %306 = arith.negf %305 : vector<2x128xf32>
    %307 = math.exp %306 : vector<2x128xf32>
    %cst_72 = arith.constant 1.000000e+00 : f32
    %308 = vector.broadcast %cst_72 : f32 to vector<2x128xf32>
    %309 = arith.addf %308, %307 : vector<2x128xf32>
    %310 = arith.divf %308, %309 : vector<2x128xf32>
    %311 = vector.extract_strided_slice %304 {offsets = [0, 128], sizes = [2, 128], strides = [1, 1]} : vector<2x512xf32> to vector<2x128xf32>
    %312 = arith.negf %311 : vector<2x128xf32>
    %313 = math.exp %312 : vector<2x128xf32>
    %cst_73 = arith.constant 1.000000e+00 : f32
    %314 = vector.broadcast %cst_73 : f32 to vector<2x128xf32>
    %315 = arith.addf %314, %313 : vector<2x128xf32>
    %316 = arith.divf %314, %315 : vector<2x128xf32>
    %317 = vector.extract_strided_slice %304 {offsets = [0, 256], sizes = [2, 128], strides = [1, 1]} : vector<2x512xf32> to vector<2x128xf32>
    %318 = math.tanh %317 : vector<2x128xf32>
    %319 = vector.extract_strided_slice %304 {offsets = [0, 384], sizes = [2, 128], strides = [1, 1]} : vector<2x512xf32> to vector<2x128xf32>
    %320 = arith.negf %319 : vector<2x128xf32>
    %321 = math.exp %320 : vector<2x128xf32>
    %cst_74 = arith.constant 1.000000e+00 : f32
    %322 = vector.broadcast %cst_74 : f32 to vector<2x128xf32>
    %323 = arith.addf %322, %321 : vector<2x128xf32>
    %324 = arith.divf %322, %323 : vector<2x128xf32>
    %325 = arith.mulf %316, %297 : vector<2x128xf32>
    %326 = arith.mulf %310, %318 : vector<2x128xf32>
    %327 = arith.addf %325, %326 : vector<2x128xf32>
    %328 = math.tanh %327 : vector<2x128xf32>
    %329 = arith.mulf %324, %328 : vector<2x128xf32>
    %330 = vector.extract_strided_slice %266 {offsets = [4, 0], sizes = [2, 512], strides = [1, 1]} : vector<16x512xf32> to vector<2x512xf32>
    %331 = vector.extract_strided_slice %267 {offsets = [10, 0], sizes = [2, 512], strides = [1, 1]} : vector<16x512xf32> to vector<2x512xf32>
    %cst_75 = arith.constant dense<0.000000e+00> : vector<2x512xf32>
    %332 = tpu.matmul %329, %262, %cst_75 {dimension_numbers = #tpu.dot_dimension_numbers<[1], [0], [0], [1], [0, 0, 1, 1], [], []>} : vector<2x128xf32>, vector<128x512xf32>, vector<2x512xf32> -> vector<2x512xf32>
    %333 = arith.addf %330, %331 : vector<2x512xf32>
    %334 = arith.addf %333, %332 : vector<2x512xf32>
    %335 = vector.extract_strided_slice %334 {offsets = [0, 0], sizes = [2, 128], strides = [1, 1]} : vector<2x512xf32> to vector<2x128xf32>
    %336 = arith.negf %335 : vector<2x128xf32>
    %337 = math.exp %336 : vector<2x128xf32>
    %cst_76 = arith.constant 1.000000e+00 : f32
    %338 = vector.broadcast %cst_76 : f32 to vector<2x128xf32>
    %339 = arith.addf %338, %337 : vector<2x128xf32>
    %340 = arith.divf %338, %339 : vector<2x128xf32>
    %341 = vector.extract_strided_slice %334 {offsets = [0, 128], sizes = [2, 128], strides = [1, 1]} : vector<2x512xf32> to vector<2x128xf32>
    %342 = arith.negf %341 : vector<2x128xf32>
    %343 = math.exp %342 : vector<2x128xf32>
    %cst_77 = arith.constant 1.000000e+00 : f32
    %344 = vector.broadcast %cst_77 : f32 to vector<2x128xf32>
    %345 = arith.addf %344, %343 : vector<2x128xf32>
    %346 = arith.divf %344, %345 : vector<2x128xf32>
    %347 = vector.extract_strided_slice %334 {offsets = [0, 256], sizes = [2, 128], strides = [1, 1]} : vector<2x512xf32> to vector<2x128xf32>
    %348 = math.tanh %347 : vector<2x128xf32>
    %349 = vector.extract_strided_slice %334 {offsets = [0, 384], sizes = [2, 128], strides = [1, 1]} : vector<2x512xf32> to vector<2x128xf32>
    %350 = arith.negf %349 : vector<2x128xf32>
    %351 = math.exp %350 : vector<2x128xf32>
    %cst_78 = arith.constant 1.000000e+00 : f32
    %352 = vector.broadcast %cst_78 : f32 to vector<2x128xf32>
    %353 = arith.addf %352, %351 : vector<2x128xf32>
    %354 = arith.divf %352, %353 : vector<2x128xf32>
    %355 = arith.mulf %346, %327 : vector<2x128xf32>
    %356 = arith.mulf %340, %348 : vector<2x128xf32>
    %357 = arith.addf %355, %356 : vector<2x128xf32>
    %358 = math.tanh %357 : vector<2x128xf32>
    %359 = arith.mulf %354, %358 : vector<2x128xf32>
    %360 = vector.extract_strided_slice %266 {offsets = [6, 0], sizes = [2, 512], strides = [1, 1]} : vector<16x512xf32> to vector<2x512xf32>
    %361 = vector.extract_strided_slice %267 {offsets = [8, 0], sizes = [2, 512], strides = [1, 1]} : vector<16x512xf32> to vector<2x512xf32>
    %cst_79 = arith.constant dense<0.000000e+00> : vector<2x512xf32>
    %362 = tpu.matmul %359, %262, %cst_79 {dimension_numbers = #tpu.dot_dimension_numbers<[1], [0], [0], [1], [0, 0, 1, 1], [], []>} : vector<2x128xf32>, vector<128x512xf32>, vector<2x512xf32> -> vector<2x512xf32>
    %363 = arith.addf %360, %361 : vector<2x512xf32>
    %364 = arith.addf %363, %362 : vector<2x512xf32>
    %365 = vector.extract_strided_slice %364 {offsets = [0, 0], sizes = [2, 128], strides = [1, 1]} : vector<2x512xf32> to vector<2x128xf32>
    %366 = arith.negf %365 : vector<2x128xf32>
    %367 = math.exp %366 : vector<2x128xf32>
    %cst_80 = arith.constant 1.000000e+00 : f32
    %368 = vector.broadcast %cst_80 : f32 to vector<2x128xf32>
    %369 = arith.addf %368, %367 : vector<2x128xf32>
    %370 = arith.divf %368, %369 : vector<2x128xf32>
    %371 = vector.extract_strided_slice %364 {offsets = [0, 128], sizes = [2, 128], strides = [1, 1]} : vector<2x512xf32> to vector<2x128xf32>
    %372 = arith.negf %371 : vector<2x128xf32>
    %373 = math.exp %372 : vector<2x128xf32>
    %cst_81 = arith.constant 1.000000e+00 : f32
    %374 = vector.broadcast %cst_81 : f32 to vector<2x128xf32>
    %375 = arith.addf %374, %373 : vector<2x128xf32>
    %376 = arith.divf %374, %375 : vector<2x128xf32>
    %377 = vector.extract_strided_slice %364 {offsets = [0, 256], sizes = [2, 128], strides = [1, 1]} : vector<2x512xf32> to vector<2x128xf32>
    %378 = math.tanh %377 : vector<2x128xf32>
    %379 = vector.extract_strided_slice %364 {offsets = [0, 384], sizes = [2, 128], strides = [1, 1]} : vector<2x512xf32> to vector<2x128xf32>
    %380 = arith.negf %379 : vector<2x128xf32>
    %381 = math.exp %380 : vector<2x128xf32>
    %cst_82 = arith.constant 1.000000e+00 : f32
    %382 = vector.broadcast %cst_82 : f32 to vector<2x128xf32>
    %383 = arith.addf %382, %381 : vector<2x128xf32>
    %384 = arith.divf %382, %383 : vector<2x128xf32>
    %385 = arith.mulf %376, %357 : vector<2x128xf32>
    %386 = arith.mulf %370, %378 : vector<2x128xf32>
    %387 = arith.addf %385, %386 : vector<2x128xf32>
    %388 = math.tanh %387 : vector<2x128xf32>
    %389 = arith.mulf %384, %388 : vector<2x128xf32>
    %390 = vector.extract_strided_slice %266 {offsets = [8, 0], sizes = [2, 512], strides = [1, 1]} : vector<16x512xf32> to vector<2x512xf32>
    %391 = vector.extract_strided_slice %267 {offsets = [6, 0], sizes = [2, 512], strides = [1, 1]} : vector<16x512xf32> to vector<2x512xf32>
    %cst_83 = arith.constant dense<0.000000e+00> : vector<2x512xf32>
    %392 = tpu.matmul %389, %262, %cst_83 {dimension_numbers = #tpu.dot_dimension_numbers<[1], [0], [0], [1], [0, 0, 1, 1], [], []>} : vector<2x128xf32>, vector<128x512xf32>, vector<2x512xf32> -> vector<2x512xf32>
    %393 = arith.addf %390, %391 : vector<2x512xf32>
    %394 = arith.addf %393, %392 : vector<2x512xf32>
    %395 = vector.extract_strided_slice %394 {offsets = [0, 0], sizes = [2, 128], strides = [1, 1]} : vector<2x512xf32> to vector<2x128xf32>
    %396 = arith.negf %395 : vector<2x128xf32>
    %397 = math.exp %396 : vector<2x128xf32>
    %cst_84 = arith.constant 1.000000e+00 : f32
    %398 = vector.broadcast %cst_84 : f32 to vector<2x128xf32>
    %399 = arith.addf %398, %397 : vector<2x128xf32>
    %400 = arith.divf %398, %399 : vector<2x128xf32>
    %401 = vector.extract_strided_slice %394 {offsets = [0, 128], sizes = [2, 128], strides = [1, 1]} : vector<2x512xf32> to vector<2x128xf32>
    %402 = arith.negf %401 : vector<2x128xf32>
    %403 = math.exp %402 : vector<2x128xf32>
    %cst_85 = arith.constant 1.000000e+00 : f32
    %404 = vector.broadcast %cst_85 : f32 to vector<2x128xf32>
    %405 = arith.addf %404, %403 : vector<2x128xf32>
    %406 = arith.divf %404, %405 : vector<2x128xf32>
    %407 = vector.extract_strided_slice %394 {offsets = [0, 256], sizes = [2, 128], strides = [1, 1]} : vector<2x512xf32> to vector<2x128xf32>
    %408 = math.tanh %407 : vector<2x128xf32>
    %409 = vector.extract_strided_slice %394 {offsets = [0, 384], sizes = [2, 128], strides = [1, 1]} : vector<2x512xf32> to vector<2x128xf32>
    %410 = arith.negf %409 : vector<2x128xf32>
    %411 = math.exp %410 : vector<2x128xf32>
    %cst_86 = arith.constant 1.000000e+00 : f32
    %412 = vector.broadcast %cst_86 : f32 to vector<2x128xf32>
    %413 = arith.addf %412, %411 : vector<2x128xf32>
    %414 = arith.divf %412, %413 : vector<2x128xf32>
    %415 = arith.mulf %406, %387 : vector<2x128xf32>
    %416 = arith.mulf %400, %408 : vector<2x128xf32>
    %417 = arith.addf %415, %416 : vector<2x128xf32>
    %418 = math.tanh %417 : vector<2x128xf32>
    %419 = arith.mulf %414, %418 : vector<2x128xf32>
    %420 = vector.extract_strided_slice %266 {offsets = [10, 0], sizes = [2, 512], strides = [1, 1]} : vector<16x512xf32> to vector<2x512xf32>
    %421 = vector.extract_strided_slice %267 {offsets = [4, 0], sizes = [2, 512], strides = [1, 1]} : vector<16x512xf32> to vector<2x512xf32>
    %cst_87 = arith.constant dense<0.000000e+00> : vector<2x512xf32>
    %422 = tpu.matmul %419, %262, %cst_87 {dimension_numbers = #tpu.dot_dimension_numbers<[1], [0], [0], [1], [0, 0, 1, 1], [], []>} : vector<2x128xf32>, vector<128x512xf32>, vector<2x512xf32> -> vector<2x512xf32>
    %423 = arith.addf %420, %421 : vector<2x512xf32>
    %424 = arith.addf %423, %422 : vector<2x512xf32>
    %425 = vector.extract_strided_slice %424 {offsets = [0, 0], sizes = [2, 128], strides = [1, 1]} : vector<2x512xf32> to vector<2x128xf32>
    %426 = arith.negf %425 : vector<2x128xf32>
    %427 = math.exp %426 : vector<2x128xf32>
    %cst_88 = arith.constant 1.000000e+00 : f32
    %428 = vector.broadcast %cst_88 : f32 to vector<2x128xf32>
    %429 = arith.addf %428, %427 : vector<2x128xf32>
    %430 = arith.divf %428, %429 : vector<2x128xf32>
    %431 = vector.extract_strided_slice %424 {offsets = [0, 128], sizes = [2, 128], strides = [1, 1]} : vector<2x512xf32> to vector<2x128xf32>
    %432 = arith.negf %431 : vector<2x128xf32>
    %433 = math.exp %432 : vector<2x128xf32>
    %cst_89 = arith.constant 1.000000e+00 : f32
    %434 = vector.broadcast %cst_89 : f32 to vector<2x128xf32>
    %435 = arith.addf %434, %433 : vector<2x128xf32>
    %436 = arith.divf %434, %435 : vector<2x128xf32>
    %437 = vector.extract_strided_slice %424 {offsets = [0, 256], sizes = [2, 128], strides = [1, 1]} : vector<2x512xf32> to vector<2x128xf32>
    %438 = math.tanh %437 : vector<2x128xf32>
    %439 = vector.extract_strided_slice %424 {offsets = [0, 384], sizes = [2, 128], strides = [1, 1]} : vector<2x512xf32> to vector<2x128xf32>
    %440 = arith.negf %439 : vector<2x128xf32>
    %441 = math.exp %440 : vector<2x128xf32>
    %cst_90 = arith.constant 1.000000e+00 : f32
    %442 = vector.broadcast %cst_90 : f32 to vector<2x128xf32>
    %443 = arith.addf %442, %441 : vector<2x128xf32>
    %444 = arith.divf %442, %443 : vector<2x128xf32>
    %445 = arith.mulf %436, %417 : vector<2x128xf32>
    %446 = arith.mulf %430, %438 : vector<2x128xf32>
    %447 = arith.addf %445, %446 : vector<2x128xf32>
    %448 = math.tanh %447 : vector<2x128xf32>
    %449 = arith.mulf %444, %448 : vector<2x128xf32>
    %450 = vector.extract_strided_slice %266 {offsets = [12, 0], sizes = [2, 512], strides = [1, 1]} : vector<16x512xf32> to vector<2x512xf32>
    %451 = vector.extract_strided_slice %267 {offsets = [2, 0], sizes = [2, 512], strides = [1, 1]} : vector<16x512xf32> to vector<2x512xf32>
    %cst_91 = arith.constant dense<0.000000e+00> : vector<2x512xf32>
    %452 = tpu.matmul %449, %262, %cst_91 {dimension_numbers = #tpu.dot_dimension_numbers<[1], [0], [0], [1], [0, 0, 1, 1], [], []>} : vector<2x128xf32>, vector<128x512xf32>, vector<2x512xf32> -> vector<2x512xf32>
    %453 = arith.addf %450, %451 : vector<2x512xf32>
    %454 = arith.addf %453, %452 : vector<2x512xf32>
    %455 = vector.extract_strided_slice %454 {offsets = [0, 0], sizes = [2, 128], strides = [1, 1]} : vector<2x512xf32> to vector<2x128xf32>
    %456 = arith.negf %455 : vector<2x128xf32>
    %457 = math.exp %456 : vector<2x128xf32>
    %cst_92 = arith.constant 1.000000e+00 : f32
    %458 = vector.broadcast %cst_92 : f32 to vector<2x128xf32>
    %459 = arith.addf %458, %457 : vector<2x128xf32>
    %460 = arith.divf %458, %459 : vector<2x128xf32>
    %461 = vector.extract_strided_slice %454 {offsets = [0, 128], sizes = [2, 128], strides = [1, 1]} : vector<2x512xf32> to vector<2x128xf32>
    %462 = arith.negf %461 : vector<2x128xf32>
    %463 = math.exp %462 : vector<2x128xf32>
    %cst_93 = arith.constant 1.000000e+00 : f32
    %464 = vector.broadcast %cst_93 : f32 to vector<2x128xf32>
    %465 = arith.addf %464, %463 : vector<2x128xf32>
    %466 = arith.divf %464, %465 : vector<2x128xf32>
    %467 = vector.extract_strided_slice %454 {offsets = [0, 256], sizes = [2, 128], strides = [1, 1]} : vector<2x512xf32> to vector<2x128xf32>
    %468 = math.tanh %467 : vector<2x128xf32>
    %469 = vector.extract_strided_slice %454 {offsets = [0, 384], sizes = [2, 128], strides = [1, 1]} : vector<2x512xf32> to vector<2x128xf32>
    %470 = arith.negf %469 : vector<2x128xf32>
    %471 = math.exp %470 : vector<2x128xf32>
    %cst_94 = arith.constant 1.000000e+00 : f32
    %472 = vector.broadcast %cst_94 : f32 to vector<2x128xf32>
    %473 = arith.addf %472, %471 : vector<2x128xf32>
    %474 = arith.divf %472, %473 : vector<2x128xf32>
    %475 = arith.mulf %466, %447 : vector<2x128xf32>
    %476 = arith.mulf %460, %468 : vector<2x128xf32>
    %477 = arith.addf %475, %476 : vector<2x128xf32>
    %478 = math.tanh %477 : vector<2x128xf32>
    %479 = arith.mulf %474, %478 : vector<2x128xf32>
    %480 = vector.extract_strided_slice %266 {offsets = [14, 0], sizes = [2, 512], strides = [1, 1]} : vector<16x512xf32> to vector<2x512xf32>
    %481 = vector.extract_strided_slice %267 {offsets = [0, 0], sizes = [2, 512], strides = [1, 1]} : vector<16x512xf32> to vector<2x512xf32>
    %cst_95 = arith.constant dense<0.000000e+00> : vector<2x512xf32>
    %482 = tpu.matmul %479, %262, %cst_95 {dimension_numbers = #tpu.dot_dimension_numbers<[1], [0], [0], [1], [0, 0, 1, 1], [], []>} : vector<2x128xf32>, vector<128x512xf32>, vector<2x512xf32> -> vector<2x512xf32>
    %483 = arith.addf %480, %481 : vector<2x512xf32>
    %484 = arith.addf %483, %482 : vector<2x512xf32>
    %485 = vector.extract_strided_slice %484 {offsets = [0, 0], sizes = [2, 128], strides = [1, 1]} : vector<2x512xf32> to vector<2x128xf32>
    %486 = arith.negf %485 : vector<2x128xf32>
    %487 = math.exp %486 : vector<2x128xf32>
    %cst_96 = arith.constant 1.000000e+00 : f32
    %488 = vector.broadcast %cst_96 : f32 to vector<2x128xf32>
    %489 = arith.addf %488, %487 : vector<2x128xf32>
    %490 = arith.divf %488, %489 : vector<2x128xf32>
    %491 = vector.extract_strided_slice %484 {offsets = [0, 128], sizes = [2, 128], strides = [1, 1]} : vector<2x512xf32> to vector<2x128xf32>
    %492 = arith.negf %491 : vector<2x128xf32>
    %493 = math.exp %492 : vector<2x128xf32>
    %cst_97 = arith.constant 1.000000e+00 : f32
    %494 = vector.broadcast %cst_97 : f32 to vector<2x128xf32>
    %495 = arith.addf %494, %493 : vector<2x128xf32>
    %496 = arith.divf %494, %495 : vector<2x128xf32>
    %497 = vector.extract_strided_slice %484 {offsets = [0, 256], sizes = [2, 128], strides = [1, 1]} : vector<2x512xf32> to vector<2x128xf32>
    %498 = math.tanh %497 : vector<2x128xf32>
    %499 = vector.extract_strided_slice %484 {offsets = [0, 384], sizes = [2, 128], strides = [1, 1]} : vector<2x512xf32> to vector<2x128xf32>
    %500 = arith.negf %499 : vector<2x128xf32>
    %501 = math.exp %500 : vector<2x128xf32>
    %cst_98 = arith.constant 1.000000e+00 : f32
    %502 = vector.broadcast %cst_98 : f32 to vector<2x128xf32>
    %503 = arith.addf %502, %501 : vector<2x128xf32>
    %504 = arith.divf %502, %503 : vector<2x128xf32>
    %505 = arith.mulf %496, %477 : vector<2x128xf32>
    %506 = arith.mulf %490, %498 : vector<2x128xf32>
    %507 = arith.addf %505, %506 : vector<2x128xf32>
    %508 = math.tanh %507 : vector<2x128xf32>
    %509 = arith.mulf %504, %508 : vector<2x128xf32>
    %c0_99 = arith.constant 0 : index
    %c0_100 = arith.constant 0 : index
    %510 = vector.load %arg9[%c0_99, %c0_100] : memref<128x16xf32, #tpu.memory_space<vmem>>, vector<128x16xf32>
    %c0_101 = arith.constant 0 : index
    %c0_102 = arith.constant 0 : index
    %511 = vector.load %arg10[%c0_101, %c0_102] : memref<1x16xf32, #tpu.memory_space<vmem>>, vector<1x16xf32>
    %c0_103 = arith.constant 0 : index
    %c0_104 = arith.constant 0 : index
    %512 = vector.load %arg11[%c0_103, %c0_104] : memref<16x8xf32, #tpu.memory_space<vmem>>, vector<16x8xf32>
    %c0_105 = arith.constant 0 : index
    %c0_106 = arith.constant 0 : index
    %513 = vector.load %arg12[%c0_105, %c0_106] : memref<1x8xf32, #tpu.memory_space<vmem>>, vector<1x8xf32>
    %cst_107 = arith.constant dense<0.000000e+00> : vector<2x16xf32>
    %514 = tpu.matmul %509, %510, %cst_107 {dimension_numbers = #tpu.dot_dimension_numbers<[1], [0], [0], [1], [0, 0, 1, 1], [], []>} : vector<2x128xf32>, vector<128x16xf32>, vector<2x16xf32> -> vector<2x16xf32>
    %515 = vector.broadcast %511 : vector<1x16xf32> to vector<2x16xf32>
    %516 = arith.addf %514, %515 : vector<2x16xf32>
    %cst_108 = arith.constant dense<0.000000e+00> : vector<2x8xf32>
    %517 = tpu.matmul %516, %512, %cst_108 {dimension_numbers = #tpu.dot_dimension_numbers<[1], [0], [0], [1], [0, 0, 1, 1], [], []>} : vector<2x16xf32>, vector<16x8xf32>, vector<2x8xf32> -> vector<2x8xf32>
    %518 = vector.broadcast %513 : vector<1x8xf32> to vector<2x8xf32>
    %519 = arith.addf %517, %518 : vector<2x8xf32>
    %c0_109 = arith.constant 0 : index
    %c0_110 = arith.constant 0 : index
    %520 = vector.load %arg13[%c0_109, %c0_110] : memref<2x8xf32, #tpu.memory_space<vmem>>, vector<2x8xf32>
    tpu.vector_store %arg13[%c0_109, %c0_110], %519 {strides = array<i32>} : memref<2x8xf32, #tpu.memory_space<vmem>>, vector<2x8xf32>,
    return
  }
}

</mosaic_0001>

<llo_original>
// kernel: simple_snli_forward.1
$region0: #{simple_snli_forward.1}
  #allocation0 [shape = 'u32[]', space=smem, size = 0x4, offset = 0x4, fixed_abs, tag = 'smem constant byte address 0x4 - core index']
  #allocation1 [shape = 'u32[144,128]{1,0:T(1,128)}', space=vmem, size = 0x12000, scoped, tag = 'internal scratch']
  #allocation2 [shape = 'f32[16,128]{1,0:T(8,128)}', space=vmem, size = 0x2000, scoped, tag = 'scratch operand']
  %s0 = inlined_call_operand.vmem [shape: f32[16,32], index: 0, kind: input, shape index: {}]
  %s1 = inlined_call_operand.vmem [shape: f32[32,512], index: 1, kind: input, shape index: {}]
  %s2 = inlined_call_operand.vmem [shape: f32[32,512], index: 2, kind: input, shape index: {}]
  %s3 = inlined_call_operand.hbm [shape: f32[128,512], index: 3, kind: input, shape index: {}]
  %s4 = inlined_call_operand.hbm [shape: f32[1,512], index: 4, kind: input, shape index: {}]
  %s5 = inlined_call_operand.hbm [shape: f32[128,512], index: 5, kind: input, shape index: {}]
  %s6 = inlined_call_operand.hbm [shape: f32[128,512], index: 6, kind: input, shape index: {}]
  %s7 = inlined_call_operand.hbm [shape: f32[128,512], index: 7, kind: input, shape index: {}]
  %s8 = inlined_call_operand.hbm [shape: f32[1,512], index: 8, kind: input, shape index: {}]
  %s9 = inlined_call_operand.vmem [shape: f32[128,16], index: 9, kind: input, shape index: {}]
  %s10 = inlined_call_operand.vmem [shape: f32[1,16], index: 10, kind: input, shape index: {}]
  %s11 = inlined_call_operand.vmem [shape: f32[16,8], index: 11, kind: input, shape index: {}]
  %s12 = inlined_call_operand.hbm [shape: f32[1,8], index: 12, kind: input, shape index: {}]
  %s13 = inlined_call_operand.hbm [shape: f32[2,8], index: 13, kind: output, shape index: {}]
  %s14 = sld [smem:[#allocation0]]
  $region90: #{simple_snli_forward.1} parent=0
    _
  %s16 = ssub.s32 1, %s14
  %s17 = scalar_select 0, %s16, %s14
  $region1: #{simple_snli_forward.1} parent=0
    #allocation3 [shape = 'u8[262144]{0}', space=vmem, size = 0x40000, scoped, tag = 'input window, operand 3, single buffered']
    #allocation4 [shape = 's32[1]{0}', space=sflag, size = 0x4, scoped, tag = 'scoped memory for simple_snli_forward.1']
    #allocation5 [shape = 's32[1]{0}', space=sflag, size = 0x4, scoped, tag = 'scoped memory for simple_snli_forward.1']
    #allocation6 [shape = 'u8[2048]{0}', space=vmem, size = 0x800, scoped, tag = 'input window, operand 4, single buffered']
    #allocation7 [shape = 's32[1]{0}', space=sflag, size = 0x4, scoped, tag = 'scoped memory for simple_snli_forward.1']
    #allocation8 [shape = 'u8[262144]{0}', space=vmem, size = 0x40000, scoped, tag = 'input window, operand 5, single buffered']
    #allocation9 [shape = 'u8[262144]{0}', space=vmem, size = 0x40000, scoped, tag = 'input window, operand 6, single buffered']
    #allocation10 [shape = 's32[1]{0}', space=sflag, size = 0x4, scoped, tag = 'scoped memory for simple_snli_forward.1']
    #allocation11 [shape = 'u8[262144]{0}', space=vmem, size = 0x40000, scoped, tag = 'input window, operand 7, single buffered']
    #allocation12 [shape = 'u8[2048]{0}', space=vmem, size = 0x800, scoped, tag = 'input window, operand 8, single buffered']
    #allocation13 [shape = 's32[1]{0}', space=sflag, size = 0x4, scoped, tag = 'scoped memory for simple_snli_forward.1']
    #allocation14 [shape = 'u8[512]{0}', space=vmem, size = 0x400, scoped, tag = 'input window, operand 12, single buffered']
    #allocation15 [shape = 'u8[1024]{0}', space=vmem, size = 0x400, scoped, tag = 'output window, operand 0, single buffered']
    %18 = vsyncpa [#allocation4], 0
    %19 = vsyncpa [#allocation7], 0
    %20 = vsyncpa [#allocation10], 0
    %21 = vsyncpa [#allocation13], 0
    %22 = vsyncpa [#allocation5], 0
    // Predicated region
    $region2: #{simple_snli_forward.1} parent=1 // pred_check
      _
    $region3: #{simple_snli_forward.1} parent=1 // pred_check_branch
      %24 = sbr.rel (0) target = $region5
    $region4: #{simple_snli_forward.1} parent=1 // pred_region
      _
    $region5: #{simple_snli_forward.1} parent=1 // pred_fallthru
      _
    // Predicated region
    $region6: #{simple_snli_forward.1} parent=1 // pred_check
      _
    $region7: #{simple_snli_forward.1} parent=1 // pred_check_branch
      %26 = sbr.rel (0) target = $region9
    $region8: #{simple_snli_forward.1} parent=1 // pred_region
      _
    $region9: #{simple_snli_forward.1} parent=1 // pred_fallthru
      _
    // Predicated region
    $region10: #{simple_snli_forward.1} parent=1 // pred_check
      _
    $region11: #{simple_snli_forward.1} parent=1 // pred_check_branch
      %28 = sbr.rel (0) target = $region13
    $region12: #{simple_snli_forward.1} parent=1 // pred_region
      _
    $region13: #{simple_snli_forward.1} parent=1 // pred_fallthru
      _
    // Predicated region
    $region14: #{simple_snli_forward.1} parent=1 // pred_check
      _
    $region15: #{simple_snli_forward.1} parent=1 // pred_check_branch
      %30 = sbr.rel (0) target = $region17
    $region16: #{simple_snli_forward.1} parent=1 // pred_region
      %s32 = ssub.s32 8192, 8192
      %33 = vsyncadd [#allocation4], %s32
      %s34 = sshll.u32 [#allocation3], 4
      %s35 = int_to_ptr.vmem [resolvable:$true] %s34
      %40 = dma.hbm_to_vmem [thread:$0]  %s3, 8192, %s35, [#allocation4], 512, 512, 32
    $region17: #{simple_snli_forward.1} parent=1 // pred_fallthru
      _
    // Predicated region
    $region18: #{simple_snli_forward.1} parent=1 // pred_check
      _
    $region19: #{simple_snli_forward.1} parent=1 // pred_check_branch
      %42 = sbr.rel (0) target = $region21
    $region20: #{simple_snli_forward.1} parent=1 // pred_region
      %s44 = ssub.s32 64, 64
      %45 = vsyncadd [#allocation7], %s44
      %s47 = sshll.u32 [#allocation6], 4
      %s48 = int_to_ptr.vmem [resolvable:$true] %s47
      %50 = dma.hbm_to_vmem [thread:$0]  %s4, 64, %s48, [#allocation7]
    $region21: #{simple_snli_forward.1} parent=1 // pred_fallthru
      _
    // Predicated region
    $region22: #{simple_snli_forward.1} parent=1 // pred_check
      _
    $region23: #{simple_snli_forward.1} parent=1 // pred_check_branch
      %52 = sbr.rel (0) target = $region25
    $region24: #{simple_snli_forward.1} parent=1 // pred_region
      %s54 = ssub.s32 8192, 8192
      %55 = vsyncadd [#allocation7], %s54
      %s56 = sshll.u32 [#allocation8], 4
      %s57 = int_to_ptr.vmem [resolvable:$true] %s56
      %62 = dma.hbm_to_vmem [thread:$0]  %s5, 8192, %s57, [#allocation7], 512, 512, 32
    $region25: #{simple_snli_forward.1} parent=1 // pred_fallthru
      _
    // Predicated region
    $region26: #{simple_snli_forward.1} parent=1 // pred_check
      _
    $region27: #{simple_snli_forward.1} parent=1 // pred_check_branch
      %64 = sbr.rel (0) target = $region29
    $region28: #{simple_snli_forward.1} parent=1 // pred_region
      %s66 = ssub.s32 8192, 8192
      %67 = vsyncadd [#allocation10], %s66
      %s68 = sshll.u32 [#allocation9], 4
      %s69 = int_to_ptr.vmem [resolvable:$true] %s68
      %74 = dma.hbm_to_vmem [thread:$0]  %s6, 8192, %s69, [#allocation10], 512, 512, 32
    $region29: #{simple_snli_forward.1} parent=1 // pred_fallthru
      _
    // Predicated region
    $region30: #{simple_snli_forward.1} parent=1 // pred_check
      _
    $region31: #{simple_snli_forward.1} parent=1 // pred_check_branch
      %76 = sbr.rel (0) target = $region33
    $region32: #{simple_snli_forward.1} parent=1 // pred_region
      %s78 = ssub.s32 8192, 8192
      %79 = vsyncadd [#allocation10], %s78
      %s80 = sshll.u32 [#allocation11], 4
      %s81 = int_to_ptr.vmem [resolvable:$true] %s80
      %86 = dma.hbm_to_vmem [thread:$0]  %s7, 8192, %s81, [#allocation10], 512, 512, 32
    $region33: #{simple_snli_forward.1} parent=1 // pred_fallthru
      _
    // Predicated region
    $region34: #{simple_snli_forward.1} parent=1 // pred_check
      _
    $region35: #{simple_snli_forward.1} parent=1 // pred_check_branch
      %88 = sbr.rel (0) target = $region37
    $region36: #{simple_snli_forward.1} parent=1 // pred_region
      %s90 = ssub.s32 64, 64
      %91 = vsyncadd [#allocation13], %s90
      %s93 = sshll.u32 [#allocation12], 4
      %s94 = int_to_ptr.vmem [resolvable:$true] %s93
      %96 = dma.hbm_to_vmem [thread:$0]  %s8, 64, %s94, [#allocation13]
    $region37: #{simple_snli_forward.1} parent=1 // pred_fallthru
      _
    // Predicated region
    $region38: #{simple_snli_forward.1} parent=1 // pred_check
      _
    $region39: #{simple_snli_forward.1} parent=1 // pred_check_branch
      %98 = sbr.rel (0) target = $region41
    $region40: #{simple_snli_forward.1} parent=1 // pred_region
      _
    $region41: #{simple_snli_forward.1} parent=1 // pred_fallthru
      _
    // Predicated region
    $region42: #{simple_snli_forward.1} parent=1 // pred_check
      _
    $region43: #{simple_snli_forward.1} parent=1 // pred_check_branch
      %100 = sbr.rel (0) target = $region45
    $region44: #{simple_snli_forward.1} parent=1 // pred_region
      _
    $region45: #{simple_snli_forward.1} parent=1 // pred_fallthru
      _
    // Predicated region
    $region46: #{simple_snli_forward.1} parent=1 // pred_check
      _
    $region47: #{simple_snli_forward.1} parent=1 // pred_check_branch
      %102 = sbr.rel (0) target = $region49
    $region48: #{simple_snli_forward.1} parent=1 // pred_region
      _
    $region49: #{simple_snli_forward.1} parent=1 // pred_fallthru
      _
    // Predicated region
    $region50: #{simple_snli_forward.1} parent=1 // pred_check
      _
    $region51: #{simple_snli_forward.1} parent=1 // pred_check_branch
      %104 = sbr.rel (0) target = $region53
    $region52: #{simple_snli_forward.1} parent=1 // pred_region
      %s106 = ssub.s32 16, 16
      %107 = vsyncadd [#allocation13], %s106
      %s109 = sshll.u32 [#allocation14], 4
      %s110 = int_to_ptr.vmem [resolvable:$true] %s109
      %112 = dma.hbm_to_vmem [thread:$0]  %s12, 16, %s110, [#allocation13]
    $region53: #{simple_snli_forward.1} parent=1 // pred_fallthru
      _
    // Predicated region
    $region54: #{simple_snli_forward.1} parent=1 // pred_check
      _
    $region55: #{simple_snli_forward.1} parent=1 // pred_check_branch
      %114 = sbr.rel (0) target = $region57
    $region56: #{simple_snli_forward.1} parent=1 // pred_region
      %115 = dma.done [#allocation4], 8192
    $region57: #{simple_snli_forward.1} parent=1 // pred_fallthru
      _
    // Predicated region
    $region58: #{simple_snli_forward.1} parent=1 // pred_check
      _
    $region59: #{simple_snli_forward.1} parent=1 // pred_check_branch
      %117 = sbr.rel (0) target = $region61
    $region60: #{simple_snli_forward.1} parent=1 // pred_region
      %118 = dma.done [#allocation7], 64
    $region61: #{simple_snli_forward.1} parent=1 // pred_fallthru
      _
    // Predicated region
    $region62: #{simple_snli_forward.1} parent=1 // pred_check
      _
    $region63: #{simple_snli_forward.1} parent=1 // pred_check_branch
      %120 = sbr.rel (0) target = $region65
    $region64: #{simple_snli_forward.1} parent=1 // pred_region
      %121 = dma.done [#allocation7], 8192
    $region65: #{simple_snli_forward.1} parent=1 // pred_fallthru
      _
    // Predicated region
    $region66: #{simple_snli_forward.1} parent=1 // pred_check
      _
    $region67: #{simple_snli_forward.1} parent=1 // pred_check_branch
      %123 = sbr.rel (0) target = $region69
    $region68: #{simple_snli_forward.1} parent=1 // pred_region
      %124 = dma.done [#allocation10], 8192
    $region69: #{simple_snli_forward.1} parent=1 // pred_fallthru
      _
    // Predicated region
    $region70: #{simple_snli_forward.1} parent=1 // pred_check
      _
    $region71: #{simple_snli_forward.1} parent=1 // pred_check_branch
      %126 = sbr.rel (0) target = $region73
    $region72: #{simple_snli_forward.1} parent=1 // pred_region
      %127 = dma.done [#allocation10], 8192
    $region73: #{simple_snli_forward.1} parent=1 // pred_fallthru
      _
    // Predicated region
    $region74: #{simple_snli_forward.1} parent=1 // pred_check
      _
    $region75: #{simple_snli_forward.1} parent=1 // pred_check_branch
      %129 = sbr.rel (0) target = $region77
    $region76: #{simple_snli_forward.1} parent=1 // pred_region
      %130 = dma.done [#allocation13], 64
    $region77: #{simple_snli_forward.1} parent=1 // pred_fallthru
      _
    // Predicated region
    $region78: #{simple_snli_forward.1} parent=1 // pred_check
      _
    $region79: #{simple_snli_forward.1} parent=1 // pred_check_branch
      %132 = sbr.rel (0) target = $region81
    $region80: #{simple_snli_forward.1} parent=1 // pred_region
      %133 = dma.done [#allocation13], 16
    $region81: #{simple_snli_forward.1} parent=1 // pred_fallthru
      _
    %v134 = vld [vmem:[%s0] sm:$0xff]
    %v135 = vld [vmem:[%s0 + $0x8] sm:$0xff]
    %v136 = vld [vmem:[%s1] sm:$0xff]
    %v137 = vld [vmem:[%s1 + $0x8] sm:$0xff]
    %v138 = vld [vmem:[%s1 + $0x10] sm:$0xff]
    %v139 = vld [vmem:[%s1 + $0x18] sm:$0xff]
    %v140 = vld [vmem:[%s1 + $0x20] sm:$0xff]
    %v141 = vld [vmem:[%s1 + $0x28] sm:$0xff]
    %v142 = vld [vmem:[%s1 + $0x30] sm:$0xff]
    %v143 = vld [vmem:[%s1 + $0x38] sm:$0xff]
    %v144 = vld [vmem:[%s1 + $0x40] sm:$0xff]
    %v145 = vld [vmem:[%s1 + $0x48] sm:$0xff]
    %v146 = vld [vmem:[%s1 + $0x50] sm:$0xff]
    %v147 = vld [vmem:[%s1 + $0x58] sm:$0xff]
    %v148 = vld [vmem:[%s1 + $0x60] sm:$0xff]
    %v149 = vld [vmem:[%s1 + $0x68] sm:$0xff]
    %v150 = vld [vmem:[%s1 + $0x70] sm:$0xff]
    %v151 = vld [vmem:[%s1 + $0x78] sm:$0xff]
    %v152 = vld [vmem:[%s2] sm:$0xff]
    %v153 = vld [vmem:[%s2 + $0x8] sm:$0xff]
    %v154 = vld [vmem:[%s2 + $0x10] sm:$0xff]
    %v155 = vld [vmem:[%s2 + $0x18] sm:$0xff]
    %v156 = vld [vmem:[%s2 + $0x20] sm:$0xff]
    %v157 = vld [vmem:[%s2 + $0x28] sm:$0xff]
    %v158 = vld [vmem:[%s2 + $0x30] sm:$0xff]
    %v159 = vld [vmem:[%s2 + $0x38] sm:$0xff]
    %v160 = vld [vmem:[%s2 + $0x40] sm:$0xff]
    %v161 = vld [vmem:[%s2 + $0x48] sm:$0xff]
    %v162 = vld [vmem:[%s2 + $0x50] sm:$0xff]
    %v163 = vld [vmem:[%s2 + $0x58] sm:$0xff]
    %v164 = vld [vmem:[%s2 + $0x60] sm:$0xff]
    %v165 = vld [vmem:[%s2 + $0x68] sm:$0xff]
    %v166 = vld [vmem:[%s2 + $0x70] sm:$0xff]
    %v167 = vld [vmem:[%s2 + $0x78] sm:$0xff]
    %v168 = vld [vmem:[#allocation3] sm:$0xff]
    %v169 = vld [vmem:[#allocation3 + $0x8] sm:$0xff]
    %v170 = vld [vmem:[#allocation3 + $0x10] sm:$0xff]
    %v171 = vld [vmem:[#allocation3 + $0x18] sm:$0xff]
    %v172 = vld [vmem:[#allocation3 + $0x20] sm:$0xff]
    %v173 = vld [vmem:[#allocation3 + $0x28] sm:$0xff]
    %v174 = vld [vmem:[#allocation3 + $0x30] sm:$0xff]
    %v175 = vld [vmem:[#allocation3 + $0x38] sm:$0xff]
    %v176 = vld [vmem:[#allocation3 + $0x40] sm:$0xff]
    %v177 = vld [vmem:[#allocation3 + $0x48] sm:$0xff]
    %v178 = vld [vmem:[#allocation3 + $0x50] sm:$0xff]
    %v179 = vld [vmem:[#allocation3 + $0x58] sm:$0xff]
    %v180 = vld [vmem:[#allocation3 + $0x60] sm:$0xff]
    %v181 = vld [vmem:[#allocation3 + $0x68] sm:$0xff]
    %v182 = vld [vmem:[#allocation3 + $0x70] sm:$0xff]
    %v183 = vld [vmem:[#allocation3 + $0x78] sm:$0xff]
    %v184 = vld [vmem:[#allocation3 + $0x80] sm:$0xff]
    %v185 = vld [vmem:[#allocation3 + $0x88] sm:$0xff]
    %v186 = vld [vmem:[#allocation3 + $0x90] sm:$0xff]
    %v187 = vld [vmem:[#allocation3 + $0x98] sm:$0xff]
    %v188 = vld [vmem:[#allocation3 + $0xa0] sm:$0xff]
    %v189 = vld [vmem:[#allocation3 + $0xa8] sm:$0xff]
    %v190 = vld [vmem:[#allocation3 + $0xb0] sm:$0xff]
    %v191 = vld [vmem:[#allocation3 + $0xb8] sm:$0xff]
    %v192 = vld [vmem:[#allocation3 + $0xc0] sm:$0xff]
    %v193 = vld [vmem:[#allocation3 + $0xc8] sm:$0xff]
    %v194 = vld [vmem:[#allocation3 + $0xd0] sm:$0xff]
    %v195 = vld [vmem:[#allocation3 + $0xd8] sm:$0xff]
    %v196 = vld [vmem:[#allocation3 + $0xe0] sm:$0xff]
    %v197 = vld [vmem:[#allocation3 + $0xe8] sm:$0xff]
    %v198 = vld [vmem:[#allocation3 + $0xf0] sm:$0xff]
    %v199 = vld [vmem:[#allocation3 + $0xf8] sm:$0xff]
    %v200 = vld [vmem:[#allocation3 + $0x100] sm:$0xff]
    %v201 = vld [vmem:[#allocation3 + $0x108] sm:$0xff]
    %v202 = vld [vmem:[#allocation3 + $0x110] sm:$0xff]
    %v203 = vld [vmem:[#allocation3 + $0x118] sm:$0xff]
    %v204 = vld [vmem:[#allocation3 + $0x120] sm:$0xff]
    %v205 = vld [vmem:[#allocation3 + $0x128] sm:$0xff]
    %v206 = vld [vmem:[#allocation3 + $0x130] sm:$0xff]
    %v207 = vld [vmem:[#allocation3 + $0x138] sm:$0xff]
    %v208 = vld [vmem:[#allocation3 + $0x140] sm:$0xff]
    %v209 = vld [vmem:[#allocation3 + $0x148] sm:$0xff]
    %v210 = vld [vmem:[#allocation3 + $0x150] sm:$0xff]
    %v211 = vld [vmem:[#allocation3 + $0x158] sm:$0xff]
    %v212 = vld [vmem:[#allocation3 + $0x160] sm:$0xff]
    %v213 = vld [vmem:[#allocation3 + $0x168] sm:$0xff]
    %v214 = vld [vmem:[#allocation3 + $0x170] sm:$0xff]
    %v215 = vld [vmem:[#allocation3 + $0x178] sm:$0xff]
    %v216 = vld [vmem:[#allocation3 + $0x180] sm:$0xff]
    %v217 = vld [vmem:[#allocation3 + $0x188] sm:$0xff]
    %v218 = vld [vmem:[#allocation3 + $0x190] sm:$0xff]
    %v219 = vld [vmem:[#allocation3 + $0x198] sm:$0xff]
    %v220 = vld [vmem:[#allocation3 + $0x1a0] sm:$0xff]
    %v221 = vld [vmem:[#allocation3 + $0x1a8] sm:$0xff]
    %v222 = vld [vmem:[#allocation3 + $0x1b0] sm:$0xff]
    %v223 = vld [vmem:[#allocation3 + $0x1b8] sm:$0xff]
    %v224 = vld [vmem:[#allocation3 + $0x1c0] sm:$0xff]
    %v225 = vld [vmem:[#allocation3 + $0x1c8] sm:$0xff]
    %v226 = vld [vmem:[#allocation3 + $0x1d0] sm:$0xff]
    %v227 = vld [vmem:[#allocation3 + $0x1d8] sm:$0xff]
    %v228 = vld [vmem:[#allocation3 + $0x1e0] sm:$0xff]
    %v229 = vld [vmem:[#allocation3 + $0x1e8] sm:$0xff]
    %v230 = vld [vmem:[#allocation3 + $0x1f0] sm:$0xff]
    %v231 = vld [vmem:[#allocation3 + $0x1f8] sm:$0xff]
    %v232 = vld [vmem:[#allocation6] sm:$0xf]
    %v234 = vlaneseq
    %v235 = vshrl.u32 %v234, 7
    %v236 = vsub.s32 0, %v235
    %v237 = vrot.slane %v232, %v236
    %v238 = vlaneseq
    %v239 = vshrl.u32 %v238, 7
    %v240 = vsub.s32 1, %v239
    %v241 = vrot.slane %v232, %v240
    %v242 = vlaneseq
    %v243 = vshrl.u32 %v242, 7
    %v244 = vsub.s32 2, %v243
    %v245 = vrot.slane %v232, %v244
    %v246 = vlaneseq
    %v247 = vshrl.u32 %v246, 7
    %v248 = vsub.s32 3, %v247
    %v249 = vrot.slane %v232, %v248
    %vm254 = vcmask 261120
    %v256 = vsel %vm254, %v134, 0
    %v259 = vsel %vm254, %v135, 0
    %261 = vmatprep.subr.mxu0 %v137
    %262 = vmatpush1.msra.mxu0 %v136
    %263 = vmatprep.subr.mxu0 %v141
    %264 = vmatpush1.msra.mxu0 %v140
    %265 = vmatprep.subr.mxu0 %v145
    %266 = vmatpush1.msra.mxu0 %v144
    %267 = vmatprep.subr.mxu0 %v149
    %268 = vmatpush1.msra.mxu0 %v148
    %269 = vmatprep.subr.mxu0 0.0
    %270 = vmatpush1.msra.mxu0 0.0
    %271 = vmatprep.subr.mxu0 0.0
    %272 = vmatpush1.msra.mxu0 0.0
    %273 = vmatprep.subr.mxu0 0.0
    %274 = vmatpush1.msra.mxu0 0.0
    %275 = vmatprep.subr.mxu0 0.0
    %276 = vmatpush1.msra.mxu0 0.0
    %277 = vmatprep.subr.mxu0 0.0
    %278 = vmatpush1.msra.mxu0 0.0
    %279 = vmatprep.subr.mxu0 0.0
    %280 = vmatpush1.msra.mxu0 0.0
    %281 = vmatprep.subr.mxu0 0.0
    %282 = vmatpush1.msra.mxu0 0.0
    %283 = vmatprep.subr.mxu0 0.0
    %284 = vmatpush1.msra.mxu0 0.0
    %285 = vmatprep.subr.mxu0 0.0
    %286 = vmatpush1.msra.mxu0 0.0
    %287 = vmatprep.subr.mxu0 0.0
    %288 = vmatpush1.msra.mxu0 0.0
    %289 = vmatprep.subr.mxu0 0.0
    %290 = vmatpush1.msra.mxu0 0.0
    %291 = vmatprep.subr.mxu0 0.0
    %292 = vmatpush1.msra.mxu0 0.0
    %293 = vmatprep.subr.mxu0 0.0
    %294 = vmatpush1.msra.mxu0 0.0
    %295 = vmatprep.subr.mxu0 0.0
    %296 = vmatpush1.msra.mxu0 0.0
    %297 = vmatprep.subr.mxu0 0.0
    %298 = vmatpush1.msra.mxu0 0.0
    %299 = vmatprep.subr.mxu0 0.0
    %300 = vmatpush1.msra.mxu0 0.0
    %301 = vmatprep.subr.mxu0 0.0
    %302 = vmatpush1.msra.mxu0 0.0
    %303 = vmatprep.subr.mxu0 0.0
    %304 = vmatpush1.msra.mxu0 0.0
    %305 = vmatprep.subr.mxu0 0.0
    %306 = vmatpush1.msra.mxu0 0.0
    %307 = vmatprep.subr.mxu0 0.0
    %308 = vmatpush1.msra.mxu0 0.0
    %309 = vmatprep.subr.mxu0 0.0
    %310 = vmatpush1.msra.mxu0 0.0
    %311 = vmatprep.subr.mxu0 0.0
    %312 = vmatpush1.msra.mxu0 0.0
    %313 = vmatprep.subr.mxu0 0.0
    %314 = vmatpush1.msra.mxu0 0.0
    %315 = vmatprep.subr.mxu0 0.0
    %316 = vmatpush1.msra.mxu0 0.0
    %317 = vmatprep.subr.mxu0 0.0
    %318 = vmatpush1.msra.mxu0 0.0
    %319 = vmatprep.subr.mxu0 0.0
    %320 = vmatpush1.msra.mxu0 0.0
    %321 = vmatprep.subr.mxu0 0.0
    %322 = vmatpush1.msra.mxu0 0.0
    %323 = vmatprep.subr.mxu0 0.0
    %324 = vmatpush1.msra.mxu0 0.0
    %325 = vmatprep.mubr.f32.mxu0 0.0
    %326 = vmatmul.mubr.f32.gmra.mrb[0].mxu0 %v256
    %v327 = vpop.f32.mrb[0].mxu0
    %v328 = vadd.f32 %v237, %v327
    %v329 = vpop.f32.mrb[0].mxu0
    %v330 = vadd.f32 %v241, %v329
    %331 = vmatprep.mubr.f32.mxu0 0.0
    %332 = vmatmul.mubr.f32.gmra.mrb[0].mxu0 %v259
    %v333 = vpop.f32.mrb[0].mxu0
    %v334 = vadd.f32 %v237, %v333
    %v335 = vpop.f32.mrb[0].mxu0
    %v336 = vadd.f32 %v241, %v335
    %337 = vdwg.mxu0
    %338 = vmatprep.subr.mxu0 %v139
    %339 = vmatpush1.msra.mxu0 %v138
    %340 = vmatprep.subr.mxu0 %v143
    %341 = vmatpush1.msra.mxu0 %v142
    %342 = vmatprep.subr.mxu0 %v147
    %343 = vmatpush1.msra.mxu0 %v146
    %344 = vmatprep.subr.mxu0 %v151
    %345 = vmatpush1.msra.mxu0 %v150
    %346 = vmatprep.subr.mxu0 0.0
    %347 = vmatpush1.msra.mxu0 0.0
    %348 = vmatprep.subr.mxu0 0.0
    %349 = vmatpush1.msra.mxu0 0.0
    %350 = vmatprep.subr.mxu0 0.0
    %351 = vmatpush1.msra.mxu0 0.0
    %352 = vmatprep.subr.mxu0 0.0
    %353 = vmatpush1.msra.mxu0 0.0
    %354 = vmatprep.subr.mxu0 0.0
    %355 = vmatpush1.msra.mxu0 0.0
    %356 = vmatprep.subr.mxu0 0.0
    %357 = vmatpush1.msra.mxu0 0.0
    %358 = vmatprep.subr.mxu0 0.0
    %359 = vmatpush1.msra.mxu0 0.0
    %360 = vmatprep.subr.mxu0 0.0
    %361 = vmatpush1.msra.mxu0 0.0
    %362 = vmatprep.subr.mxu0 0.0
    %363 = vmatpush1.msra.mxu0 0.0
    %364 = vmatprep.subr.mxu0 0.0
    %365 = vmatpush1.msra.mxu0 0.0
    %366 = vmatprep.subr.mxu0 0.0
    %367 = vmatpush1.msra.mxu0 0.0
    %368 = vmatprep.subr.mxu0 0.0
    %369 = vmatpush1.msra.mxu0 0.0
    %370 = vmatprep.subr.mxu0 0.0
    %371 = vmatpush1.msra.mxu0 0.0
    %372 = vmatprep.subr.mxu0 0.0
    %373 = vmatpush1.msra.mxu0 0.0
    %374 = vmatprep.subr.mxu0 0.0
    %375 = vmatpush1.msra.mxu0 0.0
    %376 = vmatprep.subr.mxu0 0.0
    %377 = vmatpush1.msra.mxu0 0.0
    %378 = vmatprep.subr.mxu0 0.0
    %379 = vmatpush1.msra.mxu0 0.0
    %380 = vmatprep.subr.mxu0 0.0
    %381 = vmatpush1.msra.mxu0 0.0
    %382 = vmatprep.subr.mxu0 0.0
    %383 = vmatpush1.msra.mxu0 0.0
    %384 = vmatprep.subr.mxu0 0.0
    %385 = vmatpush1.msra.mxu0 0.0
    %386 = vmatprep.subr.mxu0 0.0
    %387 = vmatpush1.msra.mxu0 0.0
    %388 = vmatprep.subr.mxu0 0.0
    %389 = vmatpush1.msra.mxu0 0.0
    %390 = vmatprep.subr.mxu0 0.0
    %391 = vmatpush1.msra.mxu0 0.0
    %392 = vmatprep.subr.mxu0 0.0
    %393 = vmatpush1.msra.mxu0 0.0
    %394 = vmatprep.subr.mxu0 0.0
    %395 = vmatpush1.msra.mxu0 0.0
    %396 = vmatprep.subr.mxu0 0.0
    %397 = vmatpush1.msra.mxu0 0.0
    %398 = vmatprep.subr.mxu0 0.0
    %399 = vmatpush1.msra.mxu0 0.0
    %400 = vmatprep.subr.mxu0 0.0
    %401 = vmatpush1.msra.mxu0 0.0
    %402 = vmatprep.mubr.f32.mxu0 0.0
    %403 = vmatmul.mubr.f32.gmra.mrb[0].mxu0 %v256
    %v404 = vpop.f32.mrb[0].mxu0
    %v405 = vadd.f32 %v245, %v404
    %v406 = vpop.f32.mrb[0].mxu0
    %v407 = vadd.f32 %v249, %v406
    %408 = vmatprep.mubr.f32.mxu0 0.0
    %409 = vmatmul.mubr.f32.gmra.mrb[0].mxu0 %v259
    %v410 = vpop.f32.mrb[0].mxu0
    %v411 = vadd.f32 %v245, %v410
    %v412 = vpop.f32.mrb[0].mxu0
    %v413 = vadd.f32 %v249, %v412
    %414 = vdwg.mxu0
    %415 = vmatprep.subr.mxu0 %v153
    %416 = vmatpush1.msra.mxu0 %v152
    %417 = vmatprep.subr.mxu0 %v157
    %418 = vmatpush1.msra.mxu0 %v156
    %419 = vmatprep.subr.mxu0 %v161
    %420 = vmatpush1.msra.mxu0 %v160
    %421 = vmatprep.subr.mxu0 %v165
    %422 = vmatpush1.msra.mxu0 %v164
    %423 = vmatprep.subr.mxu0 0.0
    %424 = vmatpush1.msra.mxu0 0.0
    %425 = vmatprep.subr.mxu0 0.0
    %426 = vmatpush1.msra.mxu0 0.0
    %427 = vmatprep.subr.mxu0 0.0
    %428 = vmatpush1.msra.mxu0 0.0
    %429 = vmatprep.subr.mxu0 0.0
    %430 = vmatpush1.msra.mxu0 0.0
    %431 = vmatprep.subr.mxu0 0.0
    %432 = vmatpush1.msra.mxu0 0.0
    %433 = vmatprep.subr.mxu0 0.0
    %434 = vmatpush1.msra.mxu0 0.0
    %435 = vmatprep.subr.mxu0 0.0
    %436 = vmatpush1.msra.mxu0 0.0
    %437 = vmatprep.subr.mxu0 0.0
    %438 = vmatpush1.msra.mxu0 0.0
    %439 = vmatprep.subr.mxu0 0.0
    %440 = vmatpush1.msra.mxu0 0.0
    %441 = vmatprep.subr.mxu0 0.0
    %442 = vmatpush1.msra.mxu0 0.0
    %443 = vmatprep.subr.mxu0 0.0
    %444 = vmatpush1.msra.mxu0 0.0
    %445 = vmatprep.subr.mxu0 0.0
    %446 = vmatpush1.msra.mxu0 0.0
    %447 = vmatprep.subr.mxu0 0.0
    %448 = vmatpush1.msra.mxu0 0.0
    %449 = vmatprep.subr.mxu0 0.0
    %450 = vmatpush1.msra.mxu0 0.0
    %451 = vmatprep.subr.mxu0 0.0
    %452 = vmatpush1.msra.mxu0 0.0
    %453 = vmatprep.subr.mxu0 0.0
    %454 = vmatpush1.msra.mxu0 0.0
    %455 = vmatprep.subr.mxu0 0.0
    %456 = vmatpush1.msra.mxu0 0.0
    %457 = vmatprep.subr.mxu0 0.0
    %458 = vmatpush1.msra.mxu0 0.0
    %459 = vmatprep.subr.mxu0 0.0
    %460 = vmatpush1.msra.mxu0 0.0
    %461 = vmatprep.subr.mxu0 0.0
    %462 = vmatpush1.msra.mxu0 0.0
    %463 = vmatprep.subr.mxu0 0.0
    %464 = vmatpush1.msra.mxu0 0.0
    %465 = vmatprep.subr.mxu0 0.0
    %466 = vmatpush1.msra.mxu0 0.0
    %467 = vmatprep.subr.mxu0 0.0
    %468 = vmatpush1.msra.mxu0 0.0
    %469 = vmatprep.subr.mxu0 0.0
    %470 = vmatpush1.msra.mxu0 0.0
    %471 = vmatprep.subr.mxu0 0.0
    %472 = vmatpush1.msra.mxu0 0.0
    %473 = vmatprep.subr.mxu0 0.0
    %474 = vmatpush1.msra.mxu0 0.0
    %475 = vmatprep.subr.mxu0 0.0
    %476 = vmatpush1.msra.mxu0 0.0
    %477 = vmatprep.subr.mxu0 0.0
    %478 = vmatpush1.msra.mxu0 0.0
    %479 = vmatprep.mubr.f32.mxu0 0.0
    %480 = vmatmul.mubr.f32.gmra.mrb[0].mxu0 %v256
    %v481 = vpop.f32.mrb[0].mxu0
    %v482 = vadd.f32 0.0, %v481
    %v483 = vpop.f32.mrb[0].mxu0
    %v484 = vadd.f32 0.0, %v483
    %485 = vmatprep.mubr.f32.mxu0 0.0
    %486 = vmatmul.mubr.f32.gmra.mrb[0].mxu0 %v259
    %v487 = vpop.f32.mrb[0].mxu0
    %v488 = vadd.f32 0.0, %v487
    %v489 = vpop.f32.mrb[0].mxu0
    %v490 = vadd.f32 0.0, %v489
    %491 = vdwg.mxu0
    %492 = vmatprep.subr.mxu0 %v155
    %493 = vmatpush1.msra.mxu0 %v154
    %494 = vmatprep.subr.mxu0 %v159
    %495 = vmatpush1.msra.mxu0 %v158
    %496 = vmatprep.subr.mxu0 %v163
    %497 = vmatpush1.msra.mxu0 %v162
    %498 = vmatprep.subr.mxu0 %v167
    %499 = vmatpush1.msra.mxu0 %v166
    %500 = vmatprep.subr.mxu0 0.0
    %501 = vmatpush1.msra.mxu0 0.0
    %502 = vmatprep.subr.mxu0 0.0
    %503 = vmatpush1.msra.mxu0 0.0
    %504 = vmatprep.subr.mxu0 0.0
    %505 = vmatpush1.msra.mxu0 0.0
    %506 = vmatprep.subr.mxu0 0.0
    %507 = vmatpush1.msra.mxu0 0.0
    %508 = vmatprep.subr.mxu0 0.0
    %509 = vmatpush1.msra.mxu0 0.0
    %510 = vmatprep.subr.mxu0 0.0
    %511 = vmatpush1.msra.mxu0 0.0
    %512 = vmatprep.subr.mxu0 0.0
    %513 = vmatpush1.msra.mxu0 0.0
    %514 = vmatprep.subr.mxu0 0.0
    %515 = vmatpush1.msra.mxu0 0.0
    %516 = vmatprep.subr.mxu0 0.0
    %517 = vmatpush1.msra.mxu0 0.0
    %518 = vmatprep.subr.mxu0 0.0
    %519 = vmatpush1.msra.mxu0 0.0
    %520 = vmatprep.subr.mxu0 0.0
    %521 = vmatpush1.msra.mxu0 0.0
    %522 = vmatprep.subr.mxu0 0.0
    %523 = vmatpush1.msra.mxu0 0.0
    %524 = vmatprep.subr.mxu0 0.0
    %525 = vmatpush1.msra.mxu0 0.0
    %526 = vmatprep.subr.mxu0 0.0
    %527 = vmatpush1.msra.mxu0 0.0
    %528 = vmatprep.subr.mxu0 0.0
    %529 = vmatpush1.msra.mxu0 0.0
    %530 = vmatprep.subr.mxu0 0.0
    %531 = vmatpush1.msra.mxu0 0.0
    %532 = vmatprep.subr.mxu0 0.0
    %533 = vmatpush1.msra.mxu0 0.0
    %534 = vmatprep.subr.mxu0 0.0
    %535 = vmatpush1.msra.mxu0 0.0
    %536 = vmatprep.subr.mxu0 0.0
    %537 = vmatpush1.msra.mxu0 0.0
    %538 = vmatprep.subr.mxu0 0.0
    %539 = vmatpush1.msra.mxu0 0.0
    %540 = vmatprep.subr.mxu0 0.0
    %541 = vmatpush1.msra.mxu0 0.0
    %542 = vmatprep.subr.mxu0 0.0
    %543 = vmatpush1.msra.mxu0 0.0
    %544 = vmatprep.subr.mxu0 0.0
    %545 = vmatpush1.msra.mxu0 0.0
    %546 = vmatprep.subr.mxu0 0.0
    %547 = vmatpush1.msra.mxu0 0.0
    %548 = vmatprep.subr.mxu0 0.0
    %549 = vmatpush1.msra.mxu0 0.0
    %550 = vmatprep.subr.mxu0 0.0
    %551 = vmatpush1.msra.mxu0 0.0
    %552 = vmatprep.subr.mxu0 0.0
    %553 = vmatpush1.msra.mxu0 0.0
    %554 = vmatprep.subr.mxu0 0.0
    %555 = vmatpush1.msra.mxu0 0.0
    %556 = vmatprep.mubr.f32.mxu0 0.0
    %557 = vmatmul.mubr.f32.gmra.mrb[0].mxu0 %v256
    %v558 = vpop.f32.mrb[0].mxu0
    %v559 = vadd.f32 0.0, %v558
    %v560 = vpop.f32.mrb[0].mxu0
    %v561 = vadd.f32 0.0, %v560
    %562 = vmatprep.mubr.f32.mxu0 0.0
    %563 = vmatmul.mubr.f32.gmra.mrb[0].mxu0 %v259
    %v564 = vpop.f32.mrb[0].mxu0
    %v565 = vadd.f32 0.0, %v564
    %v566 = vpop.f32.mrb[0].mxu0
    %v567 = vadd.f32 0.0, %v566
    %568 = vdwg.mxu0
    %569 = vmatprep.subr.mxu0 %v169
    %570 = vmatpush1.msra.mxu0 %v168
    %571 = vmatprep.subr.mxu0 %v173
    %572 = vmatpush1.msra.mxu0 %v172
    %573 = vmatprep.subr.mxu0 %v177
    %574 = vmatpush1.msra.mxu0 %v176
    %575 = vmatprep.subr.mxu0 %v181
    %576 = vmatpush1.msra.mxu0 %v180
    %577 = vmatprep.subr.mxu0 %v185
    %578 = vmatpush1.msra.mxu0 %v184
    %579 = vmatprep.subr.mxu0 %v189
    %580 = vmatpush1.msra.mxu0 %v188
    %581 = vmatprep.subr.mxu0 %v193
    %582 = vmatpush1.msra.mxu0 %v192
    %583 = vmatprep.subr.mxu0 %v197
    %584 = vmatpush1.msra.mxu0 %v196
    %585 = vmatprep.subr.mxu0 %v201
    %586 = vmatpush1.msra.mxu0 %v200
    %587 = vmatprep.subr.mxu0 %v205
    %588 = vmatpush1.msra.mxu0 %v204
    %589 = vmatprep.subr.mxu0 %v209
    %590 = vmatpush1.msra.mxu0 %v208
    %591 = vmatprep.subr.mxu0 %v213
    %592 = vmatpush1.msra.mxu0 %v212
    %593 = vmatprep.subr.mxu0 %v217
    %594 = vmatpush1.msra.mxu0 %v216
    %595 = vmatprep.subr.mxu0 %v221
    %596 = vmatpush1.msra.mxu0 %v220
    %597 = vmatprep.subr.mxu0 %v225
    %598 = vmatpush1.msra.mxu0 %v224
    %599 = vmatprep.subr.mxu0 %v229
    %600 = vmatpush1.msra.mxu0 %v228
    %601 = vmatprep.subr.mxu0 0.0
    %602 = vmatpush1.msra.mxu0 0.0
    %603 = vmatprep.subr.mxu0 0.0
    %604 = vmatpush1.msra.mxu0 0.0
    %605 = vmatprep.subr.mxu0 0.0
    %606 = vmatpush1.msra.mxu0 0.0
    %607 = vmatprep.subr.mxu0 0.0
    %608 = vmatpush1.msra.mxu0 0.0
    %609 = vmatprep.subr.mxu0 0.0
    %610 = vmatpush1.msra.mxu0 0.0
    %611 = vmatprep.subr.mxu0 0.0
    %612 = vmatpush1.msra.mxu0 0.0
    %613 = vmatprep.subr.mxu0 0.0
    %614 = vmatpush1.msra.mxu0 0.0
    %615 = vmatprep.subr.mxu0 0.0
    %616 = vmatpush1.msra.mxu0 0.0
    %617 = vmatprep.subr.mxu0 0.0
    %618 = vmatpush1.msra.mxu0 0.0
    %619 = vmatprep.subr.mxu0 0.0
    %620 = vmatpush1.msra.mxu0 0.0
    %621 = vmatprep.subr.mxu0 0.0
    %622 = vmatpush1.msra.mxu0 0.0
    %623 = vmatprep.subr.mxu0 0.0
    %624 = vmatpush1.msra.mxu0 0.0
    %625 = vmatprep.subr.mxu0 0.0
    %626 = vmatpush1.msra.mxu0 0.0
    %627 = vmatprep.subr.mxu0 0.0
    %628 = vmatpush1.msra.mxu0 0.0
    %629 = vmatprep.subr.mxu0 0.0
    %630 = vmatpush1.msra.mxu0 0.0
    %631 = vmatprep.subr.mxu0 0.0
    %632 = vmatpush1.msra.mxu0 0.0
    %633 = vmatprep.mubr.f32.mxu0 0.0
    %634 = vmatmul.mubr.f32.gmra.mrb[0].mxu0 0.0
    %v635 = vpop.f32.mrb[0].mxu0
    %v636 = vadd.f32 0.0, %v635
    %v637 = vpop.f32.mrb[0].mxu0
    %v638 = vadd.f32 0.0, %v637
    %639 = vdwg.mxu0
    %640 = vmatprep.subr.mxu0 %v171
    %641 = vmatpush1.msra.mxu0 %v170
    %642 = vmatprep.subr.mxu0 %v175
    %643 = vmatpush1.msra.mxu0 %v174
    %644 = vmatprep.subr.mxu0 %v179
    %645 = vmatpush1.msra.mxu0 %v178
    %646 = vmatprep.subr.mxu0 %v183
    %647 = vmatpush1.msra.mxu0 %v182
    %648 = vmatprep.subr.mxu0 %v187
    %649 = vmatpush1.msra.mxu0 %v186
    %650 = vmatprep.subr.mxu0 %v191
    %651 = vmatpush1.msra.mxu0 %v190
    %652 = vmatprep.subr.mxu0 %v195
    %653 = vmatpush1.msra.mxu0 %v194
    %654 = vmatprep.subr.mxu0 %v199
    %655 = vmatpush1.msra.mxu0 %v198
    %656 = vmatprep.subr.mxu0 %v203
    %657 = vmatpush1.msra.mxu0 %v202
    %658 = vmatprep.subr.mxu0 %v207
    %659 = vmatpush1.msra.mxu0 %v206
    %660 = vmatprep.subr.mxu0 %v211
    %661 = vmatpush1.msra.mxu0 %v210
    %662 = vmatprep.subr.mxu0 %v215
    %663 = vmatpush1.msra.mxu0 %v214
    %664 = vmatprep.subr.mxu0 %v219
    %665 = vmatpush1.msra.mxu0 %v218
    %666 = vmatprep.subr.mxu0 %v223
    %667 = vmatpush1.msra.mxu0 %v222
    %668 = vmatprep.subr.mxu0 %v227
    %669 = vmatpush1.msra.mxu0 %v226
    %670 = vmatprep.subr.mxu0 %v231
    %671 = vmatpush1.msra.mxu0 %v230
    %672 = vmatprep.subr.mxu0 0.0
    %673 = vmatpush1.msra.mxu0 0.0
    %674 = vmatprep.subr.mxu0 0.0
    %675 = vmatpush1.msra.mxu0 0.0
    %676 = vmatprep.subr.mxu0 0.0
    %677 = vmatpush1.msra.mxu0 0.0
    %678 = vmatprep.subr.mxu0 0.0
    %679 = vmatpush1.msra.mxu0 0.0
    %680 = vmatprep.subr.mxu0 0.0
    %681 = vmatpush1.msra.mxu0 0.0
    %682 = vmatprep.subr.mxu0 0.0
    %683 = vmatpush1.msra.mxu0 0.0
    %684 = vmatprep.subr.mxu0 0.0
    %685 = vmatpush1.msra.mxu0 0.0
    %686 = vmatprep.subr.mxu0 0.0
    %687 = vmatpush1.msra.mxu0 0.0
    %688 = vmatprep.subr.mxu0 0.0
    %689 = vmatpush1.msra.mxu0 0.0
    %690 = vmatprep.subr.mxu0 0.0
    %691 = vmatpush1.msra.mxu0 0.0
    %692 = vmatprep.subr.mxu0 0.0
    %693 = vmatpush1.msra.mxu0 0.0
    %694 = vmatprep.subr.mxu0 0.0
    %695 = vmatpush1.msra.mxu0 0.0
    %696 = vmatprep.subr.mxu0 0.0
    %697 = vmatpush1.msra.mxu0 0.0
    %698 = vmatprep.subr.mxu0 0.0
    %699 = vmatpush1.msra.mxu0 0.0
    %700 = vmatprep.subr.mxu0 0.0
    %701 = vmatpush1.msra.mxu0 0.0
    %702 = vmatprep.subr.mxu0 0.0
    %703 = vmatpush1.msra.mxu0 0.0
    %704 = vmatprep.mubr.f32.mxu0 0.0
    %705 = vmatmul.mubr.f32.gmra.mrb[0].mxu0 0.0
    %v706 = vpop.f32.mrb[0].mxu0
    %v707 = vadd.f32 0.0, %v706
    %v708 = vpop.f32.mrb[0].mxu0
    %v709 = vadd.f32 0.0, %v708
    %710 = vdwg.mxu0
    %v715 = vrot.slane %v488, 6
    %v716 = vrot.slane %v490, 6
    %v717 = vrot.slane %v565, 6
    %v718 = vrot.slane %v567, 6
    %v723 = vadd.f32 %v328, %v715
    %v724 = vadd.f32 %v330, %v716
    %v725 = vadd.f32 %v405, %v717
    %v726 = vadd.f32 %v407, %v718
    %v727 = vadd.f32 %v723, %v636
    %v728 = vadd.f32 %v724, %v638
    %v729 = vadd.f32 %v725, %v707
    %v730 = vadd.f32 %v726, %v709
    %v731 = vxor.u32 %v727, 2147483648
    %v732 = vmul.f32 %v731, 1.442695
    %v733 = vpow.pop %v732
    %v734 = vadd.f32 %v733, 1.0
    %v735 = vrcp.pop %v734
    %v736 = vmul.f32 1.0, %v735
    %v737 = vxor.u32 %v728, 2147483648
    %v738 = vmul.f32 %v737, 1.442695
    %v739 = vpow.pop %v738
    %v740 = vadd.f32 %v739, 1.0
    %v741 = vrcp.pop %v740
    %v742 = vmul.f32 1.0, %v741
    %v743 = vtanh.pop %v729
    %v744 = vxor.u32 %v730, 2147483648
    %v745 = vmul.f32 %v744, 1.442695
    %v746 = vpow.pop %v745
    %v747 = vadd.f32 %v746, 1.0
    %v748 = vrcp.pop %v747
    %v749 = vmul.f32 1.0, %v748
    %v750 = vmul.f32 %v742, 0.0
    %v751 = vmul.f32 %v736, %v743
    %v752 = vadd.f32 %v750, %v751
    %v753 = vtanh.pop %v752
    %v754 = vmul.f32 %v749, %v753
    %755 = vst [vmem:[#allocation2] sm:$0x3] %v754
    %756 = vmatprep.subr.mxu0 %v169
    %757 = vmatpush1.msra.mxu0 %v168
    %758 = vmatprep.subr.mxu0 %v173
    %759 = vmatpush1.msra.mxu0 %v172
    %760 = vmatprep.subr.mxu0 %v177
    %761 = vmatpush1.msra.mxu0 %v176
    %762 = vmatprep.subr.mxu0 %v181
    %763 = vmatpush1.msra.mxu0 %v180
    %764 = vmatprep.subr.mxu0 %v185
    %765 = vmatpush1.msra.mxu0 %v184
    %766 = vmatprep.subr.mxu0 %v189
    %767 = vmatpush1.msra.mxu0 %v188
    %768 = vmatprep.subr.mxu0 %v193
    %769 = vmatpush1.msra.mxu0 %v192
    %770 = vmatprep.subr.mxu0 %v197
    %771 = vmatpush1.msra.mxu0 %v196
    %772 = vmatprep.subr.mxu0 %v201
    %773 = vmatpush1.msra.mxu0 %v200
    %774 = vmatprep.subr.mxu0 %v205
    %775 = vmatpush1.msra.mxu0 %v204
    %776 = vmatprep.subr.mxu0 %v209
    %777 = vmatpush1.msra.mxu0 %v208
    %778 = vmatprep.subr.mxu0 %v213
    %779 = vmatpush1.msra.mxu0 %v212
    %780 = vmatprep.subr.mxu0 %v217
    %781 = vmatpush1.msra.mxu0 %v216
    %782 = vmatprep.subr.mxu0 %v221
    %783 = vmatpush1.msra.mxu0 %v220
    %784 = vmatprep.subr.mxu0 %v225
    %785 = vmatpush1.msra.mxu0 %v224
    %786 = vmatprep.subr.mxu0 %v229
    %787 = vmatpush1.msra.mxu0 %v228
    %788 = vmatprep.subr.mxu0 0.0
    %789 = vmatpush1.msra.mxu0 0.0
    %790 = vmatprep.subr.mxu0 0.0
    %791 = vmatpush1.msra.mxu0 0.0
    %792 = vmatprep.subr.mxu0 0.0
    %793 = vmatpush1.msra.mxu0 0.0
    %794 = vmatprep.subr.mxu0 0.0
    %795 = vmatpush1.msra.mxu0 0.0
    %796 = vmatprep.subr.mxu0 0.0
    %797 = vmatpush1.msra.mxu0 0.0
    %798 = vmatprep.subr.mxu0 0.0
    %799 = vmatpush1.msra.mxu0 0.0
    %800 = vmatprep.subr.mxu0 0.0
    %801 = vmatpush1.msra.mxu0 0.0
    %802 = vmatprep.subr.mxu0 0.0
    %803 = vmatpush1.msra.mxu0 0.0
    %804 = vmatprep.subr.mxu0 0.0
    %805 = vmatpush1.msra.mxu0 0.0
    %806 = vmatprep.subr.mxu0 0.0
    %807 = vmatpush1.msra.mxu0 0.0
    %808 = vmatprep.subr.mxu0 0.0
    %809 = vmatpush1.msra.mxu0 0.0
    %810 = vmatprep.subr.mxu0 0.0
    %811 = vmatpush1.msra.mxu0 0.0
    %812 = vmatprep.subr.mxu0 0.0
    %813 = vmatpush1.msra.mxu0 0.0
    %814 = vmatprep.subr.mxu0 0.0
    %815 = vmatpush1.msra.mxu0 0.0
    %816 = vmatprep.subr.mxu0 0.0
    %817 = vmatpush1.msra.mxu0 0.0
    %818 = vmatprep.subr.mxu0 0.0
    %819 = vmatpush1.msra.mxu0 0.0
    %820 = vmatprep.mubr.f32.mxu0 0.0
    %821 = vmatmul.mubr.f32.gmra.mrb[0].mxu0 %v754
    %v822 = vpop.f32.mrb[0].mxu0
    %v823 = vadd.f32 0.0, %v822
    %v824 = vpop.f32.mrb[0].mxu0
    %v825 = vadd.f32 0.0, %v824
    %826 = vdwg.mxu0
    %827 = vmatprep.subr.mxu0 %v171
    %828 = vmatpush1.msra.mxu0 %v170
    %829 = vmatprep.subr.mxu0 %v175
    %830 = vmatpush1.msra.mxu0 %v174
    %831 = vmatprep.subr.mxu0 %v179
    %832 = vmatpush1.msra.mxu0 %v178
    %833 = vmatprep.subr.mxu0 %v183
    %834 = vmatpush1.msra.mxu0 %v182
    %835 = vmatprep.subr.mxu0 %v187
    %836 = vmatpush1.msra.mxu0 %v186
    %837 = vmatprep.subr.mxu0 %v191
    %838 = vmatpush1.msra.mxu0 %v190
    %839 = vmatprep.subr.mxu0 %v195
    %840 = vmatpush1.msra.mxu0 %v194
    %841 = vmatprep.subr.mxu0 %v199
    %842 = vmatpush1.msra.mxu0 %v198
    %843 = vmatprep.subr.mxu0 %v203
    %844 = vmatpush1.msra.mxu0 %v202
    %845 = vmatprep.subr.mxu0 %v207
    %846 = vmatpush1.msra.mxu0 %v206
    %847 = vmatprep.subr.mxu0 %v211
    %848 = vmatpush1.msra.mxu0 %v210
    %849 = vmatprep.subr.mxu0 %v215
    %850 = vmatpush1.msra.mxu0 %v214
    %851 = vmatprep.subr.mxu0 %v219
    %852 = vmatpush1.msra.mxu0 %v218
    %853 = vmatprep.subr.mxu0 %v223
    %854 = vmatpush1.msra.mxu0 %v222
    %855 = vmatprep.subr.mxu0 %v227
    %856 = vmatpush1.msra.mxu0 %v226
    %857 = vmatprep.subr.mxu0 %v231
    %858 = vmatpush1.msra.mxu0 %v230
    %859 = vmatprep.subr.mxu0 0.0
    %860 = vmatpush1.msra.mxu0 0.0
    %861 = vmatprep.subr.mxu0 0.0
    %862 = vmatpush1.msra.mxu0 0.0
    %863 = vmatprep.subr.mxu0 0.0
    %864 = vmatpush1.msra.mxu0 0.0
    %865 = vmatprep.subr.mxu0 0.0
    %866 = vmatpush1.msra.mxu0 0.0
    %867 = vmatprep.subr.mxu0 0.0
    %868 = vmatpush1.msra.mxu0 0.0
    %869 = vmatprep.subr.mxu0 0.0
    %870 = vmatpush1.msra.mxu0 0.0
    %871 = vmatprep.subr.mxu0 0.0
    %872 = vmatpush1.msra.mxu0 0.0
    %873 = vmatprep.subr.mxu0 0.0
    %874 = vmatpush1.msra.mxu0 0.0
    %875 = vmatprep.subr.mxu0 0.0
    %876 = vmatpush1.msra.mxu0 0.0
    %877 = vmatprep.subr.mxu0 0.0
    %878 = vmatpush1.msra.mxu0 0.0
    %879 = vmatprep.subr.mxu0 0.0
    %880 = vmatpush1.msra.mxu0 0.0
    %881 = vmatprep.subr.mxu0 0.0
    %882 = vmatpush1.msra.mxu0 0.0
    %883 = vmatprep.subr.mxu0 0.0
    %884 = vmatpush1.msra.mxu0 0.0
    %885 = vmatprep.subr.mxu0 0.0
    %886 = vmatpush1.msra.mxu0 0.0
    %887 = vmatprep.subr.mxu0 0.0
    %888 = vmatpush1.msra.mxu0 0.0
    %889 = vmatprep.subr.mxu0 0.0
    %890 = vmatpush1.msra.mxu0 0.0
    %891 = vmatprep.mubr.f32.mxu0 0.0
    %892 = vmatmul.mubr.f32.gmra.mrb[0].mxu0 %v754
    %v893 = vpop.f32.mrb[0].mxu0
    %v894 = vadd.f32 0.0, %v893
    %v895 = vpop.f32.mrb[0].mxu0
    %v896 = vadd.f32 0.0, %v895
    %897 = vdwg.mxu0
    %v898 = vrot.slane %v488, 2
    %v899 = vrot.slane %v490, 2
    %v900 = vrot.slane %v565, 2
    %v901 = vrot.slane %v567, 2
    %v906 = vadd.f32 %v328, %v898
    %v907 = vadd.f32 %v330, %v899
    %v908 = vadd.f32 %v405, %v900
    %v909 = vadd.f32 %v407, %v901
    %v914 = vrot.slane %v823, 6
    %v915 = vrot.slane %v825, 6
    %v916 = vrot.slane %v894, 6
    %v917 = vrot.slane %v896, 6
    %v922 = vadd.f32 %v906, %v914
    %v923 = vadd.f32 %v907, %v915
    %v924 = vadd.f32 %v908, %v916
    %v925 = vadd.f32 %v909, %v917
    %v926 = vxor.u32 %v922, 2147483648
    %v927 = vmul.f32 %v926, 1.442695
    %v928 = vpow.pop %v927
    %v929 = vadd.f32 %v928, 1.0
    %v930 = vrcp.pop %v929
    %v931 = vmul.f32 1.0, %v930
    %v932 = vxor.u32 %v923, 2147483648
    %v933 = vmul.f32 %v932, 1.442695
    %v934 = vpow.pop %v933
    %v935 = vadd.f32 %v934, 1.0
    %v936 = vrcp.pop %v935
    %v937 = vmul.f32 1.0, %v936
    %v938 = vtanh.pop %v924
    %v939 = vxor.u32 %v925, 2147483648
    %v940 = vmul.f32 %v939, 1.442695
    %v941 = vpow.pop %v940
    %v942 = vadd.f32 %v941, 1.0
    %v943 = vrcp.pop %v942
    %v944 = vmul.f32 1.0, %v943
    %v946 = vrot.slane %v752, 6
    %v948 = vmul.f32 %v937, %v946
    %v949 = vmul.f32 %v931, %v938
    %v950 = vadd.f32 %v948, %v949
    %v951 = vtanh.pop %v950
    %v952 = vmul.f32 %v944, %v951
    %953 = vst [vmem:[#allocation2] sm:$0xc] %v952
    %v955 = vrot.slane %v952, 2
    %957 = vmatprep.subr.mxu0 %v169
    %958 = vmatpush1.msra.mxu0 %v168
    %959 = vmatprep.subr.mxu0 %v173
    %960 = vmatpush1.msra.mxu0 %v172
    %961 = vmatprep.subr.mxu0 %v177
    %962 = vmatpush1.msra.mxu0 %v176
    %963 = vmatprep.subr.mxu0 %v181
    %964 = vmatpush1.msra.mxu0 %v180
    %965 = vmatprep.subr.mxu0 %v185
    %966 = vmatpush1.msra.mxu0 %v184
    %967 = vmatprep.subr.mxu0 %v189
    %968 = vmatpush1.msra.mxu0 %v188
    %969 = vmatprep.subr.mxu0 %v193
    %970 = vmatpush1.msra.mxu0 %v192
    %971 = vmatprep.subr.mxu0 %v197
    %972 = vmatpush1.msra.mxu0 %v196
    %973 = vmatprep.subr.mxu0 %v201
    %974 = vmatpush1.msra.mxu0 %v200
    %975 = vmatprep.subr.mxu0 %v205
    %976 = vmatpush1.msra.mxu0 %v204
    %977 = vmatprep.subr.mxu0 %v209
    %978 = vmatpush1.msra.mxu0 %v208
    %979 = vmatprep.subr.mxu0 %v213
    %980 = vmatpush1.msra.mxu0 %v212
    %981 = vmatprep.subr.mxu0 %v217
    %982 = vmatpush1.msra.mxu0 %v216
    %983 = vmatprep.subr.mxu0 %v221
    %984 = vmatpush1.msra.mxu0 %v220
    %985 = vmatprep.subr.mxu0 %v225
    %986 = vmatpush1.msra.mxu0 %v224
    %987 = vmatprep.subr.mxu0 %v229
    %988 = vmatpush1.msra.mxu0 %v228
    %989 = vmatprep.subr.mxu0 0.0
    %990 = vmatpush1.msra.mxu0 0.0
    %991 = vmatprep.subr.mxu0 0.0
    %992 = vmatpush1.msra.mxu0 0.0
    %993 = vmatprep.subr.mxu0 0.0
    %994 = vmatpush1.msra.mxu0 0.0
    %995 = vmatprep.subr.mxu0 0.0
    %996 = vmatpush1.msra.mxu0 0.0
    %997 = vmatprep.subr.mxu0 0.0
    %998 = vmatpush1.msra.mxu0 0.0
    %999 = vmatprep.subr.mxu0 0.0
    %1000 = vmatpush1.msra.mxu0 0.0
    %1001 = vmatprep.subr.mxu0 0.0
    %1002 = vmatpush1.msra.mxu0 0.0
    %1003 = vmatprep.subr.mxu0 0.0
    %1004 = vmatpush1.msra.mxu0 0.0
    %1005 = vmatprep.subr.mxu0 0.0
    %1006 = vmatpush1.msra.mxu0 0.0
    %1007 = vmatprep.subr.mxu0 0.0
    %1008 = vmatpush1.msra.mxu0 0.0
    %1009 = vmatprep.subr.mxu0 0.0
    %1010 = vmatpush1.msra.mxu0 0.0
    %1011 = vmatprep.subr.mxu0 0.0
    %1012 = vmatpush1.msra.mxu0 0.0
    %1013 = vmatprep.subr.mxu0 0.0
    %1014 = vmatpush1.msra.mxu0 0.0
    %1015 = vmatprep.subr.mxu0 0.0
    %1016 = vmatpush1.msra.mxu0 0.0
    %1017 = vmatprep.subr.mxu0 0.0
    %1018 = vmatpush1.msra.mxu0 0.0
    %1019 = vmatprep.subr.mxu0 0.0
    %1020 = vmatpush1.msra.mxu0 0.0
    %1021 = vmatprep.mubr.f32.mxu0 0.0
    %1022 = vmatmul.mubr.f32.gmra.mrb[0].mxu0 %v955
    %v1023 = vpop.f32.mrb[0].mxu0
    %v1024 = vadd.f32 0.0, %v1023
    %v1025 = vpop.f32.mrb[0].mxu0
    %v1026 = vadd.f32 0.0, %v1025
    %1027 = vdwg.mxu0
    %1028 = vmatprep.subr.mxu0 %v171
    %1029 = vmatpush1.msra.mxu0 %v170
    %1030 = vmatprep.subr.mxu0 %v175
    %1031 = vmatpush1.msra.mxu0 %v174
    %1032 = vmatprep.subr.mxu0 %v179
    %1033 = vmatpush1.msra.mxu0 %v178
    %1034 = vmatprep.subr.mxu0 %v183
    %1035 = vmatpush1.msra.mxu0 %v182
    %1036 = vmatprep.subr.mxu0 %v187
    %1037 = vmatpush1.msra.mxu0 %v186
    %1038 = vmatprep.subr.mxu0 %v191
    %1039 = vmatpush1.msra.mxu0 %v190
    %1040 = vmatprep.subr.mxu0 %v195
    %1041 = vmatpush1.msra.mxu0 %v194
    %1042 = vmatprep.subr.mxu0 %v199
    %1043 = vmatpush1.msra.mxu0 %v198
    %1044 = vmatprep.subr.mxu0 %v203
    %1045 = vmatpush1.msra.mxu0 %v202
    %1046 = vmatprep.subr.mxu0 %v207
    %1047 = vmatpush1.msra.mxu0 %v206
    %1048 = vmatprep.subr.mxu0 %v211
    %1049 = vmatpush1.msra.mxu0 %v210
    %1050 = vmatprep.subr.mxu0 %v215
    %1051 = vmatpush1.msra.mxu0 %v214
    %1052 = vmatprep.subr.mxu0 %v219
    %1053 = vmatpush1.msra.mxu0 %v218
    %1054 = vmatprep.subr.mxu0 %v223
    %1055 = vmatpush1.msra.mxu0 %v222
    %1056 = vmatprep.subr.mxu0 %v227
    %1057 = vmatpush1.msra.mxu0 %v226
    %1058 = vmatprep.subr.mxu0 %v231
    %1059 = vmatpush1.msra.mxu0 %v230
    %1060 = vmatprep.subr.mxu0 0.0
    %1061 = vmatpush1.msra.mxu0 0.0
    %1062 = vmatprep.subr.mxu0 0.0
    %1063 = vmatpush1.msra.mxu0 0.0
    %1064 = vmatprep.subr.mxu0 0.0
    %1065 = vmatpush1.msra.mxu0 0.0
    %1066 = vmatprep.subr.mxu0 0.0
    %1067 = vmatpush1.msra.mxu0 0.0
    %1068 = vmatprep.subr.mxu0 0.0
    %1069 = vmatpush1.msra.mxu0 0.0
    %1070 = vmatprep.subr.mxu0 0.0
    %1071 = vmatpush1.msra.mxu0 0.0
    %1072 = vmatprep.subr.mxu0 0.0
    %1073 = vmatpush1.msra.mxu0 0.0
    %1074 = vmatprep.subr.mxu0 0.0
    %1075 = vmatpush1.msra.mxu0 0.0
    %1076 = vmatprep.subr.mxu0 0.0
    %1077 = vmatpush1.msra.mxu0 0.0
    %1078 = vmatprep.subr.mxu0 0.0
    %1079 = vmatpush1.msra.mxu0 0.0
    %1080 = vmatprep.subr.mxu0 0.0
    %1081 = vmatpush1.msra.mxu0 0.0
    %1082 = vmatprep.subr.mxu0 0.0
    %1083 = vmatpush1.msra.mxu0 0.0
    %1084 = vmatprep.subr.mxu0 0.0
    %1085 = vmatpush1.msra.mxu0 0.0
    %1086 = vmatprep.subr.mxu0 0.0
    %1087 = vmatpush1.msra.mxu0 0.0
    %1088 = vmatprep.subr.mxu0 0.0
    %1089 = vmatpush1.msra.mxu0 0.0
    %1090 = vmatprep.subr.mxu0 0.0
    %1091 = vmatpush1.msra.mxu0 0.0
    %1092 = vmatprep.mubr.f32.mxu0 0.0
    %1093 = vmatmul.mubr.f32.gmra.mrb[0].mxu0 %v955
    %v1094 = vpop.f32.mrb[0].mxu0
    %v1095 = vadd.f32 0.0, %v1094
    %v1096 = vpop.f32.mrb[0].mxu0
    %v1097 = vadd.f32 0.0, %v1096
    %1098 = vdwg.mxu0
    %v1103 = vrot.slane %v1024, 4
    %v1104 = vrot.slane %v1026, 4
    %v1105 = vrot.slane %v1095, 4
    %v1106 = vrot.slane %v1097, 4
    %v1111 = vadd.f32 %v723, %v1103
    %v1112 = vadd.f32 %v724, %v1104
    %v1113 = vadd.f32 %v725, %v1105
    %v1114 = vadd.f32 %v726, %v1106
    %v1115 = vxor.u32 %v1111, 2147483648
    %v1116 = vmul.f32 %v1115, 1.442695
    %v1117 = vpow.pop %v1116
    %v1118 = vadd.f32 %v1117, 1.0
    %v1119 = vrcp.pop %v1118
    %v1120 = vmul.f32 1.0, %v1119
    %v1121 = vxor.u32 %v1112, 2147483648
    %v1122 = vmul.f32 %v1121, 1.442695
    %v1123 = vpow.pop %v1122
    %v1124 = vadd.f32 %v1123, 1.0
    %v1125 = vrcp.pop %v1124
    %v1126 = vmul.f32 1.0, %v1125
    %v1127 = vtanh.pop %v1113
    %v1128 = vxor.u32 %v1114, 2147483648
    %v1129 = vmul.f32 %v1128, 1.442695
    %v1130 = vpow.pop %v1129
    %v1131 = vadd.f32 %v1130, 1.0
    %v1132 = vrcp.pop %v1131
    %v1133 = vmul.f32 1.0, %v1132
    %v1135 = vrot.slane %v950, 6
    %v1137 = vmul.f32 %v1126, %v1135
    %v1138 = vmul.f32 %v1120, %v1127
    %v1139 = vadd.f32 %v1137, %v1138
    %v1140 = vtanh.pop %v1139
    %v1141 = vmul.f32 %v1133, %v1140
    %1142 = vst [vmem:[#allocation2] sm:$0x30] %v1141
    %v1144 = vrot.slane %v1141, 4
    %1146 = vmatprep.subr.mxu0 %v169
    %1147 = vmatpush1.msra.mxu0 %v168
    %1148 = vmatprep.subr.mxu0 %v173
    %1149 = vmatpush1.msra.mxu0 %v172
    %1150 = vmatprep.subr.mxu0 %v177
    %1151 = vmatpush1.msra.mxu0 %v176
    %1152 = vmatprep.subr.mxu0 %v181
    %1153 = vmatpush1.msra.mxu0 %v180
    %1154 = vmatprep.subr.mxu0 %v185
    %1155 = vmatpush1.msra.mxu0 %v184
    %1156 = vmatprep.subr.mxu0 %v189
    %1157 = vmatpush1.msra.mxu0 %v188
    %1158 = vmatprep.subr.mxu0 %v193
    %1159 = vmatpush1.msra.mxu0 %v192
    %1160 = vmatprep.subr.mxu0 %v197
    %1161 = vmatpush1.msra.mxu0 %v196
    %1162 = vmatprep.subr.mxu0 %v201
    %1163 = vmatpush1.msra.mxu0 %v200
    %1164 = vmatprep.subr.mxu0 %v205
    %1165 = vmatpush1.msra.mxu0 %v204
    %1166 = vmatprep.subr.mxu0 %v209
    %1167 = vmatpush1.msra.mxu0 %v208
    %1168 = vmatprep.subr.mxu0 %v213
    %1169 = vmatpush1.msra.mxu0 %v212
    %1170 = vmatprep.subr.mxu0 %v217
    %1171 = vmatpush1.msra.mxu0 %v216
    %1172 = vmatprep.subr.mxu0 %v221
    %1173 = vmatpush1.msra.mxu0 %v220
    %1174 = vmatprep.subr.mxu0 %v225
    %1175 = vmatpush1.msra.mxu0 %v224
    %1176 = vmatprep.subr.mxu0 %v229
    %1177 = vmatpush1.msra.mxu0 %v228
    %1178 = vmatprep.subr.mxu0 0.0
    %1179 = vmatpush1.msra.mxu0 0.0
    %1180 = vmatprep.subr.mxu0 0.0
    %1181 = vmatpush1.msra.mxu0 0.0
    %1182 = vmatprep.subr.mxu0 0.0
    %1183 = vmatpush1.msra.mxu0 0.0
    %1184 = vmatprep.subr.mxu0 0.0
    %1185 = vmatpush1.msra.mxu0 0.0
    %1186 = vmatprep.subr.mxu0 0.0
    %1187 = vmatpush1.msra.mxu0 0.0
    %1188 = vmatprep.subr.mxu0 0.0
    %1189 = vmatpush1.msra.mxu0 0.0
    %1190 = vmatprep.subr.mxu0 0.0
    %1191 = vmatpush1.msra.mxu0 0.0
    %1192 = vmatprep.subr.mxu0 0.0
    %1193 = vmatpush1.msra.mxu0 0.0
    %1194 = vmatprep.subr.mxu0 0.0
    %1195 = vmatpush1.msra.mxu0 0.0
    %1196 = vmatprep.subr.mxu0 0.0
    %1197 = vmatpush1.msra.mxu0 0.0
    %1198 = vmatprep.subr.mxu0 0.0
    %1199 = vmatpush1.msra.mxu0 0.0
    %1200 = vmatprep.subr.mxu0 0.0
    %1201 = vmatpush1.msra.mxu0 0.0
    %1202 = vmatprep.subr.mxu0 0.0
    %1203 = vmatpush1.msra.mxu0 0.0
    %1204 = vmatprep.subr.mxu0 0.0
    %1205 = vmatpush1.msra.mxu0 0.0
    %1206 = vmatprep.subr.mxu0 0.0
    %1207 = vmatpush1.msra.mxu0 0.0
    %1208 = vmatprep.subr.mxu0 0.0
    %1209 = vmatpush1.msra.mxu0 0.0
    %1210 = vmatprep.mubr.f32.mxu0 0.0
    %1211 = vmatmul.mubr.f32.gmra.mrb[0].mxu0 %v1144
    %v1212 = vpop.f32.mrb[0].mxu0
    %v1213 = vadd.f32 0.0, %v1212
    %v1214 = vpop.f32.mrb[0].mxu0
    %v1215 = vadd.f32 0.0, %v1214
    %1216 = vdwg.mxu0
    %1217 = vmatprep.subr.mxu0 %v171
    %1218 = vmatpush1.msra.mxu0 %v170
    %1219 = vmatprep.subr.mxu0 %v175
    %1220 = vmatpush1.msra.mxu0 %v174
    %1221 = vmatprep.subr.mxu0 %v179
    %1222 = vmatpush1.msra.mxu0 %v178
    %1223 = vmatprep.subr.mxu0 %v183
    %1224 = vmatpush1.msra.mxu0 %v182
    %1225 = vmatprep.subr.mxu0 %v187
    %1226 = vmatpush1.msra.mxu0 %v186
    %1227 = vmatprep.subr.mxu0 %v191
    %1228 = vmatpush1.msra.mxu0 %v190
    %1229 = vmatprep.subr.mxu0 %v195
    %1230 = vmatpush1.msra.mxu0 %v194
    %1231 = vmatprep.subr.mxu0 %v199
    %1232 = vmatpush1.msra.mxu0 %v198
    %1233 = vmatprep.subr.mxu0 %v203
    %1234 = vmatpush1.msra.mxu0 %v202
    %1235 = vmatprep.subr.mxu0 %v207
    %1236 = vmatpush1.msra.mxu0 %v206
    %1237 = vmatprep.subr.mxu0 %v211
    %1238 = vmatpush1.msra.mxu0 %v210
    %1239 = vmatprep.subr.mxu0 %v215
    %1240 = vmatpush1.msra.mxu0 %v214
    %1241 = vmatprep.subr.mxu0 %v219
    %1242 = vmatpush1.msra.mxu0 %v218
    %1243 = vmatprep.subr.mxu0 %v223
    %1244 = vmatpush1.msra.mxu0 %v222
    %1245 = vmatprep.subr.mxu0 %v227
    %1246 = vmatpush1.msra.mxu0 %v226
    %1247 = vmatprep.subr.mxu0 %v231
    %1248 = vmatpush1.msra.mxu0 %v230
    %1249 = vmatprep.subr.mxu0 0.0
    %1250 = vmatpush1.msra.mxu0 0.0
    %1251 = vmatprep.subr.mxu0 0.0
    %1252 = vmatpush1.msra.mxu0 0.0
    %1253 = vmatprep.subr.mxu0 0.0
    %1254 = vmatpush1.msra.mxu0 0.0
    %1255 = vmatprep.subr.mxu0 0.0
    %1256 = vmatpush1.msra.mxu0 0.0
    %1257 = vmatprep.subr.mxu0 0.0
    %1258 = vmatpush1.msra.mxu0 0.0
    %1259 = vmatprep.subr.mxu0 0.0
    %1260 = vmatpush1.msra.mxu0 0.0
    %1261 = vmatprep.subr.mxu0 0.0
    %1262 = vmatpush1.msra.mxu0 0.0
    %1263 = vmatprep.subr.mxu0 0.0
    %1264 = vmatpush1.msra.mxu0 0.0
    %1265 = vmatprep.subr.mxu0 0.0
    %1266 = vmatpush1.msra.mxu0 0.0
    %1267 = vmatprep.subr.mxu0 0.0
    %1268 = vmatpush1.msra.mxu0 0.0
    %1269 = vmatprep.subr.mxu0 0.0
    %1270 = vmatpush1.msra.mxu0 0.0
    %1271 = vmatprep.subr.mxu0 0.0
    %1272 = vmatpush1.msra.mxu0 0.0
    %1273 = vmatprep.subr.mxu0 0.0
    %1274 = vmatpush1.msra.mxu0 0.0
    %1275 = vmatprep.subr.mxu0 0.0
    %1276 = vmatpush1.msra.mxu0 0.0
    %1277 = vmatprep.subr.mxu0 0.0
    %1278 = vmatpush1.msra.mxu0 0.0
    %1279 = vmatprep.subr.mxu0 0.0
    %1280 = vmatpush1.msra.mxu0 0.0
    %1281 = vmatprep.mubr.f32.mxu0 0.0
    %1282 = vmatmul.mubr.f32.gmra.mrb[0].mxu0 %v1144
    %v1283 = vpop.f32.mrb[0].mxu0
    %v1284 = vadd.f32 0.0, %v1283
    %v1285 = vpop.f32.mrb[0].mxu0
    %v1286 = vadd.f32 0.0, %v1285
    %1287 = vdwg.mxu0
    %v1292 = vrot.slane %v1213, 2
    %v1293 = vrot.slane %v1215, 2
    %v1294 = vrot.slane %v1284, 2
    %v1295 = vrot.slane %v1286, 2
    %v1300 = vadd.f32 %v906, %v1292
    %v1301 = vadd.f32 %v907, %v1293
    %v1302 = vadd.f32 %v908, %v1294
    %v1303 = vadd.f32 %v909, %v1295
    %v1304 = vxor.u32 %v1300, 2147483648
    %v1305 = vmul.f32 %v1304, 1.442695
    %v1306 = vpow.pop %v1305
    %v1307 = vadd.f32 %v1306, 1.0
    %v1308 = vrcp.pop %v1307
    %v1309 = vmul.f32 1.0, %v1308
    %v1310 = vxor.u32 %v1301, 2147483648
    %v1311 = vmul.f32 %v1310, 1.442695
    %v1312 = vpow.pop %v1311
    %v1313 = vadd.f32 %v1312, 1.0
    %v1314 = vrcp.pop %v1313
    %v1315 = vmul.f32 1.0, %v1314
    %v1316 = vtanh.pop %v1302
    %v1317 = vxor.u32 %v1303, 2147483648
    %v1318 = vmul.f32 %v1317, 1.442695
    %v1319 = vpow.pop %v1318
    %v1320 = vadd.f32 %v1319, 1.0
    %v1321 = vrcp.pop %v1320
    %v1322 = vmul.f32 1.0, %v1321
    %v1324 = vrot.slane %v1139, 6
    %v1326 = vmul.f32 %v1315, %v1324
    %v1327 = vmul.f32 %v1309, %v1316
    %v1328 = vadd.f32 %v1326, %v1327
    %v1329 = vtanh.pop %v1328
    %v1330 = vmul.f32 %v1322, %v1329
    %1331 = vst [vmem:[#allocation2] sm:$0xc0] %v1330
    %v1333 = vrot.slane %v1330, 6
    %1335 = vmatprep.subr.mxu0 %v169
    %1336 = vmatpush1.msra.mxu0 %v168
    %1337 = vmatprep.subr.mxu0 %v173
    %1338 = vmatpush1.msra.mxu0 %v172
    %1339 = vmatprep.subr.mxu0 %v177
    %1340 = vmatpush1.msra.mxu0 %v176
    %1341 = vmatprep.subr.mxu0 %v181
    %1342 = vmatpush1.msra.mxu0 %v180
    %1343 = vmatprep.subr.mxu0 %v185
    %1344 = vmatpush1.msra.mxu0 %v184
    %1345 = vmatprep.subr.mxu0 %v189
    %1346 = vmatpush1.msra.mxu0 %v188
    %1347 = vmatprep.subr.mxu0 %v193
    %1348 = vmatpush1.msra.mxu0 %v192
    %1349 = vmatprep.subr.mxu0 %v197
    %1350 = vmatpush1.msra.mxu0 %v196
    %1351 = vmatprep.subr.mxu0 %v201
    %1352 = vmatpush1.msra.mxu0 %v200
    %1353 = vmatprep.subr.mxu0 %v205
    %1354 = vmatpush1.msra.mxu0 %v204
    %1355 = vmatprep.subr.mxu0 %v209
    %1356 = vmatpush1.msra.mxu0 %v208
    %1357 = vmatprep.subr.mxu0 %v213
    %1358 = vmatpush1.msra.mxu0 %v212
    %1359 = vmatprep.subr.mxu0 %v217
    %1360 = vmatpush1.msra.mxu0 %v216
    %1361 = vmatprep.subr.mxu0 %v221
    %1362 = vmatpush1.msra.mxu0 %v220
    %1363 = vmatprep.subr.mxu0 %v225
    %1364 = vmatpush1.msra.mxu0 %v224
    %1365 = vmatprep.subr.mxu0 %v229
    %1366 = vmatpush1.msra.mxu0 %v228
    %1367 = vmatprep.subr.mxu0 0.0
    %1368 = vmatpush1.msra.mxu0 0.0
    %1369 = vmatprep.subr.mxu0 0.0
    %1370 = vmatpush1.msra.mxu0 0.0
    %1371 = vmatprep.subr.mxu0 0.0
    %1372 = vmatpush1.msra.mxu0 0.0
    %1373 = vmatprep.subr.mxu0 0.0
    %1374 = vmatpush1.msra.mxu0 0.0
    %1375 = vmatprep.subr.mxu0 0.0
    %1376 = vmatpush1.msra.mxu0 0.0
    %1377 = vmatprep.subr.mxu0 0.0
    %1378 = vmatpush1.msra.mxu0 0.0
    %1379 = vmatprep.subr.mxu0 0.0
    %1380 = vmatpush1.msra.mxu0 0.0
    %1381 = vmatprep.subr.mxu0 0.0
    %1382 = vmatpush1.msra.mxu0 0.0
    %1383 = vmatprep.subr.mxu0 0.0
    %1384 = vmatpush1.msra.mxu0 0.0
    %1385 = vmatprep.subr.mxu0 0.0
    %1386 = vmatpush1.msra.mxu0 0.0
    %1387 = vmatprep.subr.mxu0 0.0
    %1388 = vmatpush1.msra.mxu0 0.0
    %1389 = vmatprep.subr.mxu0 0.0
    %1390 = vmatpush1.msra.mxu0 0.0
    %1391 = vmatprep.subr.mxu0 0.0
    %1392 = vmatpush1.msra.mxu0 0.0
    %1393 = vmatprep.subr.mxu0 0.0
    %1394 = vmatpush1.msra.mxu0 0.0
    %1395 = vmatprep.subr.mxu0 0.0
    %1396 = vmatpush1.msra.mxu0 0.0
    %1397 = vmatprep.subr.mxu0 0.0
    %1398 = vmatpush1.msra.mxu0 0.0
    %1399 = vmatprep.mubr.f32.mxu0 0.0
    %1400 = vmatmul.mubr.f32.gmra.mrb[0].mxu0 %v1333
    %v1401 = vpop.f32.mrb[0].mxu0
    %v1402 = vadd.f32 0.0, %v1401
    %v1403 = vpop.f32.mrb[0].mxu0
    %v1404 = vadd.f32 0.0, %v1403
    %1405 = vdwg.mxu0
    %1406 = vmatprep.subr.mxu0 %v171
    %1407 = vmatpush1.msra.mxu0 %v170
    %1408 = vmatprep.subr.mxu0 %v175
    %1409 = vmatpush1.msra.mxu0 %v174
    %1410 = vmatprep.subr.mxu0 %v179
    %1411 = vmatpush1.msra.mxu0 %v178
    %1412 = vmatprep.subr.mxu0 %v183
    %1413 = vmatpush1.msra.mxu0 %v182
    %1414 = vmatprep.subr.mxu0 %v187
    %1415 = vmatpush1.msra.mxu0 %v186
    %1416 = vmatprep.subr.mxu0 %v191
    %1417 = vmatpush1.msra.mxu0 %v190
    %1418 = vmatprep.subr.mxu0 %v195
    %1419 = vmatpush1.msra.mxu0 %v194
    %1420 = vmatprep.subr.mxu0 %v199
    %1421 = vmatpush1.msra.mxu0 %v198
    %1422 = vmatprep.subr.mxu0 %v203
    %1423 = vmatpush1.msra.mxu0 %v202
    %1424 = vmatprep.subr.mxu0 %v207
    %1425 = vmatpush1.msra.mxu0 %v206
    %1426 = vmatprep.subr.mxu0 %v211
    %1427 = vmatpush1.msra.mxu0 %v210
    %1428 = vmatprep.subr.mxu0 %v215
    %1429 = vmatpush1.msra.mxu0 %v214
    %1430 = vmatprep.subr.mxu0 %v219
    %1431 = vmatpush1.msra.mxu0 %v218
    %1432 = vmatprep.subr.mxu0 %v223
    %1433 = vmatpush1.msra.mxu0 %v222
    %1434 = vmatprep.subr.mxu0 %v227
    %1435 = vmatpush1.msra.mxu0 %v226
    %1436 = vmatprep.subr.mxu0 %v231
    %1437 = vmatpush1.msra.mxu0 %v230
    %1438 = vmatprep.subr.mxu0 0.0
    %1439 = vmatpush1.msra.mxu0 0.0
    %1440 = vmatprep.subr.mxu0 0.0
    %1441 = vmatpush1.msra.mxu0 0.0
    %1442 = vmatprep.subr.mxu0 0.0
    %1443 = vmatpush1.msra.mxu0 0.0
    %1444 = vmatprep.subr.mxu0 0.0
    %1445 = vmatpush1.msra.mxu0 0.0
    %1446 = vmatprep.subr.mxu0 0.0
    %1447 = vmatpush1.msra.mxu0 0.0
    %1448 = vmatprep.subr.mxu0 0.0
    %1449 = vmatpush1.msra.mxu0 0.0
    %1450 = vmatprep.subr.mxu0 0.0
    %1451 = vmatpush1.msra.mxu0 0.0
    %1452 = vmatprep.subr.mxu0 0.0
    %1453 = vmatpush1.msra.mxu0 0.0
    %1454 = vmatprep.subr.mxu0 0.0
    %1455 = vmatpush1.msra.mxu0 0.0
    %1456 = vmatprep.subr.mxu0 0.0
    %1457 = vmatpush1.msra.mxu0 0.0
    %1458 = vmatprep.subr.mxu0 0.0
    %1459 = vmatpush1.msra.mxu0 0.0
    %1460 = vmatprep.subr.mxu0 0.0
    %1461 = vmatpush1.msra.mxu0 0.0
    %1462 = vmatprep.subr.mxu0 0.0
    %1463 = vmatpush1.msra.mxu0 0.0
    %1464 = vmatprep.subr.mxu0 0.0
    %1465 = vmatpush1.msra.mxu0 0.0
    %1466 = vmatprep.subr.mxu0 0.0
    %1467 = vmatpush1.msra.mxu0 0.0
    %1468 = vmatprep.subr.mxu0 0.0
    %1469 = vmatpush1.msra.mxu0 0.0
    %1470 = vmatprep.mubr.f32.mxu0 0.0
    %1471 = vmatmul.mubr.f32.gmra.mrb[0].mxu0 %v1333
    %v1472 = vpop.f32.mrb[0].mxu0
    %v1473 = vadd.f32 0.0, %v1472
    %v1474 = vpop.f32.mrb[0].mxu0
    %v1475 = vadd.f32 0.0, %v1474
    %1476 = vdwg.mxu0
    %v1481 = vrot.slane %v482, 6
    %v1482 = vrot.slane %v484, 6
    %v1483 = vrot.slane %v559, 6
    %v1484 = vrot.slane %v561, 6
    %v1489 = vadd.f32 %v334, %v1481
    %v1490 = vadd.f32 %v336, %v1482
    %v1491 = vadd.f32 %v411, %v1483
    %v1492 = vadd.f32 %v413, %v1484
    %v1493 = vadd.f32 %v1489, %v1402
    %v1494 = vadd.f32 %v1490, %v1404
    %v1495 = vadd.f32 %v1491, %v1473
    %v1496 = vadd.f32 %v1492, %v1475
    %v1497 = vxor.u32 %v1493, 2147483648
    %v1498 = vmul.f32 %v1497, 1.442695
    %v1499 = vpow.pop %v1498
    %v1500 = vadd.f32 %v1499, 1.0
    %v1501 = vrcp.pop %v1500
    %v1502 = vmul.f32 1.0, %v1501
    %v1503 = vxor.u32 %v1494, 2147483648
    %v1504 = vmul.f32 %v1503, 1.442695
    %v1505 = vpow.pop %v1504
    %v1506 = vadd.f32 %v1505, 1.0
    %v1507 = vrcp.pop %v1506
    %v1508 = vmul.f32 1.0, %v1507
    %v1509 = vtanh.pop %v1495
    %v1510 = vxor.u32 %v1496, 2147483648
    %v1511 = vmul.f32 %v1510, 1.442695
    %v1512 = vpow.pop %v1511
    %v1513 = vadd.f32 %v1512, 1.0
    %v1514 = vrcp.pop %v1513
    %v1515 = vmul.f32 1.0, %v1514
    %v1517 = vrot.slane %v1328, 6
    %v1519 = vmul.f32 %v1508, %v1517
    %v1520 = vmul.f32 %v1502, %v1509
    %v1521 = vadd.f32 %v1519, %v1520
    %v1522 = vtanh.pop %v1521
    %v1523 = vmul.f32 %v1515, %v1522
    %1524 = vst [vmem:[#allocation2 + $0x8] sm:$0x3] %v1523
    %1525 = vmatprep.subr.mxu0 %v169
    %1526 = vmatpush1.msra.mxu0 %v168
    %1527 = vmatprep.subr.mxu0 %v173
    %1528 = vmatpush1.msra.mxu0 %v172
    %1529 = vmatprep.subr.mxu0 %v177
    %1530 = vmatpush1.msra.mxu0 %v176
    %1531 = vmatprep.subr.mxu0 %v181
    %1532 = vmatpush1.msra.mxu0 %v180
    %1533 = vmatprep.subr.mxu0 %v185
    %1534 = vmatpush1.msra.mxu0 %v184
    %1535 = vmatprep.subr.mxu0 %v189
    %1536 = vmatpush1.msra.mxu0 %v188
    %1537 = vmatprep.subr.mxu0 %v193
    %1538 = vmatpush1.msra.mxu0 %v192
    %1539 = vmatprep.subr.mxu0 %v197
    %1540 = vmatpush1.msra.mxu0 %v196
    %1541 = vmatprep.subr.mxu0 %v201
    %1542 = vmatpush1.msra.mxu0 %v200
    %1543 = vmatprep.subr.mxu0 %v205
    %1544 = vmatpush1.msra.mxu0 %v204
    %1545 = vmatprep.subr.mxu0 %v209
    %1546 = vmatpush1.msra.mxu0 %v208
    %1547 = vmatprep.subr.mxu0 %v213
    %1548 = vmatpush1.msra.mxu0 %v212
    %1549 = vmatprep.subr.mxu0 %v217
    %1550 = vmatpush1.msra.mxu0 %v216
    %1551 = vmatprep.subr.mxu0 %v221
    %1552 = vmatpush1.msra.mxu0 %v220
    %1553 = vmatprep.subr.mxu0 %v225
    %1554 = vmatpush1.msra.mxu0 %v224
    %1555 = vmatprep.subr.mxu0 %v229
    %1556 = vmatpush1.msra.mxu0 %v228
    %1557 = vmatprep.subr.mxu0 0.0
    %1558 = vmatpush1.msra.mxu0 0.0
    %1559 = vmatprep.subr.mxu0 0.0
    %1560 = vmatpush1.msra.mxu0 0.0
    %1561 = vmatprep.subr.mxu0 0.0
    %1562 = vmatpush1.msra.mxu0 0.0
    %1563 = vmatprep.subr.mxu0 0.0
    %1564 = vmatpush1.msra.mxu0 0.0
    %1565 = vmatprep.subr.mxu0 0.0
    %1566 = vmatpush1.msra.mxu0 0.0
    %1567 = vmatprep.subr.mxu0 0.0
    %1568 = vmatpush1.msra.mxu0 0.0
    %1569 = vmatprep.subr.mxu0 0.0
    %1570 = vmatpush1.msra.mxu0 0.0
    %1571 = vmatprep.subr.mxu0 0.0
    %1572 = vmatpush1.msra.mxu0 0.0
    %1573 = vmatprep.subr.mxu0 0.0
    %1574 = vmatpush1.msra.mxu0 0.0
    %1575 = vmatprep.subr.mxu0 0.0
    %1576 = vmatpush1.msra.mxu0 0.0
    %1577 = vmatprep.subr.mxu0 0.0
    %1578 = vmatpush1.msra.mxu0 0.0
    %1579 = vmatprep.subr.mxu0 0.0
    %1580 = vmatpush1.msra.mxu0 0.0
    %1581 = vmatprep.subr.mxu0 0.0
    %1582 = vmatpush1.msra.mxu0 0.0
    %1583 = vmatprep.subr.mxu0 0.0
    %1584 = vmatpush1.msra.mxu0 0.0
    %1585 = vmatprep.subr.mxu0 0.0
    %1586 = vmatpush1.msra.mxu0 0.0
    %1587 = vmatprep.subr.mxu0 0.0
    %1588 = vmatpush1.msra.mxu0 0.0
    %1589 = vmatprep.mubr.f32.mxu0 0.0
    %1590 = vmatmul.mubr.f32.gmra.mrb[0].mxu0 %v1523
    %v1591 = vpop.f32.mrb[0].mxu0
    %v1592 = vadd.f32 0.0, %v1591
    %v1593 = vpop.f32.mrb[0].mxu0
    %v1594 = vadd.f32 0.0, %v1593
    %1595 = vdwg.mxu0
    %1596 = vmatprep.subr.mxu0 %v171
    %1597 = vmatpush1.msra.mxu0 %v170
    %1598 = vmatprep.subr.mxu0 %v175
    %1599 = vmatpush1.msra.mxu0 %v174
    %1600 = vmatprep.subr.mxu0 %v179
    %1601 = vmatpush1.msra.mxu0 %v178
    %1602 = vmatprep.subr.mxu0 %v183
    %1603 = vmatpush1.msra.mxu0 %v182
    %1604 = vmatprep.subr.mxu0 %v187
    %1605 = vmatpush1.msra.mxu0 %v186
    %1606 = vmatprep.subr.mxu0 %v191
    %1607 = vmatpush1.msra.mxu0 %v190
    %1608 = vmatprep.subr.mxu0 %v195
    %1609 = vmatpush1.msra.mxu0 %v194
    %1610 = vmatprep.subr.mxu0 %v199
    %1611 = vmatpush1.msra.mxu0 %v198
    %1612 = vmatprep.subr.mxu0 %v203
    %1613 = vmatpush1.msra.mxu0 %v202
    %1614 = vmatprep.subr.mxu0 %v207
    %1615 = vmatpush1.msra.mxu0 %v206
    %1616 = vmatprep.subr.mxu0 %v211
    %1617 = vmatpush1.msra.mxu0 %v210
    %1618 = vmatprep.subr.mxu0 %v215
    %1619 = vmatpush1.msra.mxu0 %v214
    %1620 = vmatprep.subr.mxu0 %v219
    %1621 = vmatpush1.msra.mxu0 %v218
    %1622 = vmatprep.subr.mxu0 %v223
    %1623 = vmatpush1.msra.mxu0 %v222
    %1624 = vmatprep.subr.mxu0 %v227
    %1625 = vmatpush1.msra.mxu0 %v226
    %1626 = vmatprep.subr.mxu0 %v231
    %1627 = vmatpush1.msra.mxu0 %v230
    %1628 = vmatprep.subr.mxu0 0.0
    %1629 = vmatpush1.msra.mxu0 0.0
    %1630 = vmatprep.subr.mxu0 0.0
    %1631 = vmatpush1.msra.mxu0 0.0
    %1632 = vmatprep.subr.mxu0 0.0
    %1633 = vmatpush1.msra.mxu0 0.0
    %1634 = vmatprep.subr.mxu0 0.0
    %1635 = vmatpush1.msra.mxu0 0.0
    %1636 = vmatprep.subr.mxu0 0.0
    %1637 = vmatpush1.msra.mxu0 0.0
    %1638 = vmatprep.subr.mxu0 0.0
    %1639 = vmatpush1.msra.mxu0 0.0
    %1640 = vmatprep.subr.mxu0 0.0
    %1641 = vmatpush1.msra.mxu0 0.0
    %1642 = vmatprep.subr.mxu0 0.0
    %1643 = vmatpush1.msra.mxu0 0.0
    %1644 = vmatprep.subr.mxu0 0.0
    %1645 = vmatpush1.msra.mxu0 0.0
    %1646 = vmatprep.subr.mxu0 0.0
    %1647 = vmatpush1.msra.mxu0 0.0
    %1648 = vmatprep.subr.mxu0 0.0
    %1649 = vmatpush1.msra.mxu0 0.0
    %1650 = vmatprep.subr.mxu0 0.0
    %1651 = vmatpush1.msra.mxu0 0.0
    %1652 = vmatprep.subr.mxu0 0.0
    %1653 = vmatpush1.msra.mxu0 0.0
    %1654 = vmatprep.subr.mxu0 0.0
    %1655 = vmatpush1.msra.mxu0 0.0
    %1656 = vmatprep.subr.mxu0 0.0
    %1657 = vmatpush1.msra.mxu0 0.0
    %1658 = vmatprep.subr.mxu0 0.0
    %1659 = vmatpush1.msra.mxu0 0.0
    %1660 = vmatprep.mubr.f32.mxu0 0.0
    %1661 = vmatmul.mubr.f32.gmra.mrb[0].mxu0 %v1523
    %v1662 = vpop.f32.mrb[0].mxu0
    %v1663 = vadd.f32 0.0, %v1662
    %v1664 = vpop.f32.mrb[0].mxu0
    %v1665 = vadd.f32 0.0, %v1664
    %1666 = vdwg.mxu0
    %v1667 = vrot.slane %v482, 2
    %v1668 = vrot.slane %v484, 2
    %v1669 = vrot.slane %v559, 2
    %v1670 = vrot.slane %v561, 2
    %v1675 = vadd.f32 %v334, %v1667
    %v1676 = vadd.f32 %v336, %v1668
    %v1677 = vadd.f32 %v411, %v1669
    %v1678 = vadd.f32 %v413, %v1670
    %v1683 = vrot.slane %v1592, 6
    %v1684 = vrot.slane %v1594, 6
    %v1685 = vrot.slane %v1663, 6
    %v1686 = vrot.slane %v1665, 6
    %v1691 = vadd.f32 %v1675, %v1683
    %v1692 = vadd.f32 %v1676, %v1684
    %v1693 = vadd.f32 %v1677, %v1685
    %v1694 = vadd.f32 %v1678, %v1686
    %v1695 = vxor.u32 %v1691, 2147483648
    %v1696 = vmul.f32 %v1695, 1.442695
    %v1697 = vpow.pop %v1696
    %v1698 = vadd.f32 %v1697, 1.0
    %v1699 = vrcp.pop %v1698
    %v1700 = vmul.f32 1.0, %v1699
    %v1701 = vxor.u32 %v1692, 2147483648
    %v1702 = vmul.f32 %v1701, 1.442695
    %v1703 = vpow.pop %v1702
    %v1704 = vadd.f32 %v1703, 1.0
    %v1705 = vrcp.pop %v1704
    %v1706 = vmul.f32 1.0, %v1705
    %v1707 = vtanh.pop %v1693
    %v1708 = vxor.u32 %v1694, 2147483648
    %v1709 = vmul.f32 %v1708, 1.442695
    %v1710 = vpow.pop %v1709
    %v1711 = vadd.f32 %v1710, 1.0
    %v1712 = vrcp.pop %v1711
    %v1713 = vmul.f32 1.0, %v1712
    %v1715 = vrot.slane %v1521, 6
    %v1717 = vmul.f32 %v1706, %v1715
    %v1718 = vmul.f32 %v1700, %v1707
    %v1719 = vadd.f32 %v1717, %v1718
    %v1720 = vtanh.pop %v1719
    %v1721 = vmul.f32 %v1713, %v1720
    %1722 = vst [vmem:[#allocation2 + $0x8] sm:$0xc] %v1721
    %v1724 = vrot.slane %v1721, 2
    %1726 = vmatprep.subr.mxu0 %v169
    %1727 = vmatpush1.msra.mxu0 %v168
    %1728 = vmatprep.subr.mxu0 %v173
    %1729 = vmatpush1.msra.mxu0 %v172
    %1730 = vmatprep.subr.mxu0 %v177
    %1731 = vmatpush1.msra.mxu0 %v176
    %1732 = vmatprep.subr.mxu0 %v181
    %1733 = vmatpush1.msra.mxu0 %v180
    %1734 = vmatprep.subr.mxu0 %v185
    %1735 = vmatpush1.msra.mxu0 %v184
    %1736 = vmatprep.subr.mxu0 %v189
    %1737 = vmatpush1.msra.mxu0 %v188
    %1738 = vmatprep.subr.mxu0 %v193
    %1739 = vmatpush1.msra.mxu0 %v192
    %1740 = vmatprep.subr.mxu0 %v197
    %1741 = vmatpush1.msra.mxu0 %v196
    %1742 = vmatprep.subr.mxu0 %v201
    %1743 = vmatpush1.msra.mxu0 %v200
    %1744 = vmatprep.subr.mxu0 %v205
    %1745 = vmatpush1.msra.mxu0 %v204
    %1746 = vmatprep.subr.mxu0 %v209
    %1747 = vmatpush1.msra.mxu0 %v208
    %1748 = vmatprep.subr.mxu0 %v213
    %1749 = vmatpush1.msra.mxu0 %v212
    %1750 = vmatprep.subr.mxu0 %v217
    %1751 = vmatpush1.msra.mxu0 %v216
    %1752 = vmatprep.subr.mxu0 %v221
    %1753 = vmatpush1.msra.mxu0 %v220
    %1754 = vmatprep.subr.mxu0 %v225
    %1755 = vmatpush1.msra.mxu0 %v224
    %1756 = vmatprep.subr.mxu0 %v229
    %1757 = vmatpush1.msra.mxu0 %v228
    %1758 = vmatprep.subr.mxu0 0.0
    %1759 = vmatpush1.msra.mxu0 0.0
    %1760 = vmatprep.subr.mxu0 0.0
    %1761 = vmatpush1.msra.mxu0 0.0
    %1762 = vmatprep.subr.mxu0 0.0
    %1763 = vmatpush1.msra.mxu0 0.0
    %1764 = vmatprep.subr.mxu0 0.0
    %1765 = vmatpush1.msra.mxu0 0.0
    %1766 = vmatprep.subr.mxu0 0.0
    %1767 = vmatpush1.msra.mxu0 0.0
    %1768 = vmatprep.subr.mxu0 0.0
    %1769 = vmatpush1.msra.mxu0 0.0
    %1770 = vmatprep.subr.mxu0 0.0
    %1771 = vmatpush1.msra.mxu0 0.0
    %1772 = vmatprep.subr.mxu0 0.0
    %1773 = vmatpush1.msra.mxu0 0.0
    %1774 = vmatprep.subr.mxu0 0.0
    %1775 = vmatpush1.msra.mxu0 0.0
    %1776 = vmatprep.subr.mxu0 0.0
    %1777 = vmatpush1.msra.mxu0 0.0
    %1778 = vmatprep.subr.mxu0 0.0
    %1779 = vmatpush1.msra.mxu0 0.0
    %1780 = vmatprep.subr.mxu0 0.0
    %1781 = vmatpush1.msra.mxu0 0.0
    %1782 = vmatprep.subr.mxu0 0.0
    %1783 = vmatpush1.msra.mxu0 0.0
    %1784 = vmatprep.subr.mxu0 0.0
    %1785 = vmatpush1.msra.mxu0 0.0
    %1786 = vmatprep.subr.mxu0 0.0
    %1787 = vmatpush1.msra.mxu0 0.0
    %1788 = vmatprep.subr.mxu0 0.0
    %1789 = vmatpush1.msra.mxu0 0.0
    %1790 = vmatprep.mubr.f32.mxu0 0.0
    %1791 = vmatmul.mubr.f32.gmra.mrb[0].mxu0 %v1724
    %v1792 = vpop.f32.mrb[0].mxu0
    %v1793 = vadd.f32 0.0, %v1792
    %v1794 = vpop.f32.mrb[0].mxu0
    %v1795 = vadd.f32 0.0, %v1794
    %1796 = vdwg.mxu0
    %1797 = vmatprep.subr.mxu0 %v171
    %1798 = vmatpush1.msra.mxu0 %v170
    %1799 = vmatprep.subr.mxu0 %v175
    %1800 = vmatpush1.msra.mxu0 %v174
    %1801 = vmatprep.subr.mxu0 %v179
    %1802 = vmatpush1.msra.mxu0 %v178
    %1803 = vmatprep.subr.mxu0 %v183
    %1804 = vmatpush1.msra.mxu0 %v182
    %1805 = vmatprep.subr.mxu0 %v187
    %1806 = vmatpush1.msra.mxu0 %v186
    %1807 = vmatprep.subr.mxu0 %v191
    %1808 = vmatpush1.msra.mxu0 %v190
    %1809 = vmatprep.subr.mxu0 %v195
    %1810 = vmatpush1.msra.mxu0 %v194
    %1811 = vmatprep.subr.mxu0 %v199
    %1812 = vmatpush1.msra.mxu0 %v198
    %1813 = vmatprep.subr.mxu0 %v203
    %1814 = vmatpush1.msra.mxu0 %v202
    %1815 = vmatprep.subr.mxu0 %v207
    %1816 = vmatpush1.msra.mxu0 %v206
    %1817 = vmatprep.subr.mxu0 %v211
    %1818 = vmatpush1.msra.mxu0 %v210
    %1819 = vmatprep.subr.mxu0 %v215
    %1820 = vmatpush1.msra.mxu0 %v214
    %1821 = vmatprep.subr.mxu0 %v219
    %1822 = vmatpush1.msra.mxu0 %v218
    %1823 = vmatprep.subr.mxu0 %v223
    %1824 = vmatpush1.msra.mxu0 %v222
    %1825 = vmatprep.subr.mxu0 %v227
    %1826 = vmatpush1.msra.mxu0 %v226
    %1827 = vmatprep.subr.mxu0 %v231
    %1828 = vmatpush1.msra.mxu0 %v230
    %1829 = vmatprep.subr.mxu0 0.0
    %1830 = vmatpush1.msra.mxu0 0.0
    %1831 = vmatprep.subr.mxu0 0.0
    %1832 = vmatpush1.msra.mxu0 0.0
    %1833 = vmatprep.subr.mxu0 0.0
    %1834 = vmatpush1.msra.mxu0 0.0
    %1835 = vmatprep.subr.mxu0 0.0
    %1836 = vmatpush1.msra.mxu0 0.0
    %1837 = vmatprep.subr.mxu0 0.0
    %1838 = vmatpush1.msra.mxu0 0.0
    %1839 = vmatprep.subr.mxu0 0.0
    %1840 = vmatpush1.msra.mxu0 0.0
    %1841 = vmatprep.subr.mxu0 0.0
    %1842 = vmatpush1.msra.mxu0 0.0
    %1843 = vmatprep.subr.mxu0 0.0
    %1844 = vmatpush1.msra.mxu0 0.0
    %1845 = vmatprep.subr.mxu0 0.0
    %1846 = vmatpush1.msra.mxu0 0.0
    %1847 = vmatprep.subr.mxu0 0.0
    %1848 = vmatpush1.msra.mxu0 0.0
    %1849 = vmatprep.subr.mxu0 0.0
    %1850 = vmatpush1.msra.mxu0 0.0
    %1851 = vmatprep.subr.mxu0 0.0
    %1852 = vmatpush1.msra.mxu0 0.0
    %1853 = vmatprep.subr.mxu0 0.0
    %1854 = vmatpush1.msra.mxu0 0.0
    %1855 = vmatprep.subr.mxu0 0.0
    %1856 = vmatpush1.msra.mxu0 0.0
    %1857 = vmatprep.subr.mxu0 0.0
    %1858 = vmatpush1.msra.mxu0 0.0
    %1859 = vmatprep.subr.mxu0 0.0
    %1860 = vmatpush1.msra.mxu0 0.0
    %1861 = vmatprep.mubr.f32.mxu0 0.0
    %1862 = vmatmul.mubr.f32.gmra.mrb[0].mxu0 %v1724
    %v1863 = vpop.f32.mrb[0].mxu0
    %v1864 = vadd.f32 0.0, %v1863
    %v1865 = vpop.f32.mrb[0].mxu0
    %v1866 = vadd.f32 0.0, %v1865
    %1867 = vdwg.mxu0
    %v1872 = vrot.slane %v1793, 4
    %v1873 = vrot.slane %v1795, 4
    %v1874 = vrot.slane %v1864, 4
    %v1875 = vrot.slane %v1866, 4
    %v1880 = vadd.f32 %v1489, %v1872
    %v1881 = vadd.f32 %v1490, %v1873
    %v1882 = vadd.f32 %v1491, %v1874
    %v1883 = vadd.f32 %v1492, %v1875
    %v1884 = vxor.u32 %v1880, 2147483648
    %v1885 = vmul.f32 %v1884, 1.442695
    %v1886 = vpow.pop %v1885
    %v1887 = vadd.f32 %v1886, 1.0
    %v1888 = vrcp.pop %v1887
    %v1889 = vmul.f32 1.0, %v1888
    %v1890 = vxor.u32 %v1881, 2147483648
    %v1891 = vmul.f32 %v1890, 1.442695
    %v1892 = vpow.pop %v1891
    %v1893 = vadd.f32 %v1892, 1.0
    %v1894 = vrcp.pop %v1893
    %v1895 = vmul.f32 1.0, %v1894
    %v1896 = vtanh.pop %v1882
    %v1897 = vxor.u32 %v1883, 2147483648
    %v1898 = vmul.f32 %v1897, 1.442695
    %v1899 = vpow.pop %v1898
    %v1900 = vadd.f32 %v1899, 1.0
    %v1901 = vrcp.pop %v1900
    %v1902 = vmul.f32 1.0, %v1901
    %v1904 = vrot.slane %v1719, 6
    %v1906 = vmul.f32 %v1895, %v1904
    %v1907 = vmul.f32 %v1889, %v1896
    %v1908 = vadd.f32 %v1906, %v1907
    %v1909 = vtanh.pop %v1908
    %v1910 = vmul.f32 %v1902, %v1909
    %1911 = vst [vmem:[#allocation2 + $0x8] sm:$0x30] %v1910
    %v1913 = vrot.slane %v1910, 4
    %1915 = vmatprep.subr.mxu0 %v169
    %1916 = vmatpush1.msra.mxu0 %v168
    %1917 = vmatprep.subr.mxu0 %v173
    %1918 = vmatpush1.msra.mxu0 %v172
    %1919 = vmatprep.subr.mxu0 %v177
    %1920 = vmatpush1.msra.mxu0 %v176
    %1921 = vmatprep.subr.mxu0 %v181
    %1922 = vmatpush1.msra.mxu0 %v180
    %1923 = vmatprep.subr.mxu0 %v185
    %1924 = vmatpush1.msra.mxu0 %v184
    %1925 = vmatprep.subr.mxu0 %v189
    %1926 = vmatpush1.msra.mxu0 %v188
    %1927 = vmatprep.subr.mxu0 %v193
    %1928 = vmatpush1.msra.mxu0 %v192
    %1929 = vmatprep.subr.mxu0 %v197
    %1930 = vmatpush1.msra.mxu0 %v196
    %1931 = vmatprep.subr.mxu0 %v201
    %1932 = vmatpush1.msra.mxu0 %v200
    %1933 = vmatprep.subr.mxu0 %v205
    %1934 = vmatpush1.msra.mxu0 %v204
    %1935 = vmatprep.subr.mxu0 %v209
    %1936 = vmatpush1.msra.mxu0 %v208
    %1937 = vmatprep.subr.mxu0 %v213
    %1938 = vmatpush1.msra.mxu0 %v212
    %1939 = vmatprep.subr.mxu0 %v217
    %1940 = vmatpush1.msra.mxu0 %v216
    %1941 = vmatprep.subr.mxu0 %v221
    %1942 = vmatpush1.msra.mxu0 %v220
    %1943 = vmatprep.subr.mxu0 %v225
    %1944 = vmatpush1.msra.mxu0 %v224
    %1945 = vmatprep.subr.mxu0 %v229
    %1946 = vmatpush1.msra.mxu0 %v228
    %1947 = vmatprep.subr.mxu0 0.0
    %1948 = vmatpush1.msra.mxu0 0.0
    %1949 = vmatprep.subr.mxu0 0.0
    %1950 = vmatpush1.msra.mxu0 0.0
    %1951 = vmatprep.subr.mxu0 0.0
    %1952 = vmatpush1.msra.mxu0 0.0
    %1953 = vmatprep.subr.mxu0 0.0
    %1954 = vmatpush1.msra.mxu0 0.0
    %1955 = vmatprep.subr.mxu0 0.0
    %1956 = vmatpush1.msra.mxu0 0.0
    %1957 = vmatprep.subr.mxu0 0.0
    %1958 = vmatpush1.msra.mxu0 0.0
    %1959 = vmatprep.subr.mxu0 0.0
    %1960 = vmatpush1.msra.mxu0 0.0
    %1961 = vmatprep.subr.mxu0 0.0
    %1962 = vmatpush1.msra.mxu0 0.0
    %1963 = vmatprep.subr.mxu0 0.0
    %1964 = vmatpush1.msra.mxu0 0.0
    %1965 = vmatprep.subr.mxu0 0.0
    %1966 = vmatpush1.msra.mxu0 0.0
    %1967 = vmatprep.subr.mxu0 0.0
    %1968 = vmatpush1.msra.mxu0 0.0
    %1969 = vmatprep.subr.mxu0 0.0
    %1970 = vmatpush1.msra.mxu0 0.0
    %1971 = vmatprep.subr.mxu0 0.0
    %1972 = vmatpush1.msra.mxu0 0.0
    %1973 = vmatprep.subr.mxu0 0.0
    %1974 = vmatpush1.msra.mxu0 0.0
    %1975 = vmatprep.subr.mxu0 0.0
    %1976 = vmatpush1.msra.mxu0 0.0
    %1977 = vmatprep.subr.mxu0 0.0
    %1978 = vmatpush1.msra.mxu0 0.0
    %1979 = vmatprep.mubr.f32.mxu0 0.0
    %1980 = vmatmul.mubr.f32.gmra.mrb[0].mxu0 %v1913
    %v1981 = vpop.f32.mrb[0].mxu0
    %v1982 = vadd.f32 0.0, %v1981
    %v1983 = vpop.f32.mrb[0].mxu0
    %v1984 = vadd.f32 0.0, %v1983
    %1985 = vdwg.mxu0
    %1986 = vmatprep.subr.mxu0 %v171
    %1987 = vmatpush1.msra.mxu0 %v170
    %1988 = vmatprep.subr.mxu0 %v175
    %1989 = vmatpush1.msra.mxu0 %v174
    %1990 = vmatprep.subr.mxu0 %v179
    %1991 = vmatpush1.msra.mxu0 %v178
    %1992 = vmatprep.subr.mxu0 %v183
    %1993 = vmatpush1.msra.mxu0 %v182
    %1994 = vmatprep.subr.mxu0 %v187
    %1995 = vmatpush1.msra.mxu0 %v186
    %1996 = vmatprep.subr.mxu0 %v191
    %1997 = vmatpush1.msra.mxu0 %v190
    %1998 = vmatprep.subr.mxu0 %v195
    %1999 = vmatpush1.msra.mxu0 %v194
    %2000 = vmatprep.subr.mxu0 %v199
    %2001 = vmatpush1.msra.mxu0 %v198
    %2002 = vmatprep.subr.mxu0 %v203
    %2003 = vmatpush1.msra.mxu0 %v202
    %2004 = vmatprep.subr.mxu0 %v207
    %2005 = vmatpush1.msra.mxu0 %v206
    %2006 = vmatprep.subr.mxu0 %v211
    %2007 = vmatpush1.msra.mxu0 %v210
    %2008 = vmatprep.subr.mxu0 %v215
    %2009 = vmatpush1.msra.mxu0 %v214
    %2010 = vmatprep.subr.mxu0 %v219
    %2011 = vmatpush1.msra.mxu0 %v218
    %2012 = vmatprep.subr.mxu0 %v223
    %2013 = vmatpush1.msra.mxu0 %v222
    %2014 = vmatprep.subr.mxu0 %v227
    %2015 = vmatpush1.msra.mxu0 %v226
    %2016 = vmatprep.subr.mxu0 %v231
    %2017 = vmatpush1.msra.mxu0 %v230
    %2018 = vmatprep.subr.mxu0 0.0
    %2019 = vmatpush1.msra.mxu0 0.0
    %2020 = vmatprep.subr.mxu0 0.0
    %2021 = vmatpush1.msra.mxu0 0.0
    %2022 = vmatprep.subr.mxu0 0.0
    %2023 = vmatpush1.msra.mxu0 0.0
    %2024 = vmatprep.subr.mxu0 0.0
    %2025 = vmatpush1.msra.mxu0 0.0
    %2026 = vmatprep.subr.mxu0 0.0
    %2027 = vmatpush1.msra.mxu0 0.0
    %2028 = vmatprep.subr.mxu0 0.0
    %2029 = vmatpush1.msra.mxu0 0.0
    %2030 = vmatprep.subr.mxu0 0.0
    %2031 = vmatpush1.msra.mxu0 0.0
    %2032 = vmatprep.subr.mxu0 0.0
    %2033 = vmatpush1.msra.mxu0 0.0
    %2034 = vmatprep.subr.mxu0 0.0
    %2035 = vmatpush1.msra.mxu0 0.0
    %2036 = vmatprep.subr.mxu0 0.0
    %2037 = vmatpush1.msra.mxu0 0.0
    %2038 = vmatprep.subr.mxu0 0.0
    %2039 = vmatpush1.msra.mxu0 0.0
    %2040 = vmatprep.subr.mxu0 0.0
    %2041 = vmatpush1.msra.mxu0 0.0
    %2042 = vmatprep.subr.mxu0 0.0
    %2043 = vmatpush1.msra.mxu0 0.0
    %2044 = vmatprep.subr.mxu0 0.0
    %2045 = vmatpush1.msra.mxu0 0.0
    %2046 = vmatprep.subr.mxu0 0.0
    %2047 = vmatpush1.msra.mxu0 0.0
    %2048 = vmatprep.subr.mxu0 0.0
    %2049 = vmatpush1.msra.mxu0 0.0
    %2050 = vmatprep.mubr.f32.mxu0 0.0
    %2051 = vmatmul.mubr.f32.gmra.mrb[0].mxu0 %v1913
    %v2052 = vpop.f32.mrb[0].mxu0
    %v2053 = vadd.f32 0.0, %v2052
    %v2054 = vpop.f32.mrb[0].mxu0
    %v2055 = vadd.f32 0.0, %v2054
    %2056 = vdwg.mxu0
    %v2061 = vrot.slane %v1982, 2
    %v2062 = vrot.slane %v1984, 2
    %v2063 = vrot.slane %v2053, 2
    %v2064 = vrot.slane %v2055, 2
    %v2069 = vadd.f32 %v1675, %v2061
    %v2070 = vadd.f32 %v1676, %v2062
    %v2071 = vadd.f32 %v1677, %v2063
    %v2072 = vadd.f32 %v1678, %v2064
    %v2073 = vxor.u32 %v2069, 2147483648
    %v2074 = vmul.f32 %v2073, 1.442695
    %v2075 = vpow.pop %v2074
    %v2076 = vadd.f32 %v2075, 1.0
    %v2077 = vrcp.pop %v2076
    %v2078 = vmul.f32 1.0, %v2077
    %v2079 = vxor.u32 %v2070, 2147483648
    %v2080 = vmul.f32 %v2079, 1.442695
    %v2081 = vpow.pop %v2080
    %v2082 = vadd.f32 %v2081, 1.0
    %v2083 = vrcp.pop %v2082
    %v2084 = vmul.f32 1.0, %v2083
    %v2085 = vtanh.pop %v2071
    %v2086 = vxor.u32 %v2072, 2147483648
    %v2087 = vmul.f32 %v2086, 1.442695
    %v2088 = vpow.pop %v2087
    %v2089 = vadd.f32 %v2088, 1.0
    %v2090 = vrcp.pop %v2089
    %v2091 = vmul.f32 1.0, %v2090
    %v2093 = vrot.slane %v1908, 6
    %v2095 = vmul.f32 %v2084, %v2093
    %v2096 = vmul.f32 %v2078, %v2085
    %v2097 = vadd.f32 %v2095, %v2096
    %v2098 = vtanh.pop %v2097
    %v2099 = vmul.f32 %v2091, %v2098
    %2100 = vst [vmem:[#allocation2 + $0x8] sm:$0xc0] %v2099
    %v2101 = vld [vmem:[#allocation2] sm:$0xff]
    %v2102 = vld [vmem:[#allocation2 + $0x8] sm:$0xff]
    %v2103 = vld [vmem:[#allocation8] sm:$0xff]
    %v2104 = vld [vmem:[#allocation8 + $0x8] sm:$0xff]
    %v2105 = vld [vmem:[#allocation8 + $0x10] sm:$0xff]
    %v2106 = vld [vmem:[#allocation8 + $0x18] sm:$0xff]
    %v2107 = vld [vmem:[#allocation8 + $0x20] sm:$0xff]
    %v2108 = vld [vmem:[#allocation8 + $0x28] sm:$0xff]
    %v2109 = vld [vmem:[#allocation8 + $0x30] sm:$0xff]
    %v2110 = vld [vmem:[#allocation8 + $0x38] sm:$0xff]
    %v2111 = vld [vmem:[#allocation8 + $0x40] sm:$0xff]
    %v2112 = vld [vmem:[#allocation8 + $0x48] sm:$0xff]
    %v2113 = vld [vmem:[#allocation8 + $0x50] sm:$0xff]
    %v2114 = vld [vmem:[#allocation8 + $0x58] sm:$0xff]
    %v2115 = vld [vmem:[#allocation8 + $0x60] sm:$0xff]
    %v2116 = vld [vmem:[#allocation8 + $0x68] sm:$0xff]
    %v2117 = vld [vmem:[#allocation8 + $0x70] sm:$0xff]
    %v2118 = vld [vmem:[#allocation8 + $0x78] sm:$0xff]
    %v2119 = vld [vmem:[#allocation8 + $0x80] sm:$0xff]
    %v2120 = vld [vmem:[#allocation8 + $0x88] sm:$0xff]
    %v2121 = vld [vmem:[#allocation8 + $0x90] sm:$0xff]
    %v2122 = vld [vmem:[#allocation8 + $0x98] sm:$0xff]
    %v2123 = vld [vmem:[#allocation8 + $0xa0] sm:$0xff]
    %v2124 = vld [vmem:[#allocation8 + $0xa8] sm:$0xff]
    %v2125 = vld [vmem:[#allocation8 + $0xb0] sm:$0xff]
    %v2126 = vld [vmem:[#allocation8 + $0xb8] sm:$0xff]
    %v2127 = vld [vmem:[#allocation8 + $0xc0] sm:$0xff]
    %v2128 = vld [vmem:[#allocation8 + $0xc8] sm:$0xff]
    %v2129 = vld [vmem:[#allocation8 + $0xd0] sm:$0xff]
    %v2130 = vld [vmem:[#allocation8 + $0xd8] sm:$0xff]
    %v2131 = vld [vmem:[#allocation8 + $0xe0] sm:$0xff]
    %v2132 = vld [vmem:[#allocation8 + $0xe8] sm:$0xff]
    %v2133 = vld [vmem:[#allocation8 + $0xf0] sm:$0xff]
    %v2134 = vld [vmem:[#allocation8 + $0xf8] sm:$0xff]
    %v2135 = vld [vmem:[#allocation8 + $0x100] sm:$0xff]
    %v2136 = vld [vmem:[#allocation8 + $0x108] sm:$0xff]
    %v2137 = vld [vmem:[#allocation8 + $0x110] sm:$0xff]
    %v2138 = vld [vmem:[#allocation8 + $0x118] sm:$0xff]
    %v2139 = vld [vmem:[#allocation8 + $0x120] sm:$0xff]
    %v2140 = vld [vmem:[#allocation8 + $0x128] sm:$0xff]
    %v2141 = vld [vmem:[#allocation8 + $0x130] sm:$0xff]
    %v2142 = vld [vmem:[#allocation8 + $0x138] sm:$0xff]
    %v2143 = vld [vmem:[#allocation8 + $0x140] sm:$0xff]
    %v2144 = vld [vmem:[#allocation8 + $0x148] sm:$0xff]
    %v2145 = vld [vmem:[#allocation8 + $0x150] sm:$0xff]
    %v2146 = vld [vmem:[#allocation8 + $0x158] sm:$0xff]
    %v2147 = vld [vmem:[#allocation8 + $0x160] sm:$0xff]
    %v2148 = vld [vmem:[#allocation8 + $0x168] sm:$0xff]
    %v2149 = vld [vmem:[#allocation8 + $0x170] sm:$0xff]
    %v2150 = vld [vmem:[#allocation8 + $0x178] sm:$0xff]
    %v2151 = vld [vmem:[#allocation8 + $0x180] sm:$0xff]
    %v2152 = vld [vmem:[#allocation8 + $0x188] sm:$0xff]
    %v2153 = vld [vmem:[#allocation8 + $0x190] sm:$0xff]
    %v2154 = vld [vmem:[#allocation8 + $0x198] sm:$0xff]
    %v2155 = vld [vmem:[#allocation8 + $0x1a0] sm:$0xff]
    %v2156 = vld [vmem:[#allocation8 + $0x1a8] sm:$0xff]
    %v2157 = vld [vmem:[#allocation8 + $0x1b0] sm:$0xff]
    %v2158 = vld [vmem:[#allocation8 + $0x1b8] sm:$0xff]
    %v2159 = vld [vmem:[#allocation8 + $0x1c0] sm:$0xff]
    %v2160 = vld [vmem:[#allocation8 + $0x1c8] sm:$0xff]
    %v2161 = vld [vmem:[#allocation8 + $0x1d0] sm:$0xff]
    %v2162 = vld [vmem:[#allocation8 + $0x1d8] sm:$0xff]
    %v2163 = vld [vmem:[#allocation8 + $0x1e0] sm:$0xff]
    %v2164 = vld [vmem:[#allocation8 + $0x1e8] sm:$0xff]
    %v2165 = vld [vmem:[#allocation8 + $0x1f0] sm:$0xff]
    %v2166 = vld [vmem:[#allocation8 + $0x1f8] sm:$0xff]
    %v2167 = vld [vmem:[#allocation9] sm:$0xff]
    %v2168 = vld [vmem:[#allocation9 + $0x8] sm:$0xff]
    %v2169 = vld [vmem:[#allocation9 + $0x10] sm:$0xff]
    %v2170 = vld [vmem:[#allocation9 + $0x18] sm:$0xff]
    %v2171 = vld [vmem:[#allocation9 + $0x20] sm:$0xff]
    %v2172 = vld [vmem:[#allocation9 + $0x28] sm:$0xff]
    %v2173 = vld [vmem:[#allocation9 + $0x30] sm:$0xff]
    %v2174 = vld [vmem:[#allocation9 + $0x38] sm:$0xff]
    %v2175 = vld [vmem:[#allocation9 + $0x40] sm:$0xff]
    %v2176 = vld [vmem:[#allocation9 + $0x48] sm:$0xff]
    %v2177 = vld [vmem:[#allocation9 + $0x50] sm:$0xff]
    %v2178 = vld [vmem:[#allocation9 + $0x58] sm:$0xff]
    %v2179 = vld [vmem:[#allocation9 + $0x60] sm:$0xff]
    %v2180 = vld [vmem:[#allocation9 + $0x68] sm:$0xff]
    %v2181 = vld [vmem:[#allocation9 + $0x70] sm:$0xff]
    %v2182 = vld [vmem:[#allocation9 + $0x78] sm:$0xff]
    %v2183 = vld [vmem:[#allocation9 + $0x80] sm:$0xff]
    %v2184 = vld [vmem:[#allocation9 + $0x88] sm:$0xff]
    %v2185 = vld [vmem:[#allocation9 + $0x90] sm:$0xff]
    %v2186 = vld [vmem:[#allocation9 + $0x98] sm:$0xff]
    %v2187 = vld [vmem:[#allocation9 + $0xa0] sm:$0xff]
    %v2188 = vld [vmem:[#allocation9 + $0xa8] sm:$0xff]
    %v2189 = vld [vmem:[#allocation9 + $0xb0] sm:$0xff]
    %v2190 = vld [vmem:[#allocation9 + $0xb8] sm:$0xff]
    %v2191 = vld [vmem:[#allocation9 + $0xc0] sm:$0xff]
    %v2192 = vld [vmem:[#allocation9 + $0xc8] sm:$0xff]
    %v2193 = vld [vmem:[#allocation9 + $0xd0] sm:$0xff]
    %v2194 = vld [vmem:[#allocation9 + $0xd8] sm:$0xff]
    %v2195 = vld [vmem:[#allocation9 + $0xe0] sm:$0xff]
    %v2196 = vld [vmem:[#allocation9 + $0xe8] sm:$0xff]
    %v2197 = vld [vmem:[#allocation9 + $0xf0] sm:$0xff]
    %v2198 = vld [vmem:[#allocation9 + $0xf8] sm:$0xff]
    %v2199 = vld [vmem:[#allocation9 + $0x100] sm:$0xff]
    %v2200 = vld [vmem:[#allocation9 + $0x108] sm:$0xff]
    %v2201 = vld [vmem:[#allocation9 + $0x110] sm:$0xff]
    %v2202 = vld [vmem:[#allocation9 + $0x118] sm:$0xff]
    %v2203 = vld [vmem:[#allocation9 + $0x120] sm:$0xff]
    %v2204 = vld [vmem:[#allocation9 + $0x128] sm:$0xff]
    %v2205 = vld [vmem:[#allocation9 + $0x130] sm:$0xff]
    %v2206 = vld [vmem:[#allocation9 + $0x138] sm:$0xff]
    %v2207 = vld [vmem:[#allocation9 + $0x140] sm:$0xff]
    %v2208 = vld [vmem:[#allocation9 + $0x148] sm:$0xff]
    %v2209 = vld [vmem:[#allocation9 + $0x150] sm:$0xff]
    %v2210 = vld [vmem:[#allocation9 + $0x158] sm:$0xff]
    %v2211 = vld [vmem:[#allocation9 + $0x160] sm:$0xff]
    %v2212 = vld [vmem:[#allocation9 + $0x168] sm:$0xff]
    %v2213 = vld [vmem:[#allocation9 + $0x170] sm:$0xff]
    %v2214 = vld [vmem:[#allocation9 + $0x178] sm:$0xff]
    %v2215 = vld [vmem:[#allocation9 + $0x180] sm:$0xff]
    %v2216 = vld [vmem:[#allocation9 + $0x188] sm:$0xff]
    %v2217 = vld [vmem:[#allocation9 + $0x190] sm:$0xff]
    %v2218 = vld [vmem:[#allocation9 + $0x198] sm:$0xff]
    %v2219 = vld [vmem:[#allocation9 + $0x1a0] sm:$0xff]
    %v2220 = vld [vmem:[#allocation9 + $0x1a8] sm:$0xff]
    %v2221 = vld [vmem:[#allocation9 + $0x1b0] sm:$0xff]
    %v2222 = vld [vmem:[#allocation9 + $0x1b8] sm:$0xff]
    %v2223 = vld [vmem:[#allocation9 + $0x1c0] sm:$0xff]
    %v2224 = vld [vmem:[#allocation9 + $0x1c8] sm:$0xff]
    %v2225 = vld [vmem:[#allocation9 + $0x1d0] sm:$0xff]
    %v2226 = vld [vmem:[#allocation9 + $0x1d8] sm:$0xff]
    %v2227 = vld [vmem:[#allocation9 + $0x1e0] sm:$0xff]
    %v2228 = vld [vmem:[#allocation9 + $0x1e8] sm:$0xff]
    %v2229 = vld [vmem:[#allocation9 + $0x1f0] sm:$0xff]
    %v2230 = vld [vmem:[#allocation9 + $0x1f8] sm:$0xff]
    %v2231 = vld [vmem:[#allocation11] sm:$0xff]
    %v2232 = vld [vmem:[#allocation11 + $0x8] sm:$0xff]
    %v2233 = vld [vmem:[#allocation11 + $0x10] sm:$0xff]
    %v2234 = vld [vmem:[#allocation11 + $0x18] sm:$0xff]
    %v2235 = vld [vmem:[#allocation11 + $0x20] sm:$0xff]
    %v2236 = vld [vmem:[#allocation11 + $0x28] sm:$0xff]
    %v2237 = vld [vmem:[#allocation11 + $0x30] sm:$0xff]
    %v2238 = vld [vmem:[#allocation11 + $0x38] sm:$0xff]
    %v2239 = vld [vmem:[#allocation11 + $0x40] sm:$0xff]
    %v2240 = vld [vmem:[#allocation11 + $0x48] sm:$0xff]
    %v2241 = vld [vmem:[#allocation11 + $0x50] sm:$0xff]
    %v2242 = vld [vmem:[#allocation11 + $0x58] sm:$0xff]
    %v2243 = vld [vmem:[#allocation11 + $0x60] sm:$0xff]
    %v2244 = vld [vmem:[#allocation11 + $0x68] sm:$0xff]
    %v2245 = vld [vmem:[#allocation11 + $0x70] sm:$0xff]
    %v2246 = vld [vmem:[#allocation11 + $0x78] sm:$0xff]
    %v2247 = vld [vmem:[#allocation11 + $0x80] sm:$0xff]
    %v2248 = vld [vmem:[#allocation11 + $0x88] sm:$0xff]
    %v2249 = vld [vmem:[#allocation11 + $0x90] sm:$0xff]
    %v2250 = vld [vmem:[#allocation11 + $0x98] sm:$0xff]
    %v2251 = vld [vmem:[#allocation11 + $0xa0] sm:$0xff]
    %v2252 = vld [vmem:[#allocation11 + $0xa8] sm:$0xff]
    %v2253 = vld [vmem:[#allocation11 + $0xb0] sm:$0xff]
    %v2254 = vld [vmem:[#allocation11 + $0xb8] sm:$0xff]
    %v2255 = vld [vmem:[#allocation11 + $0xc0] sm:$0xff]
    %v2256 = vld [vmem:[#allocation11 + $0xc8] sm:$0xff]
    %v2257 = vld [vmem:[#allocation11 + $0xd0] sm:$0xff]
    %v2258 = vld [vmem:[#allocation11 + $0xd8] sm:$0xff]
    %v2259 = vld [vmem:[#allocation11 + $0xe0] sm:$0xff]
    %v2260 = vld [vmem:[#allocation11 + $0xe8] sm:$0xff]
    %v2261 = vld [vmem:[#allocation11 + $0xf0] sm:$0xff]
    %v2262 = vld [vmem:[#allocation11 + $0xf8] sm:$0xff]
    %v2263 = vld [vmem:[#allocation11 + $0x100] sm:$0xff]
    %v2264 = vld [vmem:[#allocation11 + $0x108] sm:$0xff]
    %v2265 = vld [vmem:[#allocation11 + $0x110] sm:$0xff]
    %v2266 = vld [vmem:[#allocation11 + $0x118] sm:$0xff]
    %v2267 = vld [vmem:[#allocation11 + $0x120] sm:$0xff]
    %v2268 = vld [vmem:[#allocation11 + $0x128] sm:$0xff]
    %v2269 = vld [vmem:[#allocation11 + $0x130] sm:$0xff]
    %v2270 = vld [vmem:[#allocation11 + $0x138] sm:$0xff]
    %v2271 = vld [vmem:[#allocation11 + $0x140] sm:$0xff]
    %v2272 = vld [vmem:[#allocation11 + $0x148] sm:$0xff]
    %v2273 = vld [vmem:[#allocation11 + $0x150] sm:$0xff]
    %v2274 = vld [vmem:[#allocation11 + $0x158] sm:$0xff]
    %v2275 = vld [vmem:[#allocation11 + $0x160] sm:$0xff]
    %v2276 = vld [vmem:[#allocation11 + $0x168] sm:$0xff]
    %v2277 = vld [vmem:[#allocation11 + $0x170] sm:$0xff]
    %v2278 = vld [vmem:[#allocation11 + $0x178] sm:$0xff]
    %v2279 = vld [vmem:[#allocation11 + $0x180] sm:$0xff]
    %v2280 = vld [vmem:[#allocation11 + $0x188] sm:$0xff]
    %v2281 = vld [vmem:[#allocation11 + $0x190] sm:$0xff]
    %v2282 = vld [vmem:[#allocation11 + $0x198] sm:$0xff]
    %v2283 = vld [vmem:[#allocation11 + $0x1a0] sm:$0xff]
    %v2284 = vld [vmem:[#allocation11 + $0x1a8] sm:$0xff]
    %v2285 = vld [vmem:[#allocation11 + $0x1b0] sm:$0xff]
    %v2286 = vld [vmem:[#allocation11 + $0x1b8] sm:$0xff]
    %v2287 = vld [vmem:[#allocation11 + $0x1c0] sm:$0xff]
    %v2288 = vld [vmem:[#allocation11 + $0x1c8] sm:$0xff]
    %v2289 = vld [vmem:[#allocation11 + $0x1d0] sm:$0xff]
    %v2290 = vld [vmem:[#allocation11 + $0x1d8] sm:$0xff]
    %v2291 = vld [vmem:[#allocation11 + $0x1e0] sm:$0xff]
    %v2292 = vld [vmem:[#allocation11 + $0x1e8] sm:$0xff]
    %v2293 = vld [vmem:[#allocation11 + $0x1f0] sm:$0xff]
    %v2294 = vld [vmem:[#allocation11 + $0x1f8] sm:$0xff]
    %v2295 = vld [vmem:[#allocation12] sm:$0xf]
    %v2297 = vlaneseq
    %v2298 = vshrl.u32 %v2297, 7
    %v2299 = vsub.s32 0, %v2298
    %v2300 = vrot.slane %v2295, %v2299
    %v2301 = vlaneseq
    %v2302 = vshrl.u32 %v2301, 7
    %v2303 = vsub.s32 1, %v2302
    %v2304 = vrot.slane %v2295, %v2303
    %v2305 = vlaneseq
    %v2306 = vshrl.u32 %v2305, 7
    %v2307 = vsub.s32 2, %v2306
    %v2308 = vrot.slane %v2295, %v2307
    %v2309 = vlaneseq
    %v2310 = vshrl.u32 %v2309, 7
    %v2311 = vsub.s32 3, %v2310
    %v2312 = vrot.slane %v2295, %v2311
    %2317 = vmatprep.subr.mxu0 %v2104
    %2318 = vmatpush1.msra.mxu0 %v2103
    %2319 = vmatprep.subr.mxu0 %v2108
    %2320 = vmatpush1.msra.mxu0 %v2107
    %2321 = vmatprep.subr.mxu0 %v2112
    %2322 = vmatpush1.msra.mxu0 %v2111
    %2323 = vmatprep.subr.mxu0 %v2116
    %2324 = vmatpush1.msra.mxu0 %v2115
    %2325 = vmatprep.subr.mxu0 %v2120
    %2326 = vmatpush1.msra.mxu0 %v2119
    %2327 = vmatprep.subr.mxu0 %v2124
    %2328 = vmatpush1.msra.mxu0 %v2123
    %2329 = vmatprep.subr.mxu0 %v2128
    %2330 = vmatpush1.msra.mxu0 %v2127
    %2331 = vmatprep.subr.mxu0 %v2132
    %2332 = vmatpush1.msra.mxu0 %v2131
    %2333 = vmatprep.subr.mxu0 %v2136
    %2334 = vmatpush1.msra.mxu0 %v2135
    %2335 = vmatprep.subr.mxu0 %v2140
    %2336 = vmatpush1.msra.mxu0 %v2139
    %2337 = vmatprep.subr.mxu0 %v2144
    %2338 = vmatpush1.msra.mxu0 %v2143
    %2339 = vmatprep.subr.mxu0 %v2148
    %2340 = vmatpush1.msra.mxu0 %v2147
    %2341 = vmatprep.subr.mxu0 %v2152
    %2342 = vmatpush1.msra.mxu0 %v2151
    %2343 = vmatprep.subr.mxu0 %v2156
    %2344 = vmatpush1.msra.mxu0 %v2155
    %2345 = vmatprep.subr.mxu0 %v2160
    %2346 = vmatpush1.msra.mxu0 %v2159
    %2347 = vmatprep.subr.mxu0 %v2164
    %2348 = vmatpush1.msra.mxu0 %v2163
    %2349 = vmatprep.subr.mxu0 0.0
    %2350 = vmatpush1.msra.mxu0 0.0
    %2351 = vmatprep.subr.mxu0 0.0
    %2352 = vmatpush1.msra.mxu0 0.0
    %2353 = vmatprep.subr.mxu0 0.0
    %2354 = vmatpush1.msra.mxu0 0.0
    %2355 = vmatprep.subr.mxu0 0.0
    %2356 = vmatpush1.msra.mxu0 0.0
    %2357 = vmatprep.subr.mxu0 0.0
    %2358 = vmatpush1.msra.mxu0 0.0
    %2359 = vmatprep.subr.mxu0 0.0
    %2360 = vmatpush1.msra.mxu0 0.0
    %2361 = vmatprep.subr.mxu0 0.0
    %2362 = vmatpush1.msra.mxu0 0.0
    %2363 = vmatprep.subr.mxu0 0.0
    %2364 = vmatpush1.msra.mxu0 0.0
    %2365 = vmatprep.subr.mxu0 0.0
    %2366 = vmatpush1.msra.mxu0 0.0
    %2367 = vmatprep.subr.mxu0 0.0
    %2368 = vmatpush1.msra.mxu0 0.0
    %2369 = vmatprep.subr.mxu0 0.0
    %2370 = vmatpush1.msra.mxu0 0.0
    %2371 = vmatprep.subr.mxu0 0.0
    %2372 = vmatpush1.msra.mxu0 0.0
    %2373 = vmatprep.subr.mxu0 0.0
    %2374 = vmatpush1.msra.mxu0 0.0
    %2375 = vmatprep.subr.mxu0 0.0
    %2376 = vmatpush1.msra.mxu0 0.0
    %2377 = vmatprep.subr.mxu0 0.0
    %2378 = vmatpush1.msra.mxu0 0.0
    %2379 = vmatprep.subr.mxu0 0.0
    %2380 = vmatpush1.msra.mxu0 0.0
    %2381 = vmatprep.mubr.f32.mxu0 0.0
    %2382 = vmatmul.mubr.f32.gmra.mrb[0].mxu0 %v2101
    %v2383 = vpop.f32.mrb[0].mxu0
    %v2384 = vadd.f32 %v2300, %v2383
    %v2385 = vpop.f32.mrb[0].mxu0
    %v2386 = vadd.f32 %v2304, %v2385
    %2387 = vmatprep.mubr.f32.mxu0 0.0
    %2388 = vmatmul.mubr.f32.gmra.mrb[0].mxu0 %v2102
    %v2389 = vpop.f32.mrb[0].mxu0
    %v2390 = vadd.f32 %v2300, %v2389
    %v2391 = vpop.f32.mrb[0].mxu0
    %v2392 = vadd.f32 %v2304, %v2391
    %2393 = vdwg.mxu0
    %2394 = vmatprep.subr.mxu0 %v2106
    %2395 = vmatpush1.msra.mxu0 %v2105
    %2396 = vmatprep.subr.mxu0 %v2110
    %2397 = vmatpush1.msra.mxu0 %v2109
    %2398 = vmatprep.subr.mxu0 %v2114
    %2399 = vmatpush1.msra.mxu0 %v2113
    %2400 = vmatprep.subr.mxu0 %v2118
    %2401 = vmatpush1.msra.mxu0 %v2117
    %2402 = vmatprep.subr.mxu0 %v2122
    %2403 = vmatpush1.msra.mxu0 %v2121
    %2404 = vmatprep.subr.mxu0 %v2126
    %2405 = vmatpush1.msra.mxu0 %v2125
    %2406 = vmatprep.subr.mxu0 %v2130
    %2407 = vmatpush1.msra.mxu0 %v2129
    %2408 = vmatprep.subr.mxu0 %v2134
    %2409 = vmatpush1.msra.mxu0 %v2133
    %2410 = vmatprep.subr.mxu0 %v2138
    %2411 = vmatpush1.msra.mxu0 %v2137
    %2412 = vmatprep.subr.mxu0 %v2142
    %2413 = vmatpush1.msra.mxu0 %v2141
    %2414 = vmatprep.subr.mxu0 %v2146
    %2415 = vmatpush1.msra.mxu0 %v2145
    %2416 = vmatprep.subr.mxu0 %v2150
    %2417 = vmatpush1.msra.mxu0 %v2149
    %2418 = vmatprep.subr.mxu0 %v2154
    %2419 = vmatpush1.msra.mxu0 %v2153
    %2420 = vmatprep.subr.mxu0 %v2158
    %2421 = vmatpush1.msra.mxu0 %v2157
    %2422 = vmatprep.subr.mxu0 %v2162
    %2423 = vmatpush1.msra.mxu0 %v2161
    %2424 = vmatprep.subr.mxu0 %v2166
    %2425 = vmatpush1.msra.mxu0 %v2165
    %2426 = vmatprep.subr.mxu0 0.0
    %2427 = vmatpush1.msra.mxu0 0.0
    %2428 = vmatprep.subr.mxu0 0.0
    %2429 = vmatpush1.msra.mxu0 0.0
    %2430 = vmatprep.subr.mxu0 0.0
    %2431 = vmatpush1.msra.mxu0 0.0
    %2432 = vmatprep.subr.mxu0 0.0
    %2433 = vmatpush1.msra.mxu0 0.0
    %2434 = vmatprep.subr.mxu0 0.0
    %2435 = vmatpush1.msra.mxu0 0.0
    %2436 = vmatprep.subr.mxu0 0.0
    %2437 = vmatpush1.msra.mxu0 0.0
    %2438 = vmatprep.subr.mxu0 0.0
    %2439 = vmatpush1.msra.mxu0 0.0
    %2440 = vmatprep.subr.mxu0 0.0
    %2441 = vmatpush1.msra.mxu0 0.0
    %2442 = vmatprep.subr.mxu0 0.0
    %2443 = vmatpush1.msra.mxu0 0.0
    %2444 = vmatprep.subr.mxu0 0.0
    %2445 = vmatpush1.msra.mxu0 0.0
    %2446 = vmatprep.subr.mxu0 0.0
    %2447 = vmatpush1.msra.mxu0 0.0
    %2448 = vmatprep.subr.mxu0 0.0
    %2449 = vmatpush1.msra.mxu0 0.0
    %2450 = vmatprep.subr.mxu0 0.0
    %2451 = vmatpush1.msra.mxu0 0.0
    %2452 = vmatprep.subr.mxu0 0.0
    %2453 = vmatpush1.msra.mxu0 0.0
    %2454 = vmatprep.subr.mxu0 0.0
    %2455 = vmatpush1.msra.mxu0 0.0
    %2456 = vmatprep.subr.mxu0 0.0
    %2457 = vmatpush1.msra.mxu0 0.0
    %2458 = vmatprep.mubr.f32.mxu0 0.0
    %2459 = vmatmul.mubr.f32.gmra.mrb[0].mxu0 %v2101
    %v2460 = vpop.f32.mrb[0].mxu0
    %v2461 = vadd.f32 %v2308, %v2460
    %v2462 = vpop.f32.mrb[0].mxu0
    %v2463 = vadd.f32 %v2312, %v2462
    %2464 = vmatprep.mubr.f32.mxu0 0.0
    %2465 = vmatmul.mubr.f32.gmra.mrb[0].mxu0 %v2102
    %v2466 = vpop.f32.mrb[0].mxu0
    %v2467 = vadd.f32 %v2308, %v2466
    %v2468 = vpop.f32.mrb[0].mxu0
    %v2469 = vadd.f32 %v2312, %v2468
    %2470 = vdwg.mxu0
    %2471 = vmatprep.subr.mxu0 %v2168
    %2472 = vmatpush1.msra.mxu0 %v2167
    %2473 = vmatprep.subr.mxu0 %v2172
    %2474 = vmatpush1.msra.mxu0 %v2171
    %2475 = vmatprep.subr.mxu0 %v2176
    %2476 = vmatpush1.msra.mxu0 %v2175
    %2477 = vmatprep.subr.mxu0 %v2180
    %2478 = vmatpush1.msra.mxu0 %v2179
    %2479 = vmatprep.subr.mxu0 %v2184
    %2480 = vmatpush1.msra.mxu0 %v2183
    %2481 = vmatprep.subr.mxu0 %v2188
    %2482 = vmatpush1.msra.mxu0 %v2187
    %2483 = vmatprep.subr.mxu0 %v2192
    %2484 = vmatpush1.msra.mxu0 %v2191
    %2485 = vmatprep.subr.mxu0 %v2196
    %2486 = vmatpush1.msra.mxu0 %v2195
    %2487 = vmatprep.subr.mxu0 %v2200
    %2488 = vmatpush1.msra.mxu0 %v2199
    %2489 = vmatprep.subr.mxu0 %v2204
    %2490 = vmatpush1.msra.mxu0 %v2203
    %2491 = vmatprep.subr.mxu0 %v2208
    %2492 = vmatpush1.msra.mxu0 %v2207
    %2493 = vmatprep.subr.mxu0 %v2212
    %2494 = vmatpush1.msra.mxu0 %v2211
    %2495 = vmatprep.subr.mxu0 %v2216
    %2496 = vmatpush1.msra.mxu0 %v2215
    %2497 = vmatprep.subr.mxu0 %v2220
    %2498 = vmatpush1.msra.mxu0 %v2219
    %2499 = vmatprep.subr.mxu0 %v2224
    %2500 = vmatpush1.msra.mxu0 %v2223
    %2501 = vmatprep.subr.mxu0 %v2228
    %2502 = vmatpush1.msra.mxu0 %v2227
    %2503 = vmatprep.subr.mxu0 0.0
    %2504 = vmatpush1.msra.mxu0 0.0
    %2505 = vmatprep.subr.mxu0 0.0
    %2506 = vmatpush1.msra.mxu0 0.0
    %2507 = vmatprep.subr.mxu0 0.0
    %2508 = vmatpush1.msra.mxu0 0.0
    %2509 = vmatprep.subr.mxu0 0.0
    %2510 = vmatpush1.msra.mxu0 0.0
    %2511 = vmatprep.subr.mxu0 0.0
    %2512 = vmatpush1.msra.mxu0 0.0
    %2513 = vmatprep.subr.mxu0 0.0
    %2514 = vmatpush1.msra.mxu0 0.0
    %2515 = vmatprep.subr.mxu0 0.0
    %2516 = vmatpush1.msra.mxu0 0.0
    %2517 = vmatprep.subr.mxu0 0.0
    %2518 = vmatpush1.msra.mxu0 0.0
    %2519 = vmatprep.subr.mxu0 0.0
    %2520 = vmatpush1.msra.mxu0 0.0
    %2521 = vmatprep.subr.mxu0 0.0
    %2522 = vmatpush1.msra.mxu0 0.0
    %2523 = vmatprep.subr.mxu0 0.0
    %2524 = vmatpush1.msra.mxu0 0.0
    %2525 = vmatprep.subr.mxu0 0.0
    %2526 = vmatpush1.msra.mxu0 0.0
    %2527 = vmatprep.subr.mxu0 0.0
    %2528 = vmatpush1.msra.mxu0 0.0
    %2529 = vmatprep.subr.mxu0 0.0
    %2530 = vmatpush1.msra.mxu0 0.0
    %2531 = vmatprep.subr.mxu0 0.0
    %2532 = vmatpush1.msra.mxu0 0.0
    %2533 = vmatprep.subr.mxu0 0.0
    %2534 = vmatpush1.msra.mxu0 0.0
    %2535 = vmatprep.mubr.f32.mxu0 0.0
    %2536 = vmatmul.mubr.f32.gmra.mrb[0].mxu0 %v2101
    %v2537 = vpop.f32.mrb[0].mxu0
    %v2538 = vadd.f32 0.0, %v2537
    %v2539 = vpop.f32.mrb[0].mxu0
    %v2540 = vadd.f32 0.0, %v2539
    %2541 = vmatprep.mubr.f32.mxu0 0.0
    %2542 = vmatmul.mubr.f32.gmra.mrb[0].mxu0 %v2102
    %v2543 = vpop.f32.mrb[0].mxu0
    %v2544 = vadd.f32 0.0, %v2543
    %v2545 = vpop.f32.mrb[0].mxu0
    %v2546 = vadd.f32 0.0, %v2545
    %2547 = vdwg.mxu0
    %2548 = vmatprep.subr.mxu0 %v2170
    %2549 = vmatpush1.msra.mxu0 %v2169
    %2550 = vmatprep.subr.mxu0 %v2174
    %2551 = vmatpush1.msra.mxu0 %v2173
    %2552 = vmatprep.subr.mxu0 %v2178
    %2553 = vmatpush1.msra.mxu0 %v2177
    %2554 = vmatprep.subr.mxu0 %v2182
    %2555 = vmatpush1.msra.mxu0 %v2181
    %2556 = vmatprep.subr.mxu0 %v2186
    %2557 = vmatpush1.msra.mxu0 %v2185
    %2558 = vmatprep.subr.mxu0 %v2190
    %2559 = vmatpush1.msra.mxu0 %v2189
    %2560 = vmatprep.subr.mxu0 %v2194
    %2561 = vmatpush1.msra.mxu0 %v2193
    %2562 = vmatprep.subr.mxu0 %v2198
    %2563 = vmatpush1.msra.mxu0 %v2197
    %2564 = vmatprep.subr.mxu0 %v2202
    %2565 = vmatpush1.msra.mxu0 %v2201
    %2566 = vmatprep.subr.mxu0 %v2206
    %2567 = vmatpush1.msra.mxu0 %v2205
    %2568 = vmatprep.subr.mxu0 %v2210
    %2569 = vmatpush1.msra.mxu0 %v2209
    %2570 = vmatprep.subr.mxu0 %v2214
    %2571 = vmatpush1.msra.mxu0 %v2213
    %2572 = vmatprep.subr.mxu0 %v2218
    %2573 = vmatpush1.msra.mxu0 %v2217
    %2574 = vmatprep.subr.mxu0 %v2222
    %2575 = vmatpush1.msra.mxu0 %v2221
    %2576 = vmatprep.subr.mxu0 %v2226
    %2577 = vmatpush1.msra.mxu0 %v2225
    %2578 = vmatprep.subr.mxu0 %v2230
    %2579 = vmatpush1.msra.mxu0 %v2229
    %2580 = vmatprep.subr.mxu0 0.0
    %2581 = vmatpush1.msra.mxu0 0.0
    %2582 = vmatprep.subr.mxu0 0.0
    %2583 = vmatpush1.msra.mxu0 0.0
    %2584 = vmatprep.subr.mxu0 0.0
    %2585 = vmatpush1.msra.mxu0 0.0
    %2586 = vmatprep.subr.mxu0 0.0
    %2587 = vmatpush1.msra.mxu0 0.0
    %2588 = vmatprep.subr.mxu0 0.0
    %2589 = vmatpush1.msra.mxu0 0.0
    %2590 = vmatprep.subr.mxu0 0.0
    %2591 = vmatpush1.msra.mxu0 0.0
    %2592 = vmatprep.subr.mxu0 0.0
    %2593 = vmatpush1.msra.mxu0 0.0
    %2594 = vmatprep.subr.mxu0 0.0
    %2595 = vmatpush1.msra.mxu0 0.0
    %2596 = vmatprep.subr.mxu0 0.0
    %2597 = vmatpush1.msra.mxu0 0.0
    %2598 = vmatprep.subr.mxu0 0.0
    %2599 = vmatpush1.msra.mxu0 0.0
    %2600 = vmatprep.subr.mxu0 0.0
    %2601 = vmatpush1.msra.mxu0 0.0
    %2602 = vmatprep.subr.mxu0 0.0
    %2603 = vmatpush1.msra.mxu0 0.0
    %2604 = vmatprep.subr.mxu0 0.0
    %2605 = vmatpush1.msra.mxu0 0.0
    %2606 = vmatprep.subr.mxu0 0.0
    %2607 = vmatpush1.msra.mxu0 0.0
    %2608 = vmatprep.subr.mxu0 0.0
    %2609 = vmatpush1.msra.mxu0 0.0
    %2610 = vmatprep.subr.mxu0 0.0
    %2611 = vmatpush1.msra.mxu0 0.0
    %2612 = vmatprep.mubr.f32.mxu0 0.0
    %2613 = vmatmul.mubr.f32.gmra.mrb[0].mxu0 %v2101
    %v2614 = vpop.f32.mrb[0].mxu0
    %v2615 = vadd.f32 0.0, %v2614
    %v2616 = vpop.f32.mrb[0].mxu0
    %v2617 = vadd.f32 0.0, %v2616
    %2618 = vmatprep.mubr.f32.mxu0 0.0
    %2619 = vmatmul.mubr.f32.gmra.mrb[0].mxu0 %v2102
    %v2620 = vpop.f32.mrb[0].mxu0
    %v2621 = vadd.f32 0.0, %v2620
    %v2622 = vpop.f32.mrb[0].mxu0
    %v2623 = vadd.f32 0.0, %v2622
    %2624 = vdwg.mxu0
    %2625 = vmatprep.subr.mxu0 %v2232
    %2626 = vmatpush1.msra.mxu0 %v2231
    %2627 = vmatprep.subr.mxu0 %v2236
    %2628 = vmatpush1.msra.mxu0 %v2235
    %2629 = vmatprep.subr.mxu0 %v2240
    %2630 = vmatpush1.msra.mxu0 %v2239
    %2631 = vmatprep.subr.mxu0 %v2244
    %2632 = vmatpush1.msra.mxu0 %v2243
    %2633 = vmatprep.subr.mxu0 %v2248
    %2634 = vmatpush1.msra.mxu0 %v2247
    %2635 = vmatprep.subr.mxu0 %v2252
    %2636 = vmatpush1.msra.mxu0 %v2251
    %2637 = vmatprep.subr.mxu0 %v2256
    %2638 = vmatpush1.msra.mxu0 %v2255
    %2639 = vmatprep.subr.mxu0 %v2260
    %2640 = vmatpush1.msra.mxu0 %v2259
    %2641 = vmatprep.subr.mxu0 %v2264
    %2642 = vmatpush1.msra.mxu0 %v2263
    %2643 = vmatprep.subr.mxu0 %v2268
    %2644 = vmatpush1.msra.mxu0 %v2267
    %2645 = vmatprep.subr.mxu0 %v2272
    %2646 = vmatpush1.msra.mxu0 %v2271
    %2647 = vmatprep.subr.mxu0 %v2276
    %2648 = vmatpush1.msra.mxu0 %v2275
    %2649 = vmatprep.subr.mxu0 %v2280
    %2650 = vmatpush1.msra.mxu0 %v2279
    %2651 = vmatprep.subr.mxu0 %v2284
    %2652 = vmatpush1.msra.mxu0 %v2283
    %2653 = vmatprep.subr.mxu0 %v2288
    %2654 = vmatpush1.msra.mxu0 %v2287
    %2655 = vmatprep.subr.mxu0 %v2292
    %2656 = vmatpush1.msra.mxu0 %v2291
    %2657 = vmatprep.subr.mxu0 0.0
    %2658 = vmatpush1.msra.mxu0 0.0
    %2659 = vmatprep.subr.mxu0 0.0
    %2660 = vmatpush1.msra.mxu0 0.0
    %2661 = vmatprep.subr.mxu0 0.0
    %2662 = vmatpush1.msra.mxu0 0.0
    %2663 = vmatprep.subr.mxu0 0.0
    %2664 = vmatpush1.msra.mxu0 0.0
    %2665 = vmatprep.subr.mxu0 0.0
    %2666 = vmatpush1.msra.mxu0 0.0
    %2667 = vmatprep.subr.mxu0 0.0
    %2668 = vmatpush1.msra.mxu0 0.0
    %2669 = vmatprep.subr.mxu0 0.0
    %2670 = vmatpush1.msra.mxu0 0.0
    %2671 = vmatprep.subr.mxu0 0.0
    %2672 = vmatpush1.msra.mxu0 0.0
    %2673 = vmatprep.subr.mxu0 0.0
    %2674 = vmatpush1.msra.mxu0 0.0
    %2675 = vmatprep.subr.mxu0 0.0
    %2676 = vmatpush1.msra.mxu0 0.0
    %2677 = vmatprep.subr.mxu0 0.0
    %2678 = vmatpush1.msra.mxu0 0.0
    %2679 = vmatprep.subr.mxu0 0.0
    %2680 = vmatpush1.msra.mxu0 0.0
    %2681 = vmatprep.subr.mxu0 0.0
    %2682 = vmatpush1.msra.mxu0 0.0
    %2683 = vmatprep.subr.mxu0 0.0
    %2684 = vmatpush1.msra.mxu0 0.0
    %2685 = vmatprep.subr.mxu0 0.0
    %2686 = vmatpush1.msra.mxu0 0.0
    %2687 = vmatprep.subr.mxu0 0.0
    %2688 = vmatpush1.msra.mxu0 0.0
    %2689 = vmatprep.mubr.f32.mxu0 0.0
    %2690 = vmatmul.mubr.f32.gmra.mrb[0].mxu0 0.0
    %v2691 = vpop.f32.mrb[0].mxu0
    %v2692 = vadd.f32 0.0, %v2691
    %v2693 = vpop.f32.mrb[0].mxu0
    %v2694 = vadd.f32 0.0, %v2693
    %2695 = vdwg.mxu0
    %2696 = vmatprep.subr.mxu0 %v2234
    %2697 = vmatpush1.msra.mxu0 %v2233
    %2698 = vmatprep.subr.mxu0 %v2238
    %2699 = vmatpush1.msra.mxu0 %v2237
    %2700 = vmatprep.subr.mxu0 %v2242
    %2701 = vmatpush1.msra.mxu0 %v2241
    %2702 = vmatprep.subr.mxu0 %v2246
    %2703 = vmatpush1.msra.mxu0 %v2245
    %2704 = vmatprep.subr.mxu0 %v2250
    %2705 = vmatpush1.msra.mxu0 %v2249
    %2706 = vmatprep.subr.mxu0 %v2254
    %2707 = vmatpush1.msra.mxu0 %v2253
    %2708 = vmatprep.subr.mxu0 %v2258
    %2709 = vmatpush1.msra.mxu0 %v2257
    %2710 = vmatprep.subr.mxu0 %v2262
    %2711 = vmatpush1.msra.mxu0 %v2261
    %2712 = vmatprep.subr.mxu0 %v2266
    %2713 = vmatpush1.msra.mxu0 %v2265
    %2714 = vmatprep.subr.mxu0 %v2270
    %2715 = vmatpush1.msra.mxu0 %v2269
    %2716 = vmatprep.subr.mxu0 %v2274
    %2717 = vmatpush1.msra.mxu0 %v2273
    %2718 = vmatprep.subr.mxu0 %v2278
    %2719 = vmatpush1.msra.mxu0 %v2277
    %2720 = vmatprep.subr.mxu0 %v2282
    %2721 = vmatpush1.msra.mxu0 %v2281
    %2722 = vmatprep.subr.mxu0 %v2286
    %2723 = vmatpush1.msra.mxu0 %v2285
    %2724 = vmatprep.subr.mxu0 %v2290
    %2725 = vmatpush1.msra.mxu0 %v2289
    %2726 = vmatprep.subr.mxu0 %v2294
    %2727 = vmatpush1.msra.mxu0 %v2293
    %2728 = vmatprep.subr.mxu0 0.0
    %2729 = vmatpush1.msra.mxu0 0.0
    %2730 = vmatprep.subr.mxu0 0.0
    %2731 = vmatpush1.msra.mxu0 0.0
    %2732 = vmatprep.subr.mxu0 0.0
    %2733 = vmatpush1.msra.mxu0 0.0
    %2734 = vmatprep.subr.mxu0 0.0
    %2735 = vmatpush1.msra.mxu0 0.0
    %2736 = vmatprep.subr.mxu0 0.0
    %2737 = vmatpush1.msra.mxu0 0.0
    %2738 = vmatprep.subr.mxu0 0.0
    %2739 = vmatpush1.msra.mxu0 0.0
    %2740 = vmatprep.subr.mxu0 0.0
    %2741 = vmatpush1.msra.mxu0 0.0
    %2742 = vmatprep.subr.mxu0 0.0
    %2743 = vmatpush1.msra.mxu0 0.0
    %2744 = vmatprep.subr.mxu0 0.0
    %2745 = vmatpush1.msra.mxu0 0.0
    %2746 = vmatprep.subr.mxu0 0.0
    %2747 = vmatpush1.msra.mxu0 0.0
    %2748 = vmatprep.subr.mxu0 0.0
    %2749 = vmatpush1.msra.mxu0 0.0
    %2750 = vmatprep.subr.mxu0 0.0
    %2751 = vmatpush1.msra.mxu0 0.0
    %2752 = vmatprep.subr.mxu0 0.0
    %2753 = vmatpush1.msra.mxu0 0.0
    %2754 = vmatprep.subr.mxu0 0.0
    %2755 = vmatpush1.msra.mxu0 0.0
    %2756 = vmatprep.subr.mxu0 0.0
    %2757 = vmatpush1.msra.mxu0 0.0
    %2758 = vmatprep.subr.mxu0 0.0
    %2759 = vmatpush1.msra.mxu0 0.0
    %2760 = vmatprep.mubr.f32.mxu0 0.0
    %2761 = vmatmul.mubr.f32.gmra.mrb[0].mxu0 0.0
    %v2762 = vpop.f32.mrb[0].mxu0
    %v2763 = vadd.f32 0.0, %v2762
    %v2764 = vpop.f32.mrb[0].mxu0
    %v2765 = vadd.f32 0.0, %v2764
    %2766 = vdwg.mxu0
    %v2771 = vrot.slane %v2544, 6
    %v2772 = vrot.slane %v2546, 6
    %v2773 = vrot.slane %v2621, 6
    %v2774 = vrot.slane %v2623, 6
    %v2779 = vadd.f32 %v2384, %v2771
    %v2780 = vadd.f32 %v2386, %v2772
    %v2781 = vadd.f32 %v2461, %v2773
    %v2782 = vadd.f32 %v2463, %v2774
    %v2783 = vadd.f32 %v2779, %v2692
    %v2784 = vadd.f32 %v2780, %v2694
    %v2785 = vadd.f32 %v2781, %v2763
    %v2786 = vadd.f32 %v2782, %v2765
    %v2787 = vxor.u32 %v2783, 2147483648
    %v2788 = vmul.f32 %v2787, 1.442695
    %v2789 = vpow.pop %v2788
    %v2790 = vadd.f32 %v2789, 1.0
    %v2791 = vrcp.pop %v2790
    %v2792 = vmul.f32 1.0, %v2791
    %v2793 = vxor.u32 %v2784, 2147483648
    %v2794 = vmul.f32 %v2793, 1.442695
    %v2795 = vpow.pop %v2794
    %v2796 = vadd.f32 %v2795, 1.0
    %v2797 = vrcp.pop %v2796
    %v2798 = vmul.f32 1.0, %v2797
    %v2799 = vtanh.pop %v2785
    %v2800 = vxor.u32 %v2786, 2147483648
    %v2801 = vmul.f32 %v2800, 1.442695
    %v2802 = vpow.pop %v2801
    %v2803 = vadd.f32 %v2802, 1.0
    %v2804 = vrcp.pop %v2803
    %v2805 = vmul.f32 1.0, %v2804
    %v2806 = vmul.f32 %v2798, 0.0
    %v2807 = vmul.f32 %v2792, %v2799
    %v2808 = vadd.f32 %v2806, %v2807
    %v2809 = vtanh.pop %v2808
    %v2810 = vmul.f32 %v2805, %v2809
    %2811 = vmatprep.subr.mxu0 %v2232
    %2812 = vmatpush1.msra.mxu0 %v2231
    %2813 = vmatprep.subr.mxu0 %v2236
    %2814 = vmatpush1.msra.mxu0 %v2235
    %2815 = vmatprep.subr.mxu0 %v2240
    %2816 = vmatpush1.msra.mxu0 %v2239
    %2817 = vmatprep.subr.mxu0 %v2244
    %2818 = vmatpush1.msra.mxu0 %v2243
    %2819 = vmatprep.subr.mxu0 %v2248
    %2820 = vmatpush1.msra.mxu0 %v2247
    %2821 = vmatprep.subr.mxu0 %v2252
    %2822 = vmatpush1.msra.mxu0 %v2251
    %2823 = vmatprep.subr.mxu0 %v2256
    %2824 = vmatpush1.msra.mxu0 %v2255
    %2825 = vmatprep.subr.mxu0 %v2260
    %2826 = vmatpush1.msra.mxu0 %v2259
    %2827 = vmatprep.subr.mxu0 %v2264
    %2828 = vmatpush1.msra.mxu0 %v2263
    %2829 = vmatprep.subr.mxu0 %v2268
    %2830 = vmatpush1.msra.mxu0 %v2267
    %2831 = vmatprep.subr.mxu0 %v2272
    %2832 = vmatpush1.msra.mxu0 %v2271
    %2833 = vmatprep.subr.mxu0 %v2276
    %2834 = vmatpush1.msra.mxu0 %v2275
    %2835 = vmatprep.subr.mxu0 %v2280
    %2836 = vmatpush1.msra.mxu0 %v2279
    %2837 = vmatprep.subr.mxu0 %v2284
    %2838 = vmatpush1.msra.mxu0 %v2283
    %2839 = vmatprep.subr.mxu0 %v2288
    %2840 = vmatpush1.msra.mxu0 %v2287
    %2841 = vmatprep.subr.mxu0 %v2292
    %2842 = vmatpush1.msra.mxu0 %v2291
    %2843 = vmatprep.subr.mxu0 0.0
    %2844 = vmatpush1.msra.mxu0 0.0
    %2845 = vmatprep.subr.mxu0 0.0
    %2846 = vmatpush1.msra.mxu0 0.0
    %2847 = vmatprep.subr.mxu0 0.0
    %2848 = vmatpush1.msra.mxu0 0.0
    %2849 = vmatprep.subr.mxu0 0.0
    %2850 = vmatpush1.msra.mxu0 0.0
    %2851 = vmatprep.subr.mxu0 0.0
    %2852 = vmatpush1.msra.mxu0 0.0
    %2853 = vmatprep.subr.mxu0 0.0
    %2854 = vmatpush1.msra.mxu0 0.0
    %2855 = vmatprep.subr.mxu0 0.0
    %2856 = vmatpush1.msra.mxu0 0.0
    %2857 = vmatprep.subr.mxu0 0.0
    %2858 = vmatpush1.msra.mxu0 0.0
    %2859 = vmatprep.subr.mxu0 0.0
    %2860 = vmatpush1.msra.mxu0 0.0
    %2861 = vmatprep.subr.mxu0 0.0
    %2862 = vmatpush1.msra.mxu0 0.0
    %2863 = vmatprep.subr.mxu0 0.0
    %2864 = vmatpush1.msra.mxu0 0.0
    %2865 = vmatprep.subr.mxu0 0.0
    %2866 = vmatpush1.msra.mxu0 0.0
    %2867 = vmatprep.subr.mxu0 0.0
    %2868 = vmatpush1.msra.mxu0 0.0
    %2869 = vmatprep.subr.mxu0 0.0
    %2870 = vmatpush1.msra.mxu0 0.0
    %2871 = vmatprep.subr.mxu0 0.0
    %2872 = vmatpush1.msra.mxu0 0.0
    %2873 = vmatprep.subr.mxu0 0.0
    %2874 = vmatpush1.msra.mxu0 0.0
    %2875 = vmatprep.mubr.f32.mxu0 0.0
    %2876 = vmatmul.mubr.f32.gmra.mrb[0].mxu0 %v2810
    %v2877 = vpop.f32.mrb[0].mxu0
    %v2878 = vadd.f32 0.0, %v2877
    %v2879 = vpop.f32.mrb[0].mxu0
    %v2880 = vadd.f32 0.0, %v2879
    %2881 = vdwg.mxu0
    %2882 = vmatprep.subr.mxu0 %v2234
    %2883 = vmatpush1.msra.mxu0 %v2233
    %2884 = vmatprep.subr.mxu0 %v2238
    %2885 = vmatpush1.msra.mxu0 %v2237
    %2886 = vmatprep.subr.mxu0 %v2242
    %2887 = vmatpush1.msra.mxu0 %v2241
    %2888 = vmatprep.subr.mxu0 %v2246
    %2889 = vmatpush1.msra.mxu0 %v2245
    %2890 = vmatprep.subr.mxu0 %v2250
    %2891 = vmatpush1.msra.mxu0 %v2249
    %2892 = vmatprep.subr.mxu0 %v2254
    %2893 = vmatpush1.msra.mxu0 %v2253
    %2894 = vmatprep.subr.mxu0 %v2258
    %2895 = vmatpush1.msra.mxu0 %v2257
    %2896 = vmatprep.subr.mxu0 %v2262
    %2897 = vmatpush1.msra.mxu0 %v2261
    %2898 = vmatprep.subr.mxu0 %v2266
    %2899 = vmatpush1.msra.mxu0 %v2265
    %2900 = vmatprep.subr.mxu0 %v2270
    %2901 = vmatpush1.msra.mxu0 %v2269
    %2902 = vmatprep.subr.mxu0 %v2274
    %2903 = vmatpush1.msra.mxu0 %v2273
    %2904 = vmatprep.subr.mxu0 %v2278
    %2905 = vmatpush1.msra.mxu0 %v2277
    %2906 = vmatprep.subr.mxu0 %v2282
    %2907 = vmatpush1.msra.mxu0 %v2281
    %2908 = vmatprep.subr.mxu0 %v2286
    %2909 = vmatpush1.msra.mxu0 %v2285
    %2910 = vmatprep.subr.mxu0 %v2290
    %2911 = vmatpush1.msra.mxu0 %v2289
    %2912 = vmatprep.subr.mxu0 %v2294
    %2913 = vmatpush1.msra.mxu0 %v2293
    %2914 = vmatprep.subr.mxu0 0.0
    %2915 = vmatpush1.msra.mxu0 0.0
    %2916 = vmatprep.subr.mxu0 0.0
    %2917 = vmatpush1.msra.mxu0 0.0
    %2918 = vmatprep.subr.mxu0 0.0
    %2919 = vmatpush1.msra.mxu0 0.0
    %2920 = vmatprep.subr.mxu0 0.0
    %2921 = vmatpush1.msra.mxu0 0.0
    %2922 = vmatprep.subr.mxu0 0.0
    %2923 = vmatpush1.msra.mxu0 0.0
    %2924 = vmatprep.subr.mxu0 0.0
    %2925 = vmatpush1.msra.mxu0 0.0
    %2926 = vmatprep.subr.mxu0 0.0
    %2927 = vmatpush1.msra.mxu0 0.0
    %2928 = vmatprep.subr.mxu0 0.0
    %2929 = vmatpush1.msra.mxu0 0.0
    %2930 = vmatprep.subr.mxu0 0.0
    %2931 = vmatpush1.msra.mxu0 0.0
    %2932 = vmatprep.subr.mxu0 0.0
    %2933 = vmatpush1.msra.mxu0 0.0
    %2934 = vmatprep.subr.mxu0 0.0
    %2935 = vmatpush1.msra.mxu0 0.0
    %2936 = vmatprep.subr.mxu0 0.0
    %2937 = vmatpush1.msra.mxu0 0.0
    %2938 = vmatprep.subr.mxu0 0.0
    %2939 = vmatpush1.msra.mxu0 0.0
    %2940 = vmatprep.subr.mxu0 0.0
    %2941 = vmatpush1.msra.mxu0 0.0
    %2942 = vmatprep.subr.mxu0 0.0
    %2943 = vmatpush1.msra.mxu0 0.0
    %2944 = vmatprep.subr.mxu0 0.0
    %2945 = vmatpush1.msra.mxu0 0.0
    %2946 = vmatprep.mubr.f32.mxu0 0.0
    %2947 = vmatmul.mubr.f32.gmra.mrb[0].mxu0 %v2810
    %v2948 = vpop.f32.mrb[0].mxu0
    %v2949 = vadd.f32 0.0, %v2948
    %v2950 = vpop.f32.mrb[0].mxu0
    %v2951 = vadd.f32 0.0, %v2950
    %2952 = vdwg.mxu0
    %v2953 = vrot.slane %v2544, 2
    %v2954 = vrot.slane %v2546, 2
    %v2955 = vrot.slane %v2621, 2
    %v2956 = vrot.slane %v2623, 2
    %v2961 = vadd.f32 %v2384, %v2953
    %v2962 = vadd.f32 %v2386, %v2954
    %v2963 = vadd.f32 %v2461, %v2955
    %v2964 = vadd.f32 %v2463, %v2956
    %v2969 = vrot.slane %v2878, 6
    %v2970 = vrot.slane %v2880, 6
    %v2971 = vrot.slane %v2949, 6
    %v2972 = vrot.slane %v2951, 6
    %v2977 = vadd.f32 %v2961, %v2969
    %v2978 = vadd.f32 %v2962, %v2970
    %v2979 = vadd.f32 %v2963, %v2971
    %v2980 = vadd.f32 %v2964, %v2972
    %v2981 = vxor.u32 %v2977, 2147483648
    %v2982 = vmul.f32 %v2981, 1.442695
    %v2983 = vpow.pop %v2982
    %v2984 = vadd.f32 %v2983, 1.0
    %v2985 = vrcp.pop %v2984
    %v2986 = vmul.f32 1.0, %v2985
    %v2987 = vxor.u32 %v2978, 2147483648
    %v2988 = vmul.f32 %v2987, 1.442695
    %v2989 = vpow.pop %v2988
    %v2990 = vadd.f32 %v2989, 1.0
    %v2991 = vrcp.pop %v2990
    %v2992 = vmul.f32 1.0, %v2991
    %v2993 = vtanh.pop %v2979
    %v2994 = vxor.u32 %v2980, 2147483648
    %v2995 = vmul.f32 %v2994, 1.442695
    %v2996 = vpow.pop %v2995
    %v2997 = vadd.f32 %v2996, 1.0
    %v2998 = vrcp.pop %v2997
    %v2999 = vmul.f32 1.0, %v2998
    %v3001 = vrot.slane %v2808, 6
    %v3003 = vmul.f32 %v2992, %v3001
    %v3004 = vmul.f32 %v2986, %v2993
    %v3005 = vadd.f32 %v3003, %v3004
    %v3006 = vtanh.pop %v3005
    %v3007 = vmul.f32 %v2999, %v3006
    %v3009 = vrot.slane %v3007, 2
    %3011 = vmatprep.subr.mxu0 %v2232
    %3012 = vmatpush1.msra.mxu0 %v2231
    %3013 = vmatprep.subr.mxu0 %v2236
    %3014 = vmatpush1.msra.mxu0 %v2235
    %3015 = vmatprep.subr.mxu0 %v2240
    %3016 = vmatpush1.msra.mxu0 %v2239
    %3017 = vmatprep.subr.mxu0 %v2244
    %3018 = vmatpush1.msra.mxu0 %v2243
    %3019 = vmatprep.subr.mxu0 %v2248
    %3020 = vmatpush1.msra.mxu0 %v2247
    %3021 = vmatprep.subr.mxu0 %v2252
    %3022 = vmatpush1.msra.mxu0 %v2251
    %3023 = vmatprep.subr.mxu0 %v2256
    %3024 = vmatpush1.msra.mxu0 %v2255
    %3025 = vmatprep.subr.mxu0 %v2260
    %3026 = vmatpush1.msra.mxu0 %v2259
    %3027 = vmatprep.subr.mxu0 %v2264
    %3028 = vmatpush1.msra.mxu0 %v2263
    %3029 = vmatprep.subr.mxu0 %v2268
    %3030 = vmatpush1.msra.mxu0 %v2267
    %3031 = vmatprep.subr.mxu0 %v2272
    %3032 = vmatpush1.msra.mxu0 %v2271
    %3033 = vmatprep.subr.mxu0 %v2276
    %3034 = vmatpush1.msra.mxu0 %v2275
    %3035 = vmatprep.subr.mxu0 %v2280
    %3036 = vmatpush1.msra.mxu0 %v2279
    %3037 = vmatprep.subr.mxu0 %v2284
    %3038 = vmatpush1.msra.mxu0 %v2283
    %3039 = vmatprep.subr.mxu0 %v2288
    %3040 = vmatpush1.msra.mxu0 %v2287
    %3041 = vmatprep.subr.mxu0 %v2292
    %3042 = vmatpush1.msra.mxu0 %v2291
    %3043 = vmatprep.subr.mxu0 0.0
    %3044 = vmatpush1.msra.mxu0 0.0
    %3045 = vmatprep.subr.mxu0 0.0
    %3046 = vmatpush1.msra.mxu0 0.0
    %3047 = vmatprep.subr.mxu0 0.0
    %3048 = vmatpush1.msra.mxu0 0.0
    %3049 = vmatprep.subr.mxu0 0.0
    %3050 = vmatpush1.msra.mxu0 0.0
    %3051 = vmatprep.subr.mxu0 0.0
    %3052 = vmatpush1.msra.mxu0 0.0
    %3053 = vmatprep.subr.mxu0 0.0
    %3054 = vmatpush1.msra.mxu0 0.0
    %3055 = vmatprep.subr.mxu0 0.0
    %3056 = vmatpush1.msra.mxu0 0.0
    %3057 = vmatprep.subr.mxu0 0.0
    %3058 = vmatpush1.msra.mxu0 0.0
    %3059 = vmatprep.subr.mxu0 0.0
    %3060 = vmatpush1.msra.mxu0 0.0
    %3061 = vmatprep.subr.mxu0 0.0
    %3062 = vmatpush1.msra.mxu0 0.0
    %3063 = vmatprep.subr.mxu0 0.0
    %3064 = vmatpush1.msra.mxu0 0.0
    %3065 = vmatprep.subr.mxu0 0.0
    %3066 = vmatpush1.msra.mxu0 0.0
    %3067 = vmatprep.subr.mxu0 0.0
    %3068 = vmatpush1.msra.mxu0 0.0
    %3069 = vmatprep.subr.mxu0 0.0
    %3070 = vmatpush1.msra.mxu0 0.0
    %3071 = vmatprep.subr.mxu0 0.0
    %3072 = vmatpush1.msra.mxu0 0.0
    %3073 = vmatprep.subr.mxu0 0.0
    %3074 = vmatpush1.msra.mxu0 0.0
    %3075 = vmatprep.mubr.f32.mxu0 0.0
    %3076 = vmatmul.mubr.f32.gmra.mrb[0].mxu0 %v3009
    %v3077 = vpop.f32.mrb[0].mxu0
    %v3078 = vadd.f32 0.0, %v3077
    %v3079 = vpop.f32.mrb[0].mxu0
    %v3080 = vadd.f32 0.0, %v3079
    %3081 = vdwg.mxu0
    %3082 = vmatprep.subr.mxu0 %v2234
    %3083 = vmatpush1.msra.mxu0 %v2233
    %3084 = vmatprep.subr.mxu0 %v2238
    %3085 = vmatpush1.msra.mxu0 %v2237
    %3086 = vmatprep.subr.mxu0 %v2242
    %3087 = vmatpush1.msra.mxu0 %v2241
    %3088 = vmatprep.subr.mxu0 %v2246
    %3089 = vmatpush1.msra.mxu0 %v2245
    %3090 = vmatprep.subr.mxu0 %v2250
    %3091 = vmatpush1.msra.mxu0 %v2249
    %3092 = vmatprep.subr.mxu0 %v2254
    %3093 = vmatpush1.msra.mxu0 %v2253
    %3094 = vmatprep.subr.mxu0 %v2258
    %3095 = vmatpush1.msra.mxu0 %v2257
    %3096 = vmatprep.subr.mxu0 %v2262
    %3097 = vmatpush1.msra.mxu0 %v2261
    %3098 = vmatprep.subr.mxu0 %v2266
    %3099 = vmatpush1.msra.mxu0 %v2265
    %3100 = vmatprep.subr.mxu0 %v2270
    %3101 = vmatpush1.msra.mxu0 %v2269
    %3102 = vmatprep.subr.mxu0 %v2274
    %3103 = vmatpush1.msra.mxu0 %v2273
    %3104 = vmatprep.subr.mxu0 %v2278
    %3105 = vmatpush1.msra.mxu0 %v2277
    %3106 = vmatprep.subr.mxu0 %v2282
    %3107 = vmatpush1.msra.mxu0 %v2281
    %3108 = vmatprep.subr.mxu0 %v2286
    %3109 = vmatpush1.msra.mxu0 %v2285
    %3110 = vmatprep.subr.mxu0 %v2290
    %3111 = vmatpush1.msra.mxu0 %v2289
    %3112 = vmatprep.subr.mxu0 %v2294
    %3113 = vmatpush1.msra.mxu0 %v2293
    %3114 = vmatprep.subr.mxu0 0.0
    %3115 = vmatpush1.msra.mxu0 0.0
    %3116 = vmatprep.subr.mxu0 0.0
    %3117 = vmatpush1.msra.mxu0 0.0
    %3118 = vmatprep.subr.mxu0 0.0
    %3119 = vmatpush1.msra.mxu0 0.0
    %3120 = vmatprep.subr.mxu0 0.0
    %3121 = vmatpush1.msra.mxu0 0.0
    %3122 = vmatprep.subr.mxu0 0.0
    %3123 = vmatpush1.msra.mxu0 0.0
    %3124 = vmatprep.subr.mxu0 0.0
    %3125 = vmatpush1.msra.mxu0 0.0
    %3126 = vmatprep.subr.mxu0 0.0
    %3127 = vmatpush1.msra.mxu0 0.0
    %3128 = vmatprep.subr.mxu0 0.0
    %3129 = vmatpush1.msra.mxu0 0.0
    %3130 = vmatprep.subr.mxu0 0.0
    %3131 = vmatpush1.msra.mxu0 0.0
    %3132 = vmatprep.subr.mxu0 0.0
    %3133 = vmatpush1.msra.mxu0 0.0
    %3134 = vmatprep.subr.mxu0 0.0
    %3135 = vmatpush1.msra.mxu0 0.0
    %3136 = vmatprep.subr.mxu0 0.0
    %3137 = vmatpush1.msra.mxu0 0.0
    %3138 = vmatprep.subr.mxu0 0.0
    %3139 = vmatpush1.msra.mxu0 0.0
    %3140 = vmatprep.subr.mxu0 0.0
    %3141 = vmatpush1.msra.mxu0 0.0
    %3142 = vmatprep.subr.mxu0 0.0
    %3143 = vmatpush1.msra.mxu0 0.0
    %3144 = vmatprep.subr.mxu0 0.0
    %3145 = vmatpush1.msra.mxu0 0.0
    %3146 = vmatprep.mubr.f32.mxu0 0.0
    %3147 = vmatmul.mubr.f32.gmra.mrb[0].mxu0 %v3009
    %v3148 = vpop.f32.mrb[0].mxu0
    %v3149 = vadd.f32 0.0, %v3148
    %v3150 = vpop.f32.mrb[0].mxu0
    %v3151 = vadd.f32 0.0, %v3150
    %3152 = vdwg.mxu0
    %v3157 = vrot.slane %v3078, 4
    %v3158 = vrot.slane %v3080, 4
    %v3159 = vrot.slane %v3149, 4
    %v3160 = vrot.slane %v3151, 4
    %v3165 = vadd.f32 %v2779, %v3157
    %v3166 = vadd.f32 %v2780, %v3158
    %v3167 = vadd.f32 %v2781, %v3159
    %v3168 = vadd.f32 %v2782, %v3160
    %v3169 = vxor.u32 %v3165, 2147483648
    %v3170 = vmul.f32 %v3169, 1.442695
    %v3171 = vpow.pop %v3170
    %v3172 = vadd.f32 %v3171, 1.0
    %v3173 = vrcp.pop %v3172
    %v3174 = vmul.f32 1.0, %v3173
    %v3175 = vxor.u32 %v3166, 2147483648
    %v3176 = vmul.f32 %v3175, 1.442695
    %v3177 = vpow.pop %v3176
    %v3178 = vadd.f32 %v3177, 1.0
    %v3179 = vrcp.pop %v3178
    %v3180 = vmul.f32 1.0, %v3179
    %v3181 = vtanh.pop %v3167
    %v3182 = vxor.u32 %v3168, 2147483648
    %v3183 = vmul.f32 %v3182, 1.442695
    %v3184 = vpow.pop %v3183
    %v3185 = vadd.f32 %v3184, 1.0
    %v3186 = vrcp.pop %v3185
    %v3187 = vmul.f32 1.0, %v3186
    %v3189 = vrot.slane %v3005, 6
    %v3191 = vmul.f32 %v3180, %v3189
    %v3192 = vmul.f32 %v3174, %v3181
    %v3193 = vadd.f32 %v3191, %v3192
    %v3194 = vtanh.pop %v3193
    %v3195 = vmul.f32 %v3187, %v3194
    %v3197 = vrot.slane %v3195, 4
    %3199 = vmatprep.subr.mxu0 %v2232
    %3200 = vmatpush1.msra.mxu0 %v2231
    %3201 = vmatprep.subr.mxu0 %v2236
    %3202 = vmatpush1.msra.mxu0 %v2235
    %3203 = vmatprep.subr.mxu0 %v2240
    %3204 = vmatpush1.msra.mxu0 %v2239
    %3205 = vmatprep.subr.mxu0 %v2244
    %3206 = vmatpush1.msra.mxu0 %v2243
    %3207 = vmatprep.subr.mxu0 %v2248
    %3208 = vmatpush1.msra.mxu0 %v2247
    %3209 = vmatprep.subr.mxu0 %v2252
    %3210 = vmatpush1.msra.mxu0 %v2251
    %3211 = vmatprep.subr.mxu0 %v2256
    %3212 = vmatpush1.msra.mxu0 %v2255
    %3213 = vmatprep.subr.mxu0 %v2260
    %3214 = vmatpush1.msra.mxu0 %v2259
    %3215 = vmatprep.subr.mxu0 %v2264
    %3216 = vmatpush1.msra.mxu0 %v2263
    %3217 = vmatprep.subr.mxu0 %v2268
    %3218 = vmatpush1.msra.mxu0 %v2267
    %3219 = vmatprep.subr.mxu0 %v2272
    %3220 = vmatpush1.msra.mxu0 %v2271
    %3221 = vmatprep.subr.mxu0 %v2276
    %3222 = vmatpush1.msra.mxu0 %v2275
    %3223 = vmatprep.subr.mxu0 %v2280
    %3224 = vmatpush1.msra.mxu0 %v2279
    %3225 = vmatprep.subr.mxu0 %v2284
    %3226 = vmatpush1.msra.mxu0 %v2283
    %3227 = vmatprep.subr.mxu0 %v2288
    %3228 = vmatpush1.msra.mxu0 %v2287
    %3229 = vmatprep.subr.mxu0 %v2292
    %3230 = vmatpush1.msra.mxu0 %v2291
    %3231 = vmatprep.subr.mxu0 0.0
    %3232 = vmatpush1.msra.mxu0 0.0
    %3233 = vmatprep.subr.mxu0 0.0
    %3234 = vmatpush1.msra.mxu0 0.0
    %3235 = vmatprep.subr.mxu0 0.0
    %3236 = vmatpush1.msra.mxu0 0.0
    %3237 = vmatprep.subr.mxu0 0.0
    %3238 = vmatpush1.msra.mxu0 0.0
    %3239 = vmatprep.subr.mxu0 0.0
    %3240 = vmatpush1.msra.mxu0 0.0
    %3241 = vmatprep.subr.mxu0 0.0
    %3242 = vmatpush1.msra.mxu0 0.0
    %3243 = vmatprep.subr.mxu0 0.0
    %3244 = vmatpush1.msra.mxu0 0.0
    %3245 = vmatprep.subr.mxu0 0.0
    %3246 = vmatpush1.msra.mxu0 0.0
    %3247 = vmatprep.subr.mxu0 0.0
    %3248 = vmatpush1.msra.mxu0 0.0
    %3249 = vmatprep.subr.mxu0 0.0
    %3250 = vmatpush1.msra.mxu0 0.0
    %3251 = vmatprep.subr.mxu0 0.0
    %3252 = vmatpush1.msra.mxu0 0.0
    %3253 = vmatprep.subr.mxu0 0.0
    %3254 = vmatpush1.msra.mxu0 0.0
    %3255 = vmatprep.subr.mxu0 0.0
    %3256 = vmatpush1.msra.mxu0 0.0
    %3257 = vmatprep.subr.mxu0 0.0
    %3258 = vmatpush1.msra.mxu0 0.0
    %3259 = vmatprep.subr.mxu0 0.0
    %3260 = vmatpush1.msra.mxu0 0.0
    %3261 = vmatprep.subr.mxu0 0.0
    %3262 = vmatpush1.msra.mxu0 0.0
    %3263 = vmatprep.mubr.f32.mxu0 0.0
    %3264 = vmatmul.mubr.f32.gmra.mrb[0].mxu0 %v3197
    %v3265 = vpop.f32.mrb[0].mxu0
    %v3266 = vadd.f32 0.0, %v3265
    %v3267 = vpop.f32.mrb[0].mxu0
    %v3268 = vadd.f32 0.0, %v3267
    %3269 = vdwg.mxu0
    %3270 = vmatprep.subr.mxu0 %v2234
    %3271 = vmatpush1.msra.mxu0 %v2233
    %3272 = vmatprep.subr.mxu0 %v2238
    %3273 = vmatpush1.msra.mxu0 %v2237
    %3274 = vmatprep.subr.mxu0 %v2242
    %3275 = vmatpush1.msra.mxu0 %v2241
    %3276 = vmatprep.subr.mxu0 %v2246
    %3277 = vmatpush1.msra.mxu0 %v2245
    %3278 = vmatprep.subr.mxu0 %v2250
    %3279 = vmatpush1.msra.mxu0 %v2249
    %3280 = vmatprep.subr.mxu0 %v2254
    %3281 = vmatpush1.msra.mxu0 %v2253
    %3282 = vmatprep.subr.mxu0 %v2258
    %3283 = vmatpush1.msra.mxu0 %v2257
    %3284 = vmatprep.subr.mxu0 %v2262
    %3285 = vmatpush1.msra.mxu0 %v2261
    %3286 = vmatprep.subr.mxu0 %v2266
    %3287 = vmatpush1.msra.mxu0 %v2265
    %3288 = vmatprep.subr.mxu0 %v2270
    %3289 = vmatpush1.msra.mxu0 %v2269
    %3290 = vmatprep.subr.mxu0 %v2274
    %3291 = vmatpush1.msra.mxu0 %v2273
    %3292 = vmatprep.subr.mxu0 %v2278
    %3293 = vmatpush1.msra.mxu0 %v2277
    %3294 = vmatprep.subr.mxu0 %v2282
    %3295 = vmatpush1.msra.mxu0 %v2281
    %3296 = vmatprep.subr.mxu0 %v2286
    %3297 = vmatpush1.msra.mxu0 %v2285
    %3298 = vmatprep.subr.mxu0 %v2290
    %3299 = vmatpush1.msra.mxu0 %v2289
    %3300 = vmatprep.subr.mxu0 %v2294
    %3301 = vmatpush1.msra.mxu0 %v2293
    %3302 = vmatprep.subr.mxu0 0.0
    %3303 = vmatpush1.msra.mxu0 0.0
    %3304 = vmatprep.subr.mxu0 0.0
    %3305 = vmatpush1.msra.mxu0 0.0
    %3306 = vmatprep.subr.mxu0 0.0
    %3307 = vmatpush1.msra.mxu0 0.0
    %3308 = vmatprep.subr.mxu0 0.0
    %3309 = vmatpush1.msra.mxu0 0.0
    %3310 = vmatprep.subr.mxu0 0.0
    %3311 = vmatpush1.msra.mxu0 0.0
    %3312 = vmatprep.subr.mxu0 0.0
    %3313 = vmatpush1.msra.mxu0 0.0
    %3314 = vmatprep.subr.mxu0 0.0
    %3315 = vmatpush1.msra.mxu0 0.0
    %3316 = vmatprep.subr.mxu0 0.0
    %3317 = vmatpush1.msra.mxu0 0.0
    %3318 = vmatprep.subr.mxu0 0.0
    %3319 = vmatpush1.msra.mxu0 0.0
    %3320 = vmatprep.subr.mxu0 0.0
    %3321 = vmatpush1.msra.mxu0 0.0
    %3322 = vmatprep.subr.mxu0 0.0
    %3323 = vmatpush1.msra.mxu0 0.0
    %3324 = vmatprep.subr.mxu0 0.0
    %3325 = vmatpush1.msra.mxu0 0.0
    %3326 = vmatprep.subr.mxu0 0.0
    %3327 = vmatpush1.msra.mxu0 0.0
    %3328 = vmatprep.subr.mxu0 0.0
    %3329 = vmatpush1.msra.mxu0 0.0
    %3330 = vmatprep.subr.mxu0 0.0
    %3331 = vmatpush1.msra.mxu0 0.0
    %3332 = vmatprep.subr.mxu0 0.0
    %3333 = vmatpush1.msra.mxu0 0.0
    %3334 = vmatprep.mubr.f32.mxu0 0.0
    %3335 = vmatmul.mubr.f32.gmra.mrb[0].mxu0 %v3197
    %v3336 = vpop.f32.mrb[0].mxu0
    %v3337 = vadd.f32 0.0, %v3336
    %v3338 = vpop.f32.mrb[0].mxu0
    %v3339 = vadd.f32 0.0, %v3338
    %3340 = vdwg.mxu0
    %v3345 = vrot.slane %v3266, 2
    %v3346 = vrot.slane %v3268, 2
    %v3347 = vrot.slane %v3337, 2
    %v3348 = vrot.slane %v3339, 2
    %v3353 = vadd.f32 %v2961, %v3345
    %v3354 = vadd.f32 %v2962, %v3346
    %v3355 = vadd.f32 %v2963, %v3347
    %v3356 = vadd.f32 %v2964, %v3348
    %v3357 = vxor.u32 %v3353, 2147483648
    %v3358 = vmul.f32 %v3357, 1.442695
    %v3359 = vpow.pop %v3358
    %v3360 = vadd.f32 %v3359, 1.0
    %v3361 = vrcp.pop %v3360
    %v3362 = vmul.f32 1.0, %v3361
    %v3363 = vxor.u32 %v3354, 2147483648
    %v3364 = vmul.f32 %v3363, 1.442695
    %v3365 = vpow.pop %v3364
    %v3366 = vadd.f32 %v3365, 1.0
    %v3367 = vrcp.pop %v3366
    %v3368 = vmul.f32 1.0, %v3367
    %v3369 = vtanh.pop %v3355
    %v3370 = vxor.u32 %v3356, 2147483648
    %v3371 = vmul.f32 %v3370, 1.442695
    %v3372 = vpow.pop %v3371
    %v3373 = vadd.f32 %v3372, 1.0
    %v3374 = vrcp.pop %v3373
    %v3375 = vmul.f32 1.0, %v3374
    %v3377 = vrot.slane %v3193, 6
    %v3379 = vmul.f32 %v3368, %v3377
    %v3380 = vmul.f32 %v3362, %v3369
    %v3381 = vadd.f32 %v3379, %v3380
    %v3382 = vtanh.pop %v3381
    %v3383 = vmul.f32 %v3375, %v3382
    %v3385 = vrot.slane %v3383, 6
    %3387 = vmatprep.subr.mxu0 %v2232
    %3388 = vmatpush1.msra.mxu0 %v2231
    %3389 = vmatprep.subr.mxu0 %v2236
    %3390 = vmatpush1.msra.mxu0 %v2235
    %3391 = vmatprep.subr.mxu0 %v2240
    %3392 = vmatpush1.msra.mxu0 %v2239
    %3393 = vmatprep.subr.mxu0 %v2244
    %3394 = vmatpush1.msra.mxu0 %v2243
    %3395 = vmatprep.subr.mxu0 %v2248
    %3396 = vmatpush1.msra.mxu0 %v2247
    %3397 = vmatprep.subr.mxu0 %v2252
    %3398 = vmatpush1.msra.mxu0 %v2251
    %3399 = vmatprep.subr.mxu0 %v2256
    %3400 = vmatpush1.msra.mxu0 %v2255
    %3401 = vmatprep.subr.mxu0 %v2260
    %3402 = vmatpush1.msra.mxu0 %v2259
    %3403 = vmatprep.subr.mxu0 %v2264
    %3404 = vmatpush1.msra.mxu0 %v2263
    %3405 = vmatprep.subr.mxu0 %v2268
    %3406 = vmatpush1.msra.mxu0 %v2267
    %3407 = vmatprep.subr.mxu0 %v2272
    %3408 = vmatpush1.msra.mxu0 %v2271
    %3409 = vmatprep.subr.mxu0 %v2276
    %3410 = vmatpush1.msra.mxu0 %v2275
    %3411 = vmatprep.subr.mxu0 %v2280
    %3412 = vmatpush1.msra.mxu0 %v2279
    %3413 = vmatprep.subr.mxu0 %v2284
    %3414 = vmatpush1.msra.mxu0 %v2283
    %3415 = vmatprep.subr.mxu0 %v2288
    %3416 = vmatpush1.msra.mxu0 %v2287
    %3417 = vmatprep.subr.mxu0 %v2292
    %3418 = vmatpush1.msra.mxu0 %v2291
    %3419 = vmatprep.subr.mxu0 0.0
    %3420 = vmatpush1.msra.mxu0 0.0
    %3421 = vmatprep.subr.mxu0 0.0
    %3422 = vmatpush1.msra.mxu0 0.0
    %3423 = vmatprep.subr.mxu0 0.0
    %3424 = vmatpush1.msra.mxu0 0.0
    %3425 = vmatprep.subr.mxu0 0.0
    %3426 = vmatpush1.msra.mxu0 0.0
    %3427 = vmatprep.subr.mxu0 0.0
    %3428 = vmatpush1.msra.mxu0 0.0
    %3429 = vmatprep.subr.mxu0 0.0
    %3430 = vmatpush1.msra.mxu0 0.0
    %3431 = vmatprep.subr.mxu0 0.0
    %3432 = vmatpush1.msra.mxu0 0.0
    %3433 = vmatprep.subr.mxu0 0.0
    %3434 = vmatpush1.msra.mxu0 0.0
    %3435 = vmatprep.subr.mxu0 0.0
    %3436 = vmatpush1.msra.mxu0 0.0
    %3437 = vmatprep.subr.mxu0 0.0
    %3438 = vmatpush1.msra.mxu0 0.0
    %3439 = vmatprep.subr.mxu0 0.0
    %3440 = vmatpush1.msra.mxu0 0.0
    %3441 = vmatprep.subr.mxu0 0.0
    %3442 = vmatpush1.msra.mxu0 0.0
    %3443 = vmatprep.subr.mxu0 0.0
    %3444 = vmatpush1.msra.mxu0 0.0
    %3445 = vmatprep.subr.mxu0 0.0
    %3446 = vmatpush1.msra.mxu0 0.0
    %3447 = vmatprep.subr.mxu0 0.0
    %3448 = vmatpush1.msra.mxu0 0.0
    %3449 = vmatprep.subr.mxu0 0.0
    %3450 = vmatpush1.msra.mxu0 0.0
    %3451 = vmatprep.mubr.f32.mxu0 0.0
    %3452 = vmatmul.mubr.f32.gmra.mrb[0].mxu0 %v3385
    %v3453 = vpop.f32.mrb[0].mxu0
    %v3454 = vadd.f32 0.0, %v3453
    %v3455 = vpop.f32.mrb[0].mxu0
    %v3456 = vadd.f32 0.0, %v3455
    %3457 = vdwg.mxu0
    %3458 = vmatprep.subr.mxu0 %v2234
    %3459 = vmatpush1.msra.mxu0 %v2233
    %3460 = vmatprep.subr.mxu0 %v2238
    %3461 = vmatpush1.msra.mxu0 %v2237
    %3462 = vmatprep.subr.mxu0 %v2242
    %3463 = vmatpush1.msra.mxu0 %v2241
    %3464 = vmatprep.subr.mxu0 %v2246
    %3465 = vmatpush1.msra.mxu0 %v2245
    %3466 = vmatprep.subr.mxu0 %v2250
    %3467 = vmatpush1.msra.mxu0 %v2249
    %3468 = vmatprep.subr.mxu0 %v2254
    %3469 = vmatpush1.msra.mxu0 %v2253
    %3470 = vmatprep.subr.mxu0 %v2258
    %3471 = vmatpush1.msra.mxu0 %v2257
    %3472 = vmatprep.subr.mxu0 %v2262
    %3473 = vmatpush1.msra.mxu0 %v2261
    %3474 = vmatprep.subr.mxu0 %v2266
    %3475 = vmatpush1.msra.mxu0 %v2265
    %3476 = vmatprep.subr.mxu0 %v2270
    %3477 = vmatpush1.msra.mxu0 %v2269
    %3478 = vmatprep.subr.mxu0 %v2274
    %3479 = vmatpush1.msra.mxu0 %v2273
    %3480 = vmatprep.subr.mxu0 %v2278
    %3481 = vmatpush1.msra.mxu0 %v2277
    %3482 = vmatprep.subr.mxu0 %v2282
    %3483 = vmatpush1.msra.mxu0 %v2281
    %3484 = vmatprep.subr.mxu0 %v2286
    %3485 = vmatpush1.msra.mxu0 %v2285
    %3486 = vmatprep.subr.mxu0 %v2290
    %3487 = vmatpush1.msra.mxu0 %v2289
    %3488 = vmatprep.subr.mxu0 %v2294
    %3489 = vmatpush1.msra.mxu0 %v2293
    %3490 = vmatprep.subr.mxu0 0.0
    %3491 = vmatpush1.msra.mxu0 0.0
    %3492 = vmatprep.subr.mxu0 0.0
    %3493 = vmatpush1.msra.mxu0 0.0
    %3494 = vmatprep.subr.mxu0 0.0
    %3495 = vmatpush1.msra.mxu0 0.0
    %3496 = vmatprep.subr.mxu0 0.0
    %3497 = vmatpush1.msra.mxu0 0.0
    %3498 = vmatprep.subr.mxu0 0.0
    %3499 = vmatpush1.msra.mxu0 0.0
    %3500 = vmatprep.subr.mxu0 0.0
    %3501 = vmatpush1.msra.mxu0 0.0
    %3502 = vmatprep.subr.mxu0 0.0
    %3503 = vmatpush1.msra.mxu0 0.0
    %3504 = vmatprep.subr.mxu0 0.0
    %3505 = vmatpush1.msra.mxu0 0.0
    %3506 = vmatprep.subr.mxu0 0.0
    %3507 = vmatpush1.msra.mxu0 0.0
    %3508 = vmatprep.subr.mxu0 0.0
    %3509 = vmatpush1.msra.mxu0 0.0
    %3510 = vmatprep.subr.mxu0 0.0
    %3511 = vmatpush1.msra.mxu0 0.0
    %3512 = vmatprep.subr.mxu0 0.0
    %3513 = vmatpush1.msra.mxu0 0.0
    %3514 = vmatprep.subr.mxu0 0.0
    %3515 = vmatpush1.msra.mxu0 0.0
    %3516 = vmatprep.subr.mxu0 0.0
    %3517 = vmatpush1.msra.mxu0 0.0
    %3518 = vmatprep.subr.mxu0 0.0
    %3519 = vmatpush1.msra.mxu0 0.0
    %3520 = vmatprep.subr.mxu0 0.0
    %3521 = vmatpush1.msra.mxu0 0.0
    %3522 = vmatprep.mubr.f32.mxu0 0.0
    %3523 = vmatmul.mubr.f32.gmra.mrb[0].mxu0 %v3385
    %v3524 = vpop.f32.mrb[0].mxu0
    %v3525 = vadd.f32 0.0, %v3524
    %v3526 = vpop.f32.mrb[0].mxu0
    %v3527 = vadd.f32 0.0, %v3526
    %3528 = vdwg.mxu0
    %v3533 = vrot.slane %v2538, 6
    %v3534 = vrot.slane %v2540, 6
    %v3535 = vrot.slane %v2615, 6
    %v3536 = vrot.slane %v2617, 6
    %v3541 = vadd.f32 %v2390, %v3533
    %v3542 = vadd.f32 %v2392, %v3534
    %v3543 = vadd.f32 %v2467, %v3535
    %v3544 = vadd.f32 %v2469, %v3536
    %v3545 = vadd.f32 %v3541, %v3454
    %v3546 = vadd.f32 %v3542, %v3456
    %v3547 = vadd.f32 %v3543, %v3525
    %v3548 = vadd.f32 %v3544, %v3527
    %v3549 = vxor.u32 %v3545, 2147483648
    %v3550 = vmul.f32 %v3549, 1.442695
    %v3551 = vpow.pop %v3550
    %v3552 = vadd.f32 %v3551, 1.0
    %v3553 = vrcp.pop %v3552
    %v3554 = vmul.f32 1.0, %v3553
    %v3555 = vxor.u32 %v3546, 2147483648
    %v3556 = vmul.f32 %v3555, 1.442695
    %v3557 = vpow.pop %v3556
    %v3558 = vadd.f32 %v3557, 1.0
    %v3559 = vrcp.pop %v3558
    %v3560 = vmul.f32 1.0, %v3559
    %v3561 = vtanh.pop %v3547
    %v3562 = vxor.u32 %v3548, 2147483648
    %v3563 = vmul.f32 %v3562, 1.442695
    %v3564 = vpow.pop %v3563
    %v3565 = vadd.f32 %v3564, 1.0
    %v3566 = vrcp.pop %v3565
    %v3567 = vmul.f32 1.0, %v3566
    %v3569 = vrot.slane %v3381, 6
    %v3571 = vmul.f32 %v3560, %v3569
    %v3572 = vmul.f32 %v3554, %v3561
    %v3573 = vadd.f32 %v3571, %v3572
    %v3574 = vtanh.pop %v3573
    %v3575 = vmul.f32 %v3567, %v3574
    %3576 = vmatprep.subr.mxu0 %v2232
    %3577 = vmatpush1.msra.mxu0 %v2231
    %3578 = vmatprep.subr.mxu0 %v2236
    %3579 = vmatpush1.msra.mxu0 %v2235
    %3580 = vmatprep.subr.mxu0 %v2240
    %3581 = vmatpush1.msra.mxu0 %v2239
    %3582 = vmatprep.subr.mxu0 %v2244
    %3583 = vmatpush1.msra.mxu0 %v2243
    %3584 = vmatprep.subr.mxu0 %v2248
    %3585 = vmatpush1.msra.mxu0 %v2247
    %3586 = vmatprep.subr.mxu0 %v2252
    %3587 = vmatpush1.msra.mxu0 %v2251
    %3588 = vmatprep.subr.mxu0 %v2256
    %3589 = vmatpush1.msra.mxu0 %v2255
    %3590 = vmatprep.subr.mxu0 %v2260
    %3591 = vmatpush1.msra.mxu0 %v2259
    %3592 = vmatprep.subr.mxu0 %v2264
    %3593 = vmatpush1.msra.mxu0 %v2263
    %3594 = vmatprep.subr.mxu0 %v2268
    %3595 = vmatpush1.msra.mxu0 %v2267
    %3596 = vmatprep.subr.mxu0 %v2272
    %3597 = vmatpush1.msra.mxu0 %v2271
    %3598 = vmatprep.subr.mxu0 %v2276
    %3599 = vmatpush1.msra.mxu0 %v2275
    %3600 = vmatprep.subr.mxu0 %v2280
    %3601 = vmatpush1.msra.mxu0 %v2279
    %3602 = vmatprep.subr.mxu0 %v2284
    %3603 = vmatpush1.msra.mxu0 %v2283
    %3604 = vmatprep.subr.mxu0 %v2288
    %3605 = vmatpush1.msra.mxu0 %v2287
    %3606 = vmatprep.subr.mxu0 %v2292
    %3607 = vmatpush1.msra.mxu0 %v2291
    %3608 = vmatprep.subr.mxu0 0.0
    %3609 = vmatpush1.msra.mxu0 0.0
    %3610 = vmatprep.subr.mxu0 0.0
    %3611 = vmatpush1.msra.mxu0 0.0
    %3612 = vmatprep.subr.mxu0 0.0
    %3613 = vmatpush1.msra.mxu0 0.0
    %3614 = vmatprep.subr.mxu0 0.0
    %3615 = vmatpush1.msra.mxu0 0.0
    %3616 = vmatprep.subr.mxu0 0.0
    %3617 = vmatpush1.msra.mxu0 0.0
    %3618 = vmatprep.subr.mxu0 0.0
    %3619 = vmatpush1.msra.mxu0 0.0
    %3620 = vmatprep.subr.mxu0 0.0
    %3621 = vmatpush1.msra.mxu0 0.0
    %3622 = vmatprep.subr.mxu0 0.0
    %3623 = vmatpush1.msra.mxu0 0.0
    %3624 = vmatprep.subr.mxu0 0.0
    %3625 = vmatpush1.msra.mxu0 0.0
    %3626 = vmatprep.subr.mxu0 0.0
    %3627 = vmatpush1.msra.mxu0 0.0
    %3628 = vmatprep.subr.mxu0 0.0
    %3629 = vmatpush1.msra.mxu0 0.0
    %3630 = vmatprep.subr.mxu0 0.0
    %3631 = vmatpush1.msra.mxu0 0.0
    %3632 = vmatprep.subr.mxu0 0.0
    %3633 = vmatpush1.msra.mxu0 0.0
    %3634 = vmatprep.subr.mxu0 0.0
    %3635 = vmatpush1.msra.mxu0 0.0
    %3636 = vmatprep.subr.mxu0 0.0
    %3637 = vmatpush1.msra.mxu0 0.0
    %3638 = vmatprep.subr.mxu0 0.0
    %3639 = vmatpush1.msra.mxu0 0.0
    %3640 = vmatprep.mubr.f32.mxu0 0.0
    %3641 = vmatmul.mubr.f32.gmra.mrb[0].mxu0 %v3575
    %v3642 = vpop.f32.mrb[0].mxu0
    %v3643 = vadd.f32 0.0, %v3642
    %v3644 = vpop.f32.mrb[0].mxu0
    %v3645 = vadd.f32 0.0, %v3644
    %3646 = vdwg.mxu0
    %3647 = vmatprep.subr.mxu0 %v2234
    %3648 = vmatpush1.msra.mxu0 %v2233
    %3649 = vmatprep.subr.mxu0 %v2238
    %3650 = vmatpush1.msra.mxu0 %v2237
    %3651 = vmatprep.subr.mxu0 %v2242
    %3652 = vmatpush1.msra.mxu0 %v2241
    %3653 = vmatprep.subr.mxu0 %v2246
    %3654 = vmatpush1.msra.mxu0 %v2245
    %3655 = vmatprep.subr.mxu0 %v2250
    %3656 = vmatpush1.msra.mxu0 %v2249
    %3657 = vmatprep.subr.mxu0 %v2254
    %3658 = vmatpush1.msra.mxu0 %v2253
    %3659 = vmatprep.subr.mxu0 %v2258
    %3660 = vmatpush1.msra.mxu0 %v2257
    %3661 = vmatprep.subr.mxu0 %v2262
    %3662 = vmatpush1.msra.mxu0 %v2261
    %3663 = vmatprep.subr.mxu0 %v2266
    %3664 = vmatpush1.msra.mxu0 %v2265
    %3665 = vmatprep.subr.mxu0 %v2270
    %3666 = vmatpush1.msra.mxu0 %v2269
    %3667 = vmatprep.subr.mxu0 %v2274
    %3668 = vmatpush1.msra.mxu0 %v2273
    %3669 = vmatprep.subr.mxu0 %v2278
    %3670 = vmatpush1.msra.mxu0 %v2277
    %3671 = vmatprep.subr.mxu0 %v2282
    %3672 = vmatpush1.msra.mxu0 %v2281
    %3673 = vmatprep.subr.mxu0 %v2286
    %3674 = vmatpush1.msra.mxu0 %v2285
    %3675 = vmatprep.subr.mxu0 %v2290
    %3676 = vmatpush1.msra.mxu0 %v2289
    %3677 = vmatprep.subr.mxu0 %v2294
    %3678 = vmatpush1.msra.mxu0 %v2293
    %3679 = vmatprep.subr.mxu0 0.0
    %3680 = vmatpush1.msra.mxu0 0.0
    %3681 = vmatprep.subr.mxu0 0.0
    %3682 = vmatpush1.msra.mxu0 0.0
    %3683 = vmatprep.subr.mxu0 0.0
    %3684 = vmatpush1.msra.mxu0 0.0
    %3685 = vmatprep.subr.mxu0 0.0
    %3686 = vmatpush1.msra.mxu0 0.0
    %3687 = vmatprep.subr.mxu0 0.0
    %3688 = vmatpush1.msra.mxu0 0.0
    %3689 = vmatprep.subr.mxu0 0.0
    %3690 = vmatpush1.msra.mxu0 0.0
    %3691 = vmatprep.subr.mxu0 0.0
    %3692 = vmatpush1.msra.mxu0 0.0
    %3693 = vmatprep.subr.mxu0 0.0
    %3694 = vmatpush1.msra.mxu0 0.0
    %3695 = vmatprep.subr.mxu0 0.0
    %3696 = vmatpush1.msra.mxu0 0.0
    %3697 = vmatprep.subr.mxu0 0.0
    %3698 = vmatpush1.msra.mxu0 0.0
    %3699 = vmatprep.subr.mxu0 0.0
    %3700 = vmatpush1.msra.mxu0 0.0
    %3701 = vmatprep.subr.mxu0 0.0
    %3702 = vmatpush1.msra.mxu0 0.0
    %3703 = vmatprep.subr.mxu0 0.0
    %3704 = vmatpush1.msra.mxu0 0.0
    %3705 = vmatprep.subr.mxu0 0.0
    %3706 = vmatpush1.msra.mxu0 0.0
    %3707 = vmatprep.subr.mxu0 0.0
    %3708 = vmatpush1.msra.mxu0 0.0
    %3709 = vmatprep.subr.mxu0 0.0
    %3710 = vmatpush1.msra.mxu0 0.0
    %3711 = vmatprep.mubr.f32.mxu0 0.0
    %3712 = vmatmul.mubr.f32.gmra.mrb[0].mxu0 %v3575
    %v3713 = vpop.f32.mrb[0].mxu0
    %v3714 = vadd.f32 0.0, %v3713
    %v3715 = vpop.f32.mrb[0].mxu0
    %v3716 = vadd.f32 0.0, %v3715
    %3717 = vdwg.mxu0
    %v3718 = vrot.slane %v2538, 2
    %v3719 = vrot.slane %v2540, 2
    %v3720 = vrot.slane %v2615, 2
    %v3721 = vrot.slane %v2617, 2
    %v3726 = vadd.f32 %v2390, %v3718
    %v3727 = vadd.f32 %v2392, %v3719
    %v3728 = vadd.f32 %v2467, %v3720
    %v3729 = vadd.f32 %v2469, %v3721
    %v3734 = vrot.slane %v3643, 6
    %v3735 = vrot.slane %v3645, 6
    %v3736 = vrot.slane %v3714, 6
    %v3737 = vrot.slane %v3716, 6
    %v3742 = vadd.f32 %v3726, %v3734
    %v3743 = vadd.f32 %v3727, %v3735
    %v3744 = vadd.f32 %v3728, %v3736
    %v3745 = vadd.f32 %v3729, %v3737
    %v3746 = vxor.u32 %v3742, 2147483648
    %v3747 = vmul.f32 %v3746, 1.442695
    %v3748 = vpow.pop %v3747
    %v3749 = vadd.f32 %v3748, 1.0
    %v3750 = vrcp.pop %v3749
    %v3751 = vmul.f32 1.0, %v3750
    %v3752 = vxor.u32 %v3743, 2147483648
    %v3753 = vmul.f32 %v3752, 1.442695
    %v3754 = vpow.pop %v3753
    %v3755 = vadd.f32 %v3754, 1.0
    %v3756 = vrcp.pop %v3755
    %v3757 = vmul.f32 1.0, %v3756
    %v3758 = vtanh.pop %v3744
    %v3759 = vxor.u32 %v3745, 2147483648
    %v3760 = vmul.f32 %v3759, 1.442695
    %v3761 = vpow.pop %v3760
    %v3762 = vadd.f32 %v3761, 1.0
    %v3763 = vrcp.pop %v3762
    %v3764 = vmul.f32 1.0, %v3763
    %v3766 = vrot.slane %v3573, 6
    %v3768 = vmul.f32 %v3757, %v3766
    %v3769 = vmul.f32 %v3751, %v3758
    %v3770 = vadd.f32 %v3768, %v3769
    %v3771 = vtanh.pop %v3770
    %v3772 = vmul.f32 %v3764, %v3771
    %v3774 = vrot.slane %v3772, 2
    %3776 = vmatprep.subr.mxu0 %v2232
    %3777 = vmatpush1.msra.mxu0 %v2231
    %3778 = vmatprep.subr.mxu0 %v2236
    %3779 = vmatpush1.msra.mxu0 %v2235
    %3780 = vmatprep.subr.mxu0 %v2240
    %3781 = vmatpush1.msra.mxu0 %v2239
    %3782 = vmatprep.subr.mxu0 %v2244
    %3783 = vmatpush1.msra.mxu0 %v2243
    %3784 = vmatprep.subr.mxu0 %v2248
    %3785 = vmatpush1.msra.mxu0 %v2247
    %3786 = vmatprep.subr.mxu0 %v2252
    %3787 = vmatpush1.msra.mxu0 %v2251
    %3788 = vmatprep.subr.mxu0 %v2256
    %3789 = vmatpush1.msra.mxu0 %v2255
    %3790 = vmatprep.subr.mxu0 %v2260
    %3791 = vmatpush1.msra.mxu0 %v2259
    %3792 = vmatprep.subr.mxu0 %v2264
    %3793 = vmatpush1.msra.mxu0 %v2263
    %3794 = vmatprep.subr.mxu0 %v2268
    %3795 = vmatpush1.msra.mxu0 %v2267
    %3796 = vmatprep.subr.mxu0 %v2272
    %3797 = vmatpush1.msra.mxu0 %v2271
    %3798 = vmatprep.subr.mxu0 %v2276
    %3799 = vmatpush1.msra.mxu0 %v2275
    %3800 = vmatprep.subr.mxu0 %v2280
    %3801 = vmatpush1.msra.mxu0 %v2279
    %3802 = vmatprep.subr.mxu0 %v2284
    %3803 = vmatpush1.msra.mxu0 %v2283
    %3804 = vmatprep.subr.mxu0 %v2288
    %3805 = vmatpush1.msra.mxu0 %v2287
    %3806 = vmatprep.subr.mxu0 %v2292
    %3807 = vmatpush1.msra.mxu0 %v2291
    %3808 = vmatprep.subr.mxu0 0.0
    %3809 = vmatpush1.msra.mxu0 0.0
    %3810 = vmatprep.subr.mxu0 0.0
    %3811 = vmatpush1.msra.mxu0 0.0
    %3812 = vmatprep.subr.mxu0 0.0
    %3813 = vmatpush1.msra.mxu0 0.0
    %3814 = vmatprep.subr.mxu0 0.0
    %3815 = vmatpush1.msra.mxu0 0.0
    %3816 = vmatprep.subr.mxu0 0.0
    %3817 = vmatpush1.msra.mxu0 0.0
    %3818 = vmatprep.subr.mxu0 0.0
    %3819 = vmatpush1.msra.mxu0 0.0
    %3820 = vmatprep.subr.mxu0 0.0
    %3821 = vmatpush1.msra.mxu0 0.0
    %3822 = vmatprep.subr.mxu0 0.0
    %3823 = vmatpush1.msra.mxu0 0.0
    %3824 = vmatprep.subr.mxu0 0.0
    %3825 = vmatpush1.msra.mxu0 0.0
    %3826 = vmatprep.subr.mxu0 0.0
    %3827 = vmatpush1.msra.mxu0 0.0
    %3828 = vmatprep.subr.mxu0 0.0
    %3829 = vmatpush1.msra.mxu0 0.0
    %3830 = vmatprep.subr.mxu0 0.0
    %3831 = vmatpush1.msra.mxu0 0.0
    %3832 = vmatprep.subr.mxu0 0.0
    %3833 = vmatpush1.msra.mxu0 0.0
    %3834 = vmatprep.subr.mxu0 0.0
    %3835 = vmatpush1.msra.mxu0 0.0
    %3836 = vmatprep.subr.mxu0 0.0
    %3837 = vmatpush1.msra.mxu0 0.0
    %3838 = vmatprep.subr.mxu0 0.0
    %3839 = vmatpush1.msra.mxu0 0.0
    %3840 = vmatprep.mubr.f32.mxu0 0.0
    %3841 = vmatmul.mubr.f32.gmra.mrb[0].mxu0 %v3774
    %v3842 = vpop.f32.mrb[0].mxu0
    %v3843 = vadd.f32 0.0, %v3842
    %v3844 = vpop.f32.mrb[0].mxu0
    %v3845 = vadd.f32 0.0, %v3844
    %3846 = vdwg.mxu0
    %3847 = vmatprep.subr.mxu0 %v2234
    %3848 = vmatpush1.msra.mxu0 %v2233
    %3849 = vmatprep.subr.mxu0 %v2238
    %3850 = vmatpush1.msra.mxu0 %v2237
    %3851 = vmatprep.subr.mxu0 %v2242
    %3852 = vmatpush1.msra.mxu0 %v2241
    %3853 = vmatprep.subr.mxu0 %v2246
    %3854 = vmatpush1.msra.mxu0 %v2245
    %3855 = vmatprep.subr.mxu0 %v2250
    %3856 = vmatpush1.msra.mxu0 %v2249
    %3857 = vmatprep.subr.mxu0 %v2254
    %3858 = vmatpush1.msra.mxu0 %v2253
    %3859 = vmatprep.subr.mxu0 %v2258
    %3860 = vmatpush1.msra.mxu0 %v2257
    %3861 = vmatprep.subr.mxu0 %v2262
    %3862 = vmatpush1.msra.mxu0 %v2261
    %3863 = vmatprep.subr.mxu0 %v2266
    %3864 = vmatpush1.msra.mxu0 %v2265
    %3865 = vmatprep.subr.mxu0 %v2270
    %3866 = vmatpush1.msra.mxu0 %v2269
    %3867 = vmatprep.subr.mxu0 %v2274
    %3868 = vmatpush1.msra.mxu0 %v2273
    %3869 = vmatprep.subr.mxu0 %v2278
    %3870 = vmatpush1.msra.mxu0 %v2277
    %3871 = vmatprep.subr.mxu0 %v2282
    %3872 = vmatpush1.msra.mxu0 %v2281
    %3873 = vmatprep.subr.mxu0 %v2286
    %3874 = vmatpush1.msra.mxu0 %v2285
    %3875 = vmatprep.subr.mxu0 %v2290
    %3876 = vmatpush1.msra.mxu0 %v2289
    %3877 = vmatprep.subr.mxu0 %v2294
    %3878 = vmatpush1.msra.mxu0 %v2293
    %3879 = vmatprep.subr.mxu0 0.0
    %3880 = vmatpush1.msra.mxu0 0.0
    %3881 = vmatprep.subr.mxu0 0.0
    %3882 = vmatpush1.msra.mxu0 0.0
    %3883 = vmatprep.subr.mxu0 0.0
    %3884 = vmatpush1.msra.mxu0 0.0
    %3885 = vmatprep.subr.mxu0 0.0
    %3886 = vmatpush1.msra.mxu0 0.0
    %3887 = vmatprep.subr.mxu0 0.0
    %3888 = vmatpush1.msra.mxu0 0.0
    %3889 = vmatprep.subr.mxu0 0.0
    %3890 = vmatpush1.msra.mxu0 0.0
    %3891 = vmatprep.subr.mxu0 0.0
    %3892 = vmatpush1.msra.mxu0 0.0
    %3893 = vmatprep.subr.mxu0 0.0
    %3894 = vmatpush1.msra.mxu0 0.0
    %3895 = vmatprep.subr.mxu0 0.0
    %3896 = vmatpush1.msra.mxu0 0.0
    %3897 = vmatprep.subr.mxu0 0.0
    %3898 = vmatpush1.msra.mxu0 0.0
    %3899 = vmatprep.subr.mxu0 0.0
    %3900 = vmatpush1.msra.mxu0 0.0
    %3901 = vmatprep.subr.mxu0 0.0
    %3902 = vmatpush1.msra.mxu0 0.0
    %3903 = vmatprep.subr.mxu0 0.0
    %3904 = vmatpush1.msra.mxu0 0.0
    %3905 = vmatprep.subr.mxu0 0.0
    %3906 = vmatpush1.msra.mxu0 0.0
    %3907 = vmatprep.subr.mxu0 0.0
    %3908 = vmatpush1.msra.mxu0 0.0
    %3909 = vmatprep.subr.mxu0 0.0
    %3910 = vmatpush1.msra.mxu0 0.0
    %3911 = vmatprep.mubr.f32.mxu0 0.0
    %3912 = vmatmul.mubr.f32.gmra.mrb[0].mxu0 %v3774
    %v3913 = vpop.f32.mrb[0].mxu0
    %v3914 = vadd.f32 0.0, %v3913
    %v3915 = vpop.f32.mrb[0].mxu0
    %v3916 = vadd.f32 0.0, %v3915
    %3917 = vdwg.mxu0
    %v3922 = vrot.slane %v3843, 4
    %v3923 = vrot.slane %v3845, 4
    %v3924 = vrot.slane %v3914, 4
    %v3925 = vrot.slane %v3916, 4
    %v3930 = vadd.f32 %v3541, %v3922
    %v3931 = vadd.f32 %v3542, %v3923
    %v3932 = vadd.f32 %v3543, %v3924
    %v3933 = vadd.f32 %v3544, %v3925
    %v3934 = vxor.u32 %v3930, 2147483648
    %v3935 = vmul.f32 %v3934, 1.442695
    %v3936 = vpow.pop %v3935
    %v3937 = vadd.f32 %v3936, 1.0
    %v3938 = vrcp.pop %v3937
    %v3939 = vmul.f32 1.0, %v3938
    %v3940 = vxor.u32 %v3931, 2147483648
    %v3941 = vmul.f32 %v3940, 1.442695
    %v3942 = vpow.pop %v3941
    %v3943 = vadd.f32 %v3942, 1.0
    %v3944 = vrcp.pop %v3943
    %v3945 = vmul.f32 1.0, %v3944
    %v3946 = vtanh.pop %v3932
    %v3947 = vxor.u32 %v3933, 2147483648
    %v3948 = vmul.f32 %v3947, 1.442695
    %v3949 = vpow.pop %v3948
    %v3950 = vadd.f32 %v3949, 1.0
    %v3951 = vrcp.pop %v3950
    %v3952 = vmul.f32 1.0, %v3951
    %v3954 = vrot.slane %v3770, 6
    %v3956 = vmul.f32 %v3945, %v3954
    %v3957 = vmul.f32 %v3939, %v3946
    %v3958 = vadd.f32 %v3956, %v3957
    %v3959 = vtanh.pop %v3958
    %v3960 = vmul.f32 %v3952, %v3959
    %v3962 = vrot.slane %v3960, 4
    %3964 = vmatprep.subr.mxu0 %v2232
    %3965 = vmatpush1.msra.mxu0 %v2231
    %3966 = vmatprep.subr.mxu0 %v2236
    %3967 = vmatpush1.msra.mxu0 %v2235
    %3968 = vmatprep.subr.mxu0 %v2240
    %3969 = vmatpush1.msra.mxu0 %v2239
    %3970 = vmatprep.subr.mxu0 %v2244
    %3971 = vmatpush1.msra.mxu0 %v2243
    %3972 = vmatprep.subr.mxu0 %v2248
    %3973 = vmatpush1.msra.mxu0 %v2247
    %3974 = vmatprep.subr.mxu0 %v2252
    %3975 = vmatpush1.msra.mxu0 %v2251
    %3976 = vmatprep.subr.mxu0 %v2256
    %3977 = vmatpush1.msra.mxu0 %v2255
    %3978 = vmatprep.subr.mxu0 %v2260
    %3979 = vmatpush1.msra.mxu0 %v2259
    %3980 = vmatprep.subr.mxu0 %v2264
    %3981 = vmatpush1.msra.mxu0 %v2263
    %3982 = vmatprep.subr.mxu0 %v2268
    %3983 = vmatpush1.msra.mxu0 %v2267
    %3984 = vmatprep.subr.mxu0 %v2272
    %3985 = vmatpush1.msra.mxu0 %v2271
    %3986 = vmatprep.subr.mxu0 %v2276
    %3987 = vmatpush1.msra.mxu0 %v2275
    %3988 = vmatprep.subr.mxu0 %v2280
    %3989 = vmatpush1.msra.mxu0 %v2279
    %3990 = vmatprep.subr.mxu0 %v2284
    %3991 = vmatpush1.msra.mxu0 %v2283
    %3992 = vmatprep.subr.mxu0 %v2288
    %3993 = vmatpush1.msra.mxu0 %v2287
    %3994 = vmatprep.subr.mxu0 %v2292
    %3995 = vmatpush1.msra.mxu0 %v2291
    %3996 = vmatprep.subr.mxu0 0.0
    %3997 = vmatpush1.msra.mxu0 0.0
    %3998 = vmatprep.subr.mxu0 0.0
    %3999 = vmatpush1.msra.mxu0 0.0
    %4000 = vmatprep.subr.mxu0 0.0
    %4001 = vmatpush1.msra.mxu0 0.0
    %4002 = vmatprep.subr.mxu0 0.0
    %4003 = vmatpush1.msra.mxu0 0.0
    %4004 = vmatprep.subr.mxu0 0.0
    %4005 = vmatpush1.msra.mxu0 0.0
    %4006 = vmatprep.subr.mxu0 0.0
    %4007 = vmatpush1.msra.mxu0 0.0
    %4008 = vmatprep.subr.mxu0 0.0
    %4009 = vmatpush1.msra.mxu0 0.0
    %4010 = vmatprep.subr.mxu0 0.0
    %4011 = vmatpush1.msra.mxu0 0.0
    %4012 = vmatprep.subr.mxu0 0.0
    %4013 = vmatpush1.msra.mxu0 0.0
    %4014 = vmatprep.subr.mxu0 0.0
    %4015 = vmatpush1.msra.mxu0 0.0
    %4016 = vmatprep.subr.mxu0 0.0
    %4017 = vmatpush1.msra.mxu0 0.0
    %4018 = vmatprep.subr.mxu0 0.0
    %4019 = vmatpush1.msra.mxu0 0.0
    %4020 = vmatprep.subr.mxu0 0.0
    %4021 = vmatpush1.msra.mxu0 0.0
    %4022 = vmatprep.subr.mxu0 0.0
    %4023 = vmatpush1.msra.mxu0 0.0
    %4024 = vmatprep.subr.mxu0 0.0
    %4025 = vmatpush1.msra.mxu0 0.0
    %4026 = vmatprep.subr.mxu0 0.0
    %4027 = vmatpush1.msra.mxu0 0.0
    %4028 = vmatprep.mubr.f32.mxu0 0.0
    %4029 = vmatmul.mubr.f32.gmra.mrb[0].mxu0 %v3962
    %v4030 = vpop.f32.mrb[0].mxu0
    %v4031 = vadd.f32 0.0, %v4030
    %v4032 = vpop.f32.mrb[0].mxu0
    %v4033 = vadd.f32 0.0, %v4032
    %4034 = vdwg.mxu0
    %4035 = vmatprep.subr.mxu0 %v2234
    %4036 = vmatpush1.msra.mxu0 %v2233
    %4037 = vmatprep.subr.mxu0 %v2238
    %4038 = vmatpush1.msra.mxu0 %v2237
    %4039 = vmatprep.subr.mxu0 %v2242
    %4040 = vmatpush1.msra.mxu0 %v2241
    %4041 = vmatprep.subr.mxu0 %v2246
    %4042 = vmatpush1.msra.mxu0 %v2245
    %4043 = vmatprep.subr.mxu0 %v2250
    %4044 = vmatpush1.msra.mxu0 %v2249
    %4045 = vmatprep.subr.mxu0 %v2254
    %4046 = vmatpush1.msra.mxu0 %v2253
    %4047 = vmatprep.subr.mxu0 %v2258
    %4048 = vmatpush1.msra.mxu0 %v2257
    %4049 = vmatprep.subr.mxu0 %v2262
    %4050 = vmatpush1.msra.mxu0 %v2261
    %4051 = vmatprep.subr.mxu0 %v2266
    %4052 = vmatpush1.msra.mxu0 %v2265
    %4053 = vmatprep.subr.mxu0 %v2270
    %4054 = vmatpush1.msra.mxu0 %v2269
    %4055 = vmatprep.subr.mxu0 %v2274
    %4056 = vmatpush1.msra.mxu0 %v2273
    %4057 = vmatprep.subr.mxu0 %v2278
    %4058 = vmatpush1.msra.mxu0 %v2277
    %4059 = vmatprep.subr.mxu0 %v2282
    %4060 = vmatpush1.msra.mxu0 %v2281
    %4061 = vmatprep.subr.mxu0 %v2286
    %4062 = vmatpush1.msra.mxu0 %v2285
    %4063 = vmatprep.subr.mxu0 %v2290
    %4064 = vmatpush1.msra.mxu0 %v2289
    %4065 = vmatprep.subr.mxu0 %v2294
    %4066 = vmatpush1.msra.mxu0 %v2293
    %4067 = vmatprep.subr.mxu0 0.0
    %4068 = vmatpush1.msra.mxu0 0.0
    %4069 = vmatprep.subr.mxu0 0.0
    %4070 = vmatpush1.msra.mxu0 0.0
    %4071 = vmatprep.subr.mxu0 0.0
    %4072 = vmatpush1.msra.mxu0 0.0
    %4073 = vmatprep.subr.mxu0 0.0
    %4074 = vmatpush1.msra.mxu0 0.0
    %4075 = vmatprep.subr.mxu0 0.0
    %4076 = vmatpush1.msra.mxu0 0.0
    %4077 = vmatprep.subr.mxu0 0.0
    %4078 = vmatpush1.msra.mxu0 0.0
    %4079 = vmatprep.subr.mxu0 0.0
    %4080 = vmatpush1.msra.mxu0 0.0
    %4081 = vmatprep.subr.mxu0 0.0
    %4082 = vmatpush1.msra.mxu0 0.0
    %4083 = vmatprep.subr.mxu0 0.0
    %4084 = vmatpush1.msra.mxu0 0.0
    %4085 = vmatprep.subr.mxu0 0.0
    %4086 = vmatpush1.msra.mxu0 0.0
    %4087 = vmatprep.subr.mxu0 0.0
    %4088 = vmatpush1.msra.mxu0 0.0
    %4089 = vmatprep.subr.mxu0 0.0
    %4090 = vmatpush1.msra.mxu0 0.0
    %4091 = vmatprep.subr.mxu0 0.0
    %4092 = vmatpush1.msra.mxu0 0.0
    %4093 = vmatprep.subr.mxu0 0.0
    %4094 = vmatpush1.msra.mxu0 0.0
    %4095 = vmatprep.subr.mxu0 0.0
    %4096 = vmatpush1.msra.mxu0 0.0
    %4097 = vmatprep.subr.mxu0 0.0
    %4098 = vmatpush1.msra.mxu0 0.0
    %4099 = vmatprep.mubr.f32.mxu0 0.0
    %4100 = vmatmul.mubr.f32.gmra.mrb[0].mxu0 %v3962
    %v4101 = vpop.f32.mrb[0].mxu0
    %v4102 = vadd.f32 0.0, %v4101
    %v4103 = vpop.f32.mrb[0].mxu0
    %v4104 = vadd.f32 0.0, %v4103
    %4105 = vdwg.mxu0
    %v4110 = vrot.slane %v4031, 2
    %v4111 = vrot.slane %v4033, 2
    %v4112 = vrot.slane %v4102, 2
    %v4113 = vrot.slane %v4104, 2
    %v4118 = vadd.f32 %v3726, %v4110
    %v4119 = vadd.f32 %v3727, %v4111
    %v4120 = vadd.f32 %v3728, %v4112
    %v4121 = vadd.f32 %v3729, %v4113
    %v4122 = vxor.u32 %v4118, 2147483648
    %v4123 = vmul.f32 %v4122, 1.442695
    %v4124 = vpow.pop %v4123
    %v4125 = vadd.f32 %v4124, 1.0
    %v4126 = vrcp.pop %v4125
    %v4127 = vmul.f32 1.0, %v4126
    %v4128 = vxor.u32 %v4119, 2147483648
    %v4129 = vmul.f32 %v4128, 1.442695
    %v4130 = vpow.pop %v4129
    %v4131 = vadd.f32 %v4130, 1.0
    %v4132 = vrcp.pop %v4131
    %v4133 = vmul.f32 1.0, %v4132
    %v4134 = vtanh.pop %v4120
    %v4135 = vxor.u32 %v4121, 2147483648
    %v4136 = vmul.f32 %v4135, 1.442695
    %v4137 = vpow.pop %v4136
    %v4138 = vadd.f32 %v4137, 1.0
    %v4139 = vrcp.pop %v4138
    %v4140 = vmul.f32 1.0, %v4139
    %v4142 = vrot.slane %v3958, 6
    %v4144 = vmul.f32 %v4133, %v4142
    %v4145 = vmul.f32 %v4127, %v4134
    %v4146 = vadd.f32 %v4144, %v4145
    %v4147 = vtanh.pop %v4146
    %v4148 = vmul.f32 %v4140, %v4147
    %v4149 = vld [vmem:[%s9] sm:$0xff]
    %v4150 = vld [vmem:[%s9 + $0x8] sm:$0xff]
    %v4151 = vld [vmem:[%s9 + $0x10] sm:$0xff]
    %v4152 = vld [vmem:[%s9 + $0x18] sm:$0xff]
    %v4153 = vld [vmem:[%s9 + $0x20] sm:$0xff]
    %v4154 = vld [vmem:[%s9 + $0x28] sm:$0xff]
    %v4155 = vld [vmem:[%s9 + $0x30] sm:$0xff]
    %v4156 = vld [vmem:[%s9 + $0x38] sm:$0xff]
    %v4157 = vld [vmem:[%s9 + $0x40] sm:$0xff]
    %v4158 = vld [vmem:[%s9 + $0x48] sm:$0xff]
    %v4159 = vld [vmem:[%s9 + $0x50] sm:$0xff]
    %v4160 = vld [vmem:[%s9 + $0x58] sm:$0xff]
    %v4161 = vld [vmem:[%s9 + $0x60] sm:$0xff]
    %v4162 = vld [vmem:[%s9 + $0x68] sm:$0xff]
    %v4163 = vld [vmem:[%s9 + $0x70] sm:$0xff]
    %v4164 = vld [vmem:[%s9 + $0x78] sm:$0xff]
    %v4165 = vld [vmem:[%s10] sm:$0x1]
    %v4166 = vld [vmem:[%s11] sm:$0xff]
    %v4167 = vld [vmem:[%s11 + $0x8] sm:$0xff]
    %v4168 = vld [vmem:[#allocation14] sm:$0x1]
    %v4170 = vlaneseq
    %v4171 = vshrl.u32 %v4170, 7
    %v4172 = vsub.s32 0, %v4171
    %v4173 = vrot.slane %v4165, %v4172
    %v4176 = vrot.slane %v4148, 6
    %4178 = vmatprep.subr.mxu0 0.0
    %4179 = vmatpush1.msra.mxu0 %v4149
    %4180 = vmatprep.subr.mxu0 0.0
    %4181 = vmatpush1.msra.mxu0 %v4150
    %4182 = vmatprep.subr.mxu0 0.0
    %4183 = vmatpush1.msra.mxu0 %v4151
    %4184 = vmatprep.subr.mxu0 0.0
    %4185 = vmatpush1.msra.mxu0 %v4152
    %4186 = vmatprep.subr.mxu0 0.0
    %4187 = vmatpush1.msra.mxu0 %v4153
    %4188 = vmatprep.subr.mxu0 0.0
    %4189 = vmatpush1.msra.mxu0 %v4154
    %4190 = vmatprep.subr.mxu0 0.0
    %4191 = vmatpush1.msra.mxu0 %v4155
    %4192 = vmatprep.subr.mxu0 0.0
    %4193 = vmatpush1.msra.mxu0 %v4156
    %4194 = vmatprep.subr.mxu0 0.0
    %4195 = vmatpush1.msra.mxu0 %v4157
    %4196 = vmatprep.subr.mxu0 0.0
    %4197 = vmatpush1.msra.mxu0 %v4158
    %4198 = vmatprep.subr.mxu0 0.0
    %4199 = vmatpush1.msra.mxu0 %v4159
    %4200 = vmatprep.subr.mxu0 0.0
    %4201 = vmatpush1.msra.mxu0 %v4160
    %4202 = vmatprep.subr.mxu0 0.0
    %4203 = vmatpush1.msra.mxu0 %v4161
    %4204 = vmatprep.subr.mxu0 0.0
    %4205 = vmatpush1.msra.mxu0 %v4162
    %4206 = vmatprep.subr.mxu0 0.0
    %4207 = vmatpush1.msra.mxu0 %v4163
    %4208 = vmatprep.subr.mxu0 0.0
    %4209 = vmatpush1.msra.mxu0 %v4164
    %4210 = vmatprep.subr.mxu0 0.0
    %4211 = vmatpush1.msra.mxu0 0.0
    %4212 = vmatprep.subr.mxu0 0.0
    %4213 = vmatpush1.msra.mxu0 0.0
    %4214 = vmatprep.subr.mxu0 0.0
    %4215 = vmatpush1.msra.mxu0 0.0
    %4216 = vmatprep.subr.mxu0 0.0
    %4217 = vmatpush1.msra.mxu0 0.0
    %4218 = vmatprep.subr.mxu0 0.0
    %4219 = vmatpush1.msra.mxu0 0.0
    %4220 = vmatprep.subr.mxu0 0.0
    %4221 = vmatpush1.msra.mxu0 0.0
    %4222 = vmatprep.subr.mxu0 0.0
    %4223 = vmatpush1.msra.mxu0 0.0
    %4224 = vmatprep.subr.mxu0 0.0
    %4225 = vmatpush1.msra.mxu0 0.0
    %4226 = vmatprep.subr.mxu0 0.0
    %4227 = vmatpush1.msra.mxu0 0.0
    %4228 = vmatprep.subr.mxu0 0.0
    %4229 = vmatpush1.msra.mxu0 0.0
    %4230 = vmatprep.subr.mxu0 0.0
    %4231 = vmatpush1.msra.mxu0 0.0
    %4232 = vmatprep.subr.mxu0 0.0
    %4233 = vmatpush1.msra.mxu0 0.0
    %4234 = vmatprep.subr.mxu0 0.0
    %4235 = vmatpush1.msra.mxu0 0.0
    %4236 = vmatprep.subr.mxu0 0.0
    %4237 = vmatpush1.msra.mxu0 0.0
    %4238 = vmatprep.subr.mxu0 0.0
    %4239 = vmatpush1.msra.mxu0 0.0
    %4240 = vmatprep.subr.mxu0 0.0
    %4241 = vmatpush1.msra.mxu0 0.0
    %4242 = vmatprep.mubr.f32.mxu0 0.0
    %4243 = vmatmul.mubr.f32.gmra.mrb[0].mxu0 %v4176
    %v4244 = vpop.f32.mrb[0].mxu0
    %v4245 = vadd.f32 %v4173, %v4244
    %v4246 = vpop.f32.mrb[0].mxu0
    %4247 = vdwg.mxu0
    %v4249 = vlaneseq
    %v4250 = vshrl.u32 %v4249, 7
    %v4251 = vsub.s32 0, %v4250
    %v4252 = vrot.slane %v4168, %v4251
    %vm4254 = vcmask 130048
    %v4256 = vsel %vm4254, %v4245, 0
    %4258 = vmatprep.subr.mxu0 0.0
    %4259 = vmatpush1.msra.mxu0 %v4166
    %4260 = vmatprep.subr.mxu0 0.0
    %4261 = vmatpush1.msra.mxu0 %v4167
    %4262 = vmatprep.subr.mxu0 0.0
    %4263 = vmatpush1.msra.mxu0 0.0
    %4264 = vmatprep.subr.mxu0 0.0
    %4265 = vmatpush1.msra.mxu0 0.0
    %4266 = vmatprep.subr.mxu0 0.0
    %4267 = vmatpush1.msra.mxu0 0.0
    %4268 = vmatprep.subr.mxu0 0.0
    %4269 = vmatpush1.msra.mxu0 0.0
    %4270 = vmatprep.subr.mxu0 0.0
    %4271 = vmatpush1.msra.mxu0 0.0
    %4272 = vmatprep.subr.mxu0 0.0
    %4273 = vmatpush1.msra.mxu0 0.0
    %4274 = vmatprep.subr.mxu0 0.0
    %4275 = vmatpush1.msra.mxu0 0.0
    %4276 = vmatprep.subr.mxu0 0.0
    %4277 = vmatpush1.msra.mxu0 0.0
    %4278 = vmatprep.subr.mxu0 0.0
    %4279 = vmatpush1.msra.mxu0 0.0
    %4280 = vmatprep.subr.mxu0 0.0
    %4281 = vmatpush1.msra.mxu0 0.0
    %4282 = vmatprep.subr.mxu0 0.0
    %4283 = vmatpush1.msra.mxu0 0.0
    %4284 = vmatprep.subr.mxu0 0.0
    %4285 = vmatpush1.msra.mxu0 0.0
    %4286 = vmatprep.subr.mxu0 0.0
    %4287 = vmatpush1.msra.mxu0 0.0
    %4288 = vmatprep.subr.mxu0 0.0
    %4289 = vmatpush1.msra.mxu0 0.0
    %4290 = vmatprep.subr.mxu0 0.0
    %4291 = vmatpush1.msra.mxu0 0.0
    %4292 = vmatprep.subr.mxu0 0.0
    %4293 = vmatpush1.msra.mxu0 0.0
    %4294 = vmatprep.subr.mxu0 0.0
    %4295 = vmatpush1.msra.mxu0 0.0
    %4296 = vmatprep.subr.mxu0 0.0
    %4297 = vmatpush1.msra.mxu0 0.0
    %4298 = vmatprep.subr.mxu0 0.0
    %4299 = vmatpush1.msra.mxu0 0.0
    %4300 = vmatprep.subr.mxu0 0.0
    %4301 = vmatpush1.msra.mxu0 0.0
    %4302 = vmatprep.subr.mxu0 0.0
    %4303 = vmatpush1.msra.mxu0 0.0
    %4304 = vmatprep.subr.mxu0 0.0
    %4305 = vmatpush1.msra.mxu0 0.0
    %4306 = vmatprep.subr.mxu0 0.0
    %4307 = vmatpush1.msra.mxu0 0.0
    %4308 = vmatprep.subr.mxu0 0.0
    %4309 = vmatpush1.msra.mxu0 0.0
    %4310 = vmatprep.subr.mxu0 0.0
    %4311 = vmatpush1.msra.mxu0 0.0
    %4312 = vmatprep.subr.mxu0 0.0
    %4313 = vmatpush1.msra.mxu0 0.0
    %4314 = vmatprep.subr.mxu0 0.0
    %4315 = vmatpush1.msra.mxu0 0.0
    %4316 = vmatprep.subr.mxu0 0.0
    %4317 = vmatpush1.msra.mxu0 0.0
    %4318 = vmatprep.subr.mxu0 0.0
    %4319 = vmatpush1.msra.mxu0 0.0
    %4320 = vmatprep.subr.mxu0 0.0
    %4321 = vmatpush1.msra.mxu0 0.0
    %4322 = vmatprep.mubr.f32.mxu0 0.0
    %4323 = vmatmul.mubr.f32.gmra.mrb[0].mxu0 %v4256
    %v4324 = vpop.f32.mrb[0].mxu0
    %v4325 = vadd.f32 %v4252, %v4324
    %v4326 = vpop.f32.mrb[0].mxu0
    %4327 = vdwg.mxu0
    %vm4328 = vcmask 58368
    %4329 = vst.msk [vmem:[#allocation15] sm:$0x3] %vm4328, %v4325
    // Predicated region
    $region82: #{simple_snli_forward.1} parent=1 // pred_check
      _
    $region83: #{simple_snli_forward.1} parent=1 // pred_check_branch
      %4331 = sbr.rel (0) target = $region85
    $region84: #{simple_snli_forward.1} parent=1 // pred_region
      %s4333 = ssub.s32 32, 32
      %4334 = vsyncadd [#allocation5], %s4333
      %s4336 = sshll.u32 [#allocation15], 4
      %s4337 = int_to_ptr.vmem [resolvable:$true] %s4336
      %4339 = dma.vmem_to_hbm [thread:$0]  %s4337, 32, %s13, [#allocation5]
    $region85: #{simple_snli_forward.1} parent=1 // pred_fallthru
      _
    // Predicated region
    $region86: #{simple_snli_forward.1} parent=1 // pred_check
      _
    $region87: #{simple_snli_forward.1} parent=1 // pred_check_branch
      %4341 = sbr.rel (0) target = $region89
    $region88: #{simple_snli_forward.1} parent=1 // pred_region
      %4342 = dma.done [#allocation5], 32
    $region89: #{simple_snli_forward.1} parent=1 // pred_fallthru
      _
    %4343 = vsyncpa [#allocation4], 1
    %4344 = vsyncpa [#allocation7], 1
    %4345 = vsyncpa [#allocation10], 1
    %4346 = vsyncpa [#allocation13], 1
    %4347 = vsyncpa [#allocation5], 1

</llo_original>
